<compile_context>
chip_gen: v7x
topology: tpu7x:2x2x1
jax: 0.10.0
libtpu: 0.0.40
codegen_flags: <defaults>
</compile_context>

<pallas_src>
import jax
import jax.numpy as jnp
from jax.experimental import pallas as pl
from jax.experimental.pallas import tpu as pltpu


# ----------------------------- Pallas kernels ------------------------------ #

def _conv_relu_pool_kernel(p_ref, w_ref, b_ref, o_ref):
    """Fused valid-conv (as matmul) + bias + ReLU + 2x2/stride-2 max-pool.

    p_ref: (4, TR, KKC) bf16  pooling-phase-major im2col patches
    w_ref: (KKC, OC)    bf16  flattened (kh, kw, ic) x oc conv weight
    b_ref: (1, OC)      f32
    o_ref: (TR, OC)     bf16  pooled activations; rows ordered (img, oh, ow)
    """
    w = w_ref[...]
    # Max over the 4 pooling phases; bias-add and ReLU commute with max, so
    # pool(relu(conv + b)) == relu(max_phase(conv) + b).
    m = jnp.dot(p_ref[0], w, preferred_element_type=jnp.float32)
    for ph in range(1, 4):
        m = jnp.maximum(
            m, jnp.dot(p_ref[ph], w, preferred_element_type=jnp.float32))
    o_ref[...] = jnp.maximum(m + b_ref[...], 0.0).astype(o_ref.dtype)


def _fc3_fused_kernel(x_ref, w1_ref, b1_ref, w2_ref, b2_ref, w3_ref, b3_ref,
                      o_ref):
    """FC1+ReLU -> FC2+ReLU -> FC3, all lane-padded to 128; intermediates
    never leave VMEM/vregs (single kernel launch for the whole FC tail)."""
    h = jnp.dot(x_ref[...], w1_ref[...], preferred_element_type=jnp.float32)
    h = jnp.maximum(h + b1_ref[...], 0.0)
    h = jnp.dot(h.astype(jnp.bfloat16), w2_ref[...],
                preferred_element_type=jnp.float32)
    h = jnp.maximum(h + b2_ref[...], 0.0)
    o = jnp.dot(h.astype(jnp.bfloat16), w3_ref[...],
                preferred_element_type=jnp.float32)
    o_ref[...] = (o + b3_ref[...]).astype(o_ref.dtype)


# --------------------------- pallas_call wrappers --------------------------- #

def conv_relu_pool(patches, w_mat, bias, *, tile_rows):
    """patches: (4, R, KKC) bf16 -> pooled activations (R, OC) bf16."""
    _, R, KKC = patches.shape
    OC = w_mat.shape[1]
    assert R % tile_rows == 0
    return pl.pallas_call(
        _conv_relu_pool_kernel,
        out_shape=jax.ShapeDtypeStruct((R, OC), jnp.bfloat16),
        grid_spec=pltpu.PrefetchScalarGridSpec(
            num_scalar_prefetch=0,
            grid=(R // tile_rows,),
            in_specs=[
                pl.BlockSpec((4, tile_rows, KKC), lambda i: (0, i, 0)),
                pl.BlockSpec((KKC, OC), lambda i: (0, 0)),
                pl.BlockSpec((1, OC), lambda i: (0, 0)),
            ],
            out_specs=pl.BlockSpec((tile_rows, OC), lambda i: (i, 0)),
        ),
        compiler_params=pltpu.CompilerParams(
            dimension_semantics=("parallel",)),
    )(patches, w_mat, bias)


def fc3_fused(x, w1, b1, w2, b2, w3, b3, *, tile_m):
    B, K = x.shape
    N = w3.shape[1]
    assert B % tile_m == 0
    return pl.pallas_call(
        _fc3_fused_kernel,
        out_shape=jax.ShapeDtypeStruct((B, N), jnp.float32),
        grid_spec=pltpu.PrefetchScalarGridSpec(
            num_scalar_prefetch=0,
            grid=(B // tile_m,),
            in_specs=[
                pl.BlockSpec((tile_m, K), lambda i: (i, 0)),
                pl.BlockSpec(w1.shape, lambda i: (0, 0)),
                pl.BlockSpec(b1.shape, lambda i: (0, 0)),
                pl.BlockSpec(w2.shape, lambda i: (0, 0)),
                pl.BlockSpec(b2.shape, lambda i: (0, 0)),
                pl.BlockSpec(w3.shape, lambda i: (0, 0)),
                pl.BlockSpec(b3.shape, lambda i: (0, 0)),
            ],
            out_specs=pl.BlockSpec((tile_m, N), lambda i: (i, 0)),
        ),
        compiler_params=pltpu.CompilerParams(
            dimension_semantics=("parallel",)),
    )(x, w1, b1, w2, b2, w3, b3)


# ------------------------------- JAX glue ---------------------------------- #

def _round_up(n, m):
    return ((n + m - 1) // m) * m


def _pick_tile_b(B, cap=8):
    t = 1
    for c in range(2, cap + 1):
        if B % c == 0:
            t = c
    return t


def _pool_parity_patches(x_nhwc, K, kkc_pad):
    """im2col arranged so the 4 pooling phases form a leading axis and all
    batch rows are merged into one matmul M-dim.

    x_nhwc: (B, H, W, C) -> (4, B*np_pad, kkc_pad) bf16
    Patch feature ordering is (kh, kw, c), matching the flattened weight.
    Rows per image are padded NP -> np_pad (multiple of 16) with zeros.
    """
    # TODO(synk): patch extraction (im2col) still materializes in HBM via XLA;
    # moving it fully in-kernel needs window-gather/relayout beyond what
    # lowers robustly today.
    x_nhwc = x_nhwc.astype(jnp.bfloat16)
    B, H, W, C = x_nhwc.shape
    OH, OW = H - K + 1, W - K + 1
    P, Q = OH // 2, OW // 2
    NP = P * Q
    np_pad = _round_up(NP, 16)
    phases = []
    for p in (0, 1):
        for q in (0, 1):
            taps = []
            for kh in range(K):
                for kw in range(K):
                    s, t = p + kh, q + kw
                    taps.append(
                        x_nhwc[:, s:s + 2 * P - 1:2, t:t + 2 * Q - 1:2, :])
            blk = jnp.stack(taps, axis=3)                # (B, P, Q, K*K, C)
            phases.append(blk.reshape(B, NP, K * K * C))
    patches = jnp.stack(phases, axis=0)                  # (4, B, NP, KKC)
    patches = jnp.pad(
        patches,
        ((0, 0), (0, 0), (0, np_pad - NP), (0, kkc_pad - K * K * C)))
    return patches.reshape(4, B * np_pad, kkc_pad), (P, Q, np_pad)


def prepare_params(p):
    """One-time weight repack: transpose / permute / pad / cast so the
    per-step hot path contains no layout glue."""

    def conv_pack(w_oihw, b, ic_pad, oc_pad):
        OC, IC, K, _ = w_oihw.shape
        w = jnp.transpose(w_oihw, (2, 3, 1, 0))          # (K, K, IC, OC)
        w = jnp.pad(w, ((0, 0), (0, 0), (0, ic_pad - IC), (0, oc_pad - OC)))
        w = w.reshape(K * K * ic_pad, oc_pad)
        kkc_pad = _round_up(K * K * ic_pad, 16)
        w = jnp.pad(w, ((0, kkc_pad - K * K * ic_pad), (0, 0)))
        bp = jnp.pad(b, (0, oc_pad - OC)).reshape(1, oc_pad)
        return w.astype(jnp.bfloat16), bp.astype(jnp.float32)

    def fc_pack(w_nk, b, k_pad, n_pad):
        N, Kd = w_nk.shape
        w = jnp.transpose(w_nk)                          # (K, N)
        w = jnp.pad(w, ((0, k_pad - Kd), (0, n_pad - N)))
        bp = jnp.pad(b, (0, n_pad - N)).reshape(1, n_pad)
        return w.astype(jnp.bfloat16), bp.astype(jnp.float32)

    w1, b1 = conv_pack(p["w1"], p["b1"], ic_pad=3, oc_pad=8)    # (80, 8)
    w2, b2 = conv_pack(p["w2"], p["b2"], ic_pad=8, oc_pad=16)   # (208, 16)

    # FC1: torch flatten of NCHW is (c, h, w)-ordered; permute the weight's
    # K-dim once to (h, w, c) so the runtime flatten is a plain reshape of
    # the NHWC conv2 output (no per-step transpose).
    C2, H2, W2 = 16, 5, 5
    wfc1_hwc = (p["wfc1"].reshape(120, C2, H2, W2)
                .transpose(0, 2, 3, 1).reshape(120, C2 * H2 * W2))
    wf1, bf1 = fc_pack(wfc1_hwc, p["bfc1"], k_pad=400, n_pad=128)
    wf2, bf2 = fc_pack(p["wfc2"], p["bfc2"], k_pad=128, n_pad=128)
    wf3, bf3 = fc_pack(p["wfc3"], p["bfc3"], k_pad=128, n_pad=128)
    return dict(w1=w1, b1=b1, w2=w2, b2=b2,
                wf1=wf1, bf1=bf1, wf2=wf2, bf2=bf2, wf3=wf3, bf3=bf3)


def convnet_forward(x_nchw, pp):
    """Forward pass matching the PyTorch ConvNet (input: NCHW, B x 3 x 32 x 32)."""
    x = jnp.transpose(x_nchw, (0, 2, 3, 1)).astype(jnp.float32)   # NHWC
    B = x.shape[0]
    tile_b = _pick_tile_b(B)

    # conv1 + bias + ReLU + 2x2 max-pool -> (B, 14, 14, 8) (ch 6,7 are zero pad)
    kkc1, oc1 = pp["w1"].shape
    pt, (P1, Q1, npad1) = _pool_parity_patches(x, 5, kkc1)
    a = conv_relu_pool(pt, pp["w1"], pp["b1"], tile_rows=tile_b * npad1)
    a = a.reshape(B, npad1, oc1)[:, :P1 * Q1].reshape(B, P1, Q1, oc1)

    # conv2 + bias + ReLU + 2x2 max-pool -> (B, 5, 5, 16)
    kkc2, oc2 = pp["w2"].shape
    pt, (P2, Q2, npad2) = _pool_parity_patches(a, 5, kkc2)
    a = conv_relu_pool(pt, pp["w2"], pp["b2"], tile_rows=tile_b * npad2)
    # (h, w, c)-ordered flatten; FC1 weight rows were permuted to match.
    feats = a.reshape(B, npad2, oc2)[:, :P2 * Q2].reshape(B, P2 * Q2 * oc2)

    # fused FC1+ReLU -> FC2+ReLU -> FC3 (lane-padded to 128 inside the kernel)
    tile_m = B if (B < 128 or B % 128 != 0) else 128
    out = fc3_fused(feats, pp["wf1"], pp["bf1"], pp["wf2"], pp["bf2"],
                    pp["wf3"], pp["bf3"], tile_m=tile_m)
    return out[:, :10]


def init_params(key):
    """Deterministic PyTorch-default-style init (uniform +-1/sqrt(fan_in))."""
    ks = jax.random.split(key, 10)

    def u(k, shape, fan_in):
        bound = 1.0 / (fan_in ** 0.5)
        return jax.random.uniform(k, shape, jnp.float32, -bound, bound)

    return {
        "w1": u(ks[0], (6, 3, 5, 5), 3 * 5 * 5),
        "b1": u(ks[1], (6,), 3 * 5 * 5),
        "w2": u(ks[2], (16, 6, 5, 5), 6 * 5 * 5),
        "b2": u(ks[3], (16,), 6 * 5 * 5),
        "wfc1": u(ks[4], (120, 400), 400),
        "bfc1": u(ks[5], (120,), 400),
        "wfc2": u(ks[6], (84, 120), 120),
        "bfc2": u(ks[7], (84,), 120),
        "wfc3": u(ks[8], (10, 84), 84),
        "bfc3": u(ks[9], (10,), 84),
    }


if __name__ == "__main__":
    key = jax.random.PRNGKey(0)
    k_x, k_p = jax.random.split(key)
    # Input must be (B, 3, 32, 32): the module's FC1 expects 16*5*5 features.
    x = jax.random.normal(k_x, (2, 3, 32, 32), dtype=jnp.float32)
    params = init_params(k_p)
    prepared = prepare_params(params)   # one-time weight repack (not in hot path)

    fwd = jax.jit(convnet_forward)
    out = jax.block_until_ready(fwd(x, prepared))
    assert out.shape == (2, 10), out.shape
    assert bool(jnp.all(jnp.isfinite(out)))
    print("KERNEL_OK")
</pallas_src>

<mosaic_0001>
module attributes {stable_mosaic.version = 11 : i64} {
  func.func @_conv_relu_pool_kernel(%arg0: i32, %arg1: memref<4x416x80xbf16, #tpu.memory_space<vmem>>, %arg2: memref<80x8xbf16, #tpu.memory_space<vmem>>, %arg3: memref<1x8xf32, #tpu.memory_space<vmem>>, %arg4: memref<416x8xbf16, #tpu.memory_space<vmem>>) attributes {dimension_semantics = [#tpu.dimension_semantics<parallel>], iteration_bounds = array<i64: 1>, scalar_prefetch = 0 : i64, scratch_operands = 0 : i64, tpu.core_type = #tpu.core_type<tc>, window_params = [{transform_indices = @transform_0, window_bounds = array<i64: 4, 416, 80>}, {pipeline_mode = #tpu.pipeline_mode<synchronous>, transform_indices = @transform_1, window_bounds = array<i64: 80, 8>}, {pipeline_mode = #tpu.pipeline_mode<synchronous>, transform_indices = @transform_2, window_bounds = array<i64: 1, 8>}, {transform_indices = @transform_3, window_bounds = array<i64: 416, 8>}]} {
    %c0 = arith.constant 0 : index
    %c0_0 = arith.constant 0 : index
    %0 = vector.load %arg2[%c0, %c0_0] : memref<80x8xbf16, #tpu.memory_space<vmem>>, vector<80x8xbf16>
    %c0_1 = arith.constant 0 : index
    %c0_2 = arith.constant 0 : index
    %c0_3 = arith.constant 0 : index
    %1 = vector.load %arg1[%c0_1, %c0_2, %c0_3] : memref<4x416x80xbf16, #tpu.memory_space<vmem>>, vector<1x416x80xbf16>
    %2 = vector.shape_cast %1 : vector<1x416x80xbf16> to vector<416x80xbf16>
    %cst = arith.constant dense<0.000000e+00> : vector<416x8xf32>
    %3 = tpu.matmul %2, %0, %cst {dimension_numbers = #tpu.dot_dimension_numbers<[1], [0], [0], [1], [0, 0, 1, 1], [], []>} : vector<416x80xbf16>, vector<80x8xbf16>, vector<416x8xf32> -> vector<416x8xf32>
    %c1 = arith.constant 1 : index
    %c0_4 = arith.constant 0 : index
    %c0_5 = arith.constant 0 : index
    %4 = vector.load %arg1[%c1, %c0_4, %c0_5] : memref<4x416x80xbf16, #tpu.memory_space<vmem>>, vector<1x416x80xbf16>
    %5 = vector.shape_cast %4 : vector<1x416x80xbf16> to vector<416x80xbf16>
    %cst_6 = arith.constant dense<0.000000e+00> : vector<416x8xf32>
    %6 = tpu.matmul %5, %0, %cst_6 {dimension_numbers = #tpu.dot_dimension_numbers<[1], [0], [0], [1], [0, 0, 1, 1], [], []>} : vector<416x80xbf16>, vector<80x8xbf16>, vector<416x8xf32> -> vector<416x8xf32>
    %7 = arith.maximumf %3, %6 : vector<416x8xf32>
    %c2 = arith.constant 2 : index
    %c0_7 = arith.constant 0 : index
    %c0_8 = arith.constant 0 : index
    %8 = vector.load %arg1[%c2, %c0_7, %c0_8] : memref<4x416x80xbf16, #tpu.memory_space<vmem>>, vector<1x416x80xbf16>
    %9 = vector.shape_cast %8 : vector<1x416x80xbf16> to vector<416x80xbf16>
    %cst_9 = arith.constant dense<0.000000e+00> : vector<416x8xf32>
    %10 = tpu.matmul %9, %0, %cst_9 {dimension_numbers = #tpu.dot_dimension_numbers<[1], [0], [0], [1], [0, 0, 1, 1], [], []>} : vector<416x80xbf16>, vector<80x8xbf16>, vector<416x8xf32> -> vector<416x8xf32>
    %11 = arith.maximumf %7, %10 : vector<416x8xf32>
    %c3 = arith.constant 3 : index
    %c0_10 = arith.constant 0 : index
    %c0_11 = arith.constant 0 : index
    %12 = vector.load %arg1[%c3, %c0_10, %c0_11] : memref<4x416x80xbf16, #tpu.memory_space<vmem>>, vector<1x416x80xbf16>
    %13 = vector.shape_cast %12 : vector<1x416x80xbf16> to vector<416x80xbf16>
    %cst_12 = arith.constant dense<0.000000e+00> : vector<416x8xf32>
    %14 = tpu.matmul %13, %0, %cst_12 {dimension_numbers = #tpu.dot_dimension_numbers<[1], [0], [0], [1], [0, 0, 1, 1], [], []>} : vector<416x80xbf16>, vector<80x8xbf16>, vector<416x8xf32> -> vector<416x8xf32>
    %15 = arith.maximumf %11, %14 : vector<416x8xf32>
    %c0_13 = arith.constant 0 : index
    %c0_14 = arith.constant 0 : index
    %16 = vector.load %arg3[%c0_13, %c0_14] : memref<1x8xf32, #tpu.memory_space<vmem>>, vector<1x8xf32>
    %17 = vector.broadcast %16 : vector<1x8xf32> to vector<416x8xf32>
    %18 = arith.addf %15, %17 : vector<416x8xf32>
    %cst_15 = arith.constant 0.000000e+00 : f32
    %19 = vector.broadcast %cst_15 : f32 to vector<416x8xf32>
    %20 = arith.maximumf %18, %19 : vector<416x8xf32>
    %21 = arith.truncf %20 : vector<416x8xf32> to vector<416x8xbf16>
    %c0_16 = arith.constant 0 : index
    %c0_17 = arith.constant 0 : index
    %22 = vector.load %arg4[%c0_16, %c0_17] : memref<416x8xbf16, #tpu.memory_space<vmem>>, vector<416x8xbf16>
    tpu.vector_store %arg4[%c0_16, %c0_17], %21 {strides = array<i32>} : memref<416x8xbf16, #tpu.memory_space<vmem>>, vector<416x8xbf16>,
    return
  }
  func.func @transform_0(%arg0: i32) -> (i32, i32, i32) {
    %c0_i32 = arith.constant 0 : i32
    %c0_i32_0 = arith.constant 0 : i32
    %c0_i32_1 = arith.constant 0 : i32
    return %c0_i32, %arg0, %c0_i32_0 : i32, i32, i32
  }
  func.func @transform_1(%arg0: i32) -> (i32, i32) {
    %c0_i32 = arith.constant 0 : i32
    %c0_i32_0 = arith.constant 0 : i32
    %c0_i32_1 = arith.constant 0 : i32
    return %c0_i32, %c0_i32_0 : i32, i32
  }
  func.func @transform_2(%arg0: i32) -> (i32, i32) {
    %c0_i32 = arith.constant 0 : i32
    %c0_i32_0 = arith.constant 0 : i32
    %c0_i32_1 = arith.constant 0 : i32
    return %c0_i32, %c0_i32_0 : i32, i32
  }
  func.func @transform_3(%arg0: i32) -> (i32, i32) {
    %c0_i32 = arith.constant 0 : i32
    %c0_i32_0 = arith.constant 0 : i32
    return %arg0, %c0_i32 : i32, i32
  }
}

module attributes {stable_mosaic.version = 11 : i64} {
  func.func @_conv_relu_pool_kernel(%arg0: i32, %arg1: memref<4x64x208xbf16, #tpu.memory_space<vmem>>, %arg2: memref<208x16xbf16, #tpu.memory_space<vmem>>, %arg3: memref<1x16xf32, #tpu.memory_space<vmem>>, %arg4: memref<64x16xbf16, #tpu.memory_space<vmem>>) attributes {dimension_semantics = [#tpu.dimension_semantics<parallel>], iteration_bounds = array<i64: 1>, scalar_prefetch = 0 : i64, scratch_operands = 0 : i64, tpu.core_type = #tpu.core_type<tc>, window_params = [{transform_indices = @transform_0, window_bounds = array<i64: 4, 64, 208>}, {pipeline_mode = #tpu.pipeline_mode<synchronous>, transform_indices = @transform_1, window_bounds = array<i64: 208, 16>}, {pipeline_mode = #tpu.pipeline_mode<synchronous>, transform_indices = @transform_2, window_bounds = array<i64: 1, 16>}, {transform_indices = @transform_3, window_bounds = array<i64: 64, 16>}]} {
    %c0 = arith.constant 0 : index
    %c0_0 = arith.constant 0 : index
    %0 = vector.load %arg2[%c0, %c0_0] : memref<208x16xbf16, #tpu.memory_space<vmem>>, vector<208x16xbf16>
    %c0_1 = arith.constant 0 : index
    %c0_2 = arith.constant 0 : index
    %c0_3 = arith.constant 0 : index
    %1 = vector.load %arg1[%c0_1, %c0_2, %c0_3] : memref<4x64x208xbf16, #tpu.memory_space<vmem>>, vector<1x64x208xbf16>
    %2 = vector.shape_cast %1 : vector<1x64x208xbf16> to vector<64x208xbf16>
    %cst = arith.constant dense<0.000000e+00> : vector<64x16xf32>
    %3 = tpu.matmul %2, %0, %cst {dimension_numbers = #tpu.dot_dimension_numbers<[1], [0], [0], [1], [0, 0, 1, 1], [], []>} : vector<64x208xbf16>, vector<208x16xbf16>, vector<64x16xf32> -> vector<64x16xf32>
    %c1 = arith.constant 1 : index
    %c0_4 = arith.constant 0 : index
    %c0_5 = arith.constant 0 : index
    %4 = vector.load %arg1[%c1, %c0_4, %c0_5] : memref<4x64x208xbf16, #tpu.memory_space<vmem>>, vector<1x64x208xbf16>
    %5 = vector.shape_cast %4 : vector<1x64x208xbf16> to vector<64x208xbf16>
    %cst_6 = arith.constant dense<0.000000e+00> : vector<64x16xf32>
    %6 = tpu.matmul %5, %0, %cst_6 {dimension_numbers = #tpu.dot_dimension_numbers<[1], [0], [0], [1], [0, 0, 1, 1], [], []>} : vector<64x208xbf16>, vector<208x16xbf16>, vector<64x16xf32> -> vector<64x16xf32>
    %7 = arith.maximumf %3, %6 : vector<64x16xf32>
    %c2 = arith.constant 2 : index
    %c0_7 = arith.constant 0 : index
    %c0_8 = arith.constant 0 : index
    %8 = vector.load %arg1[%c2, %c0_7, %c0_8] : memref<4x64x208xbf16, #tpu.memory_space<vmem>>, vector<1x64x208xbf16>
    %9 = vector.shape_cast %8 : vector<1x64x208xbf16> to vector<64x208xbf16>
    %cst_9 = arith.constant dense<0.000000e+00> : vector<64x16xf32>
    %10 = tpu.matmul %9, %0, %cst_9 {dimension_numbers = #tpu.dot_dimension_numbers<[1], [0], [0], [1], [0, 0, 1, 1], [], []>} : vector<64x208xbf16>, vector<208x16xbf16>, vector<64x16xf32> -> vector<64x16xf32>
    %11 = arith.maximumf %7, %10 : vector<64x16xf32>
    %c3 = arith.constant 3 : index
    %c0_10 = arith.constant 0 : index
    %c0_11 = arith.constant 0 : index
    %12 = vector.load %arg1[%c3, %c0_10, %c0_11] : memref<4x64x208xbf16, #tpu.memory_space<vmem>>, vector<1x64x208xbf16>
    %13 = vector.shape_cast %12 : vector<1x64x208xbf16> to vector<64x208xbf16>
    %cst_12 = arith.constant dense<0.000000e+00> : vector<64x16xf32>
    %14 = tpu.matmul %13, %0, %cst_12 {dimension_numbers = #tpu.dot_dimension_numbers<[1], [0], [0], [1], [0, 0, 1, 1], [], []>} : vector<64x208xbf16>, vector<208x16xbf16>, vector<64x16xf32> -> vector<64x16xf32>
    %15 = arith.maximumf %11, %14 : vector<64x16xf32>
    %c0_13 = arith.constant 0 : index
    %c0_14 = arith.constant 0 : index
    %16 = vector.load %arg3[%c0_13, %c0_14] : memref<1x16xf32, #tpu.memory_space<vmem>>, vector<1x16xf32>
    %17 = vector.broadcast %16 : vector<1x16xf32> to vector<64x16xf32>
    %18 = arith.addf %15, %17 : vector<64x16xf32>
    %cst_15 = arith.constant 0.000000e+00 : f32
    %19 = vector.broadcast %cst_15 : f32 to vector<64x16xf32>
    %20 = arith.maximumf %18, %19 : vector<64x16xf32>
    %21 = arith.truncf %20 : vector<64x16xf32> to vector<64x16xbf16>
    %c0_16 = arith.constant 0 : index
    %c0_17 = arith.constant 0 : index
    %22 = vector.load %arg4[%c0_16, %c0_17] : memref<64x16xbf16, #tpu.memory_space<vmem>>, vector<64x16xbf16>
    tpu.vector_store %arg4[%c0_16, %c0_17], %21 {strides = array<i32>} : memref<64x16xbf16, #tpu.memory_space<vmem>>, vector<64x16xbf16>,
    return
  }
  func.func @transform_0(%arg0: i32) -> (i32, i32, i32) {
    %c0_i32 = arith.constant 0 : i32
    %c0_i32_0 = arith.constant 0 : i32
    %c0_i32_1 = arith.constant 0 : i32
    return %c0_i32, %arg0, %c0_i32_0 : i32, i32, i32
  }
  func.func @transform_1(%arg0: i32) -> (i32, i32) {
    %c0_i32 = arith.constant 0 : i32
    %c0_i32_0 = arith.constant 0 : i32
    %c0_i32_1 = arith.constant 0 : i32
    return %c0_i32, %c0_i32_0 : i32, i32
  }
  func.func @transform_2(%arg0: i32) -> (i32, i32) {
    %c0_i32 = arith.constant 0 : i32
    %c0_i32_0 = arith.constant 0 : i32
    %c0_i32_1 = arith.constant 0 : i32
    return %c0_i32, %c0_i32_0 : i32, i32
  }
  func.func @transform_3(%arg0: i32) -> (i32, i32) {
    %c0_i32 = arith.constant 0 : i32
    %c0_i32_0 = arith.constant 0 : i32
    return %arg0, %c0_i32 : i32, i32
  }
}

module attributes {stable_mosaic.version = 11 : i64} {
  func.func @_fc3_fused_kernel(%arg0: i32, %arg1: memref<2x400xbf16, #tpu.memory_space<vmem>>, %arg2: memref<400x128xbf16, #tpu.memory_space<vmem>>, %arg3: memref<1x128xf32, #tpu.memory_space<vmem>>, %arg4: memref<128x128xbf16, #tpu.memory_space<vmem>>, %arg5: memref<1x128xf32, #tpu.memory_space<vmem>>, %arg6: memref<128x128xbf16, #tpu.memory_space<vmem>>, %arg7: memref<1x128xf32, #tpu.memory_space<vmem>>, %arg8: memref<2x128xf32, #tpu.memory_space<vmem>>) attributes {dimension_semantics = [#tpu.dimension_semantics<parallel>], iteration_bounds = array<i64: 1>, scalar_prefetch = 0 : i64, scratch_operands = 0 : i64, tpu.core_type = #tpu.core_type<tc>, window_params = [{transform_indices = @transform_0, window_bounds = array<i64: 2, 400>}, {pipeline_mode = #tpu.pipeline_mode<synchronous>, transform_indices = @transform_1, window_bounds = array<i64: 400, 128>}, {pipeline_mode = #tpu.pipeline_mode<synchronous>, transform_indices = @transform_2, window_bounds = array<i64: 1, 128>}, {pipeline_mode = #tpu.pipeline_mode<synchronous>, transform_indices = @transform_3, window_bounds = array<i64: 128, 128>}, {pipeline_mode = #tpu.pipeline_mode<synchronous>, transform_indices = @transform_4, window_bounds = array<i64: 1, 128>}, {pipeline_mode = #tpu.pipeline_mode<synchronous>, transform_indices = @transform_5, window_bounds = array<i64: 128, 128>}, {pipeline_mode = #tpu.pipeline_mode<synchronous>, transform_indices = @transform_6, window_bounds = array<i64: 1, 128>}, {transform_indices = @transform_7, window_bounds = array<i64: 2, 128>}]} {
    %c0 = arith.constant 0 : index
    %c0_0 = arith.constant 0 : index
    %0 = vector.load %arg1[%c0, %c0_0] : memref<2x400xbf16, #tpu.memory_space<vmem>>, vector<2x400xbf16>
    %c0_1 = arith.constant 0 : index
    %c0_2 = arith.constant 0 : index
    %1 = vector.load %arg2[%c0_1, %c0_2] : memref<400x128xbf16, #tpu.memory_space<vmem>>, vector<400x128xbf16>
    %cst = arith.constant dense<0.000000e+00> : vector<2x128xf32>
    %2 = tpu.matmul %0, %1, %cst {dimension_numbers = #tpu.dot_dimension_numbers<[1], [0], [0], [1], [0, 0, 1, 1], [], []>} : vector<2x400xbf16>, vector<400x128xbf16>, vector<2x128xf32> -> vector<2x128xf32>
    %c0_3 = arith.constant 0 : index
    %c0_4 = arith.constant 0 : index
    %3 = vector.load %arg3[%c0_3, %c0_4] : memref<1x128xf32, #tpu.memory_space<vmem>>, vector<1x128xf32>
    %4 = vector.broadcast %3 : vector<1x128xf32> to vector<2x128xf32>
    %5 = arith.addf %2, %4 : vector<2x128xf32>
    %cst_5 = arith.constant 0.000000e+00 : f32
    %6 = vector.broadcast %cst_5 : f32 to vector<2x128xf32>
    %7 = arith.maximumf %5, %6 : vector<2x128xf32>
    %8 = arith.truncf %7 : vector<2x128xf32> to vector<2x128xbf16>
    %c0_6 = arith.constant 0 : index
    %c0_7 = arith.constant 0 : index
    %9 = vector.load %arg4[%c0_6, %c0_7] : memref<128x128xbf16, #tpu.memory_space<vmem>>, vector<128x128xbf16>
    %cst_8 = arith.constant dense<0.000000e+00> : vector<2x128xf32>
    %10 = tpu.matmul %8, %9, %cst_8 {dimension_numbers = #tpu.dot_dimension_numbers<[1], [0], [0], [1], [0, 0, 1, 1], [], []>} : vector<2x128xbf16>, vector<128x128xbf16>, vector<2x128xf32> -> vector<2x128xf32>
    %c0_9 = arith.constant 0 : index
    %c0_10 = arith.constant 0 : index
    %11 = vector.load %arg5[%c0_9, %c0_10] : memref<1x128xf32, #tpu.memory_space<vmem>>, vector<1x128xf32>
    %12 = vector.broadcast %11 : vector<1x128xf32> to vector<2x128xf32>
    %13 = arith.addf %10, %12 : vector<2x128xf32>
    %cst_11 = arith.constant 0.000000e+00 : f32
    %14 = vector.broadcast %cst_11 : f32 to vector<2x128xf32>
    %15 = arith.maximumf %13, %14 : vector<2x128xf32>
    %16 = arith.truncf %15 : vector<2x128xf32> to vector<2x128xbf16>
    %c0_12 = arith.constant 0 : index
    %c0_13 = arith.constant 0 : index
    %17 = vector.load %arg6[%c0_12, %c0_13] : memref<128x128xbf16, #tpu.memory_space<vmem>>, vector<128x128xbf16>
    %cst_14 = arith.constant dense<0.000000e+00> : vector<2x128xf32>
    %18 = tpu.matmul %16, %17, %cst_14 {dimension_numbers = #tpu.dot_dimension_numbers<[1], [0], [0], [1], [0, 0, 1, 1], [], []>} : vector<2x128xbf16>, vector<128x128xbf16>, vector<2x128xf32> -> vector<2x128xf32>
    %c0_15 = arith.constant 0 : index
    %c0_16 = arith.constant 0 : index
    %19 = vector.load %arg7[%c0_15, %c0_16] : memref<1x128xf32, #tpu.memory_space<vmem>>, vector<1x128xf32>
    %20 = vector.broadcast %19 : vector<1x128xf32> to vector<2x128xf32>
    %21 = arith.addf %18, %20 : vector<2x128xf32>
    %c0_17 = arith.constant 0 : index
    %c0_18 = arith.constant 0 : index
    %22 = vector.load %arg8[%c0_17, %c0_18] : memref<2x128xf32, #tpu.memory_space<vmem>>, vector<2x128xf32>
    tpu.vector_store %arg8[%c0_17, %c0_18], %21 {strides = array<i32>} : memref<2x128xf32, #tpu.memory_space<vmem>>, vector<2x128xf32>,
    return
  }
  func.func @transform_0(%arg0: i32) -> (i32, i32) {
    %c0_i32 = arith.constant 0 : i32
    %c0_i32_0 = arith.constant 0 : i32
    return %arg0, %c0_i32 : i32, i32
  }
  func.func @transform_1(%arg0: i32) -> (i32, i32) {
    %c0_i32 = arith.constant 0 : i32
    %c0_i32_0 = arith.constant 0 : i32
    %c0_i32_1 = arith.constant 0 : i32
    return %c0_i32, %c0_i32_0 : i32, i32
  }
  func.func @transform_2(%arg0: i32) -> (i32, i32) {
    %c0_i32 = arith.constant 0 : i32
    %c0_i32_0 = arith.constant 0 : i32
    %c0_i32_1 = arith.constant 0 : i32
    return %c0_i32, %c0_i32_0 : i32, i32
  }
  func.func @transform_3(%arg0: i32) -> (i32, i32) {
    %c0_i32 = arith.constant 0 : i32
    %c0_i32_0 = arith.constant 0 : i32
    %c0_i32_1 = arith.constant 0 : i32
    return %c0_i32, %c0_i32_0 : i32, i32
  }
  func.func @transform_4(%arg0: i32) -> (i32, i32) {
    %c0_i32 = arith.constant 0 : i32
    %c0_i32_0 = arith.constant 0 : i32
    %c0_i32_1 = arith.constant 0 : i32
    return %c0_i32, %c0_i32_0 : i32, i32
  }
  func.func @transform_5(%arg0: i32) -> (i32, i32) {
    %c0_i32 = arith.constant 0 : i32
    %c0_i32_0 = arith.constant 0 : i32
    %c0_i32_1 = arith.constant 0 : i32
    return %c0_i32, %c0_i32_0 : i32, i32
  }
  func.func @transform_6(%arg0: i32) -> (i32, i32) {
    %c0_i32 = arith.constant 0 : i32
    %c0_i32_0 = arith.constant 0 : i32
    %c0_i32_1 = arith.constant 0 : i32
    return %c0_i32, %c0_i32_0 : i32, i32
  }
  func.func @transform_7(%arg0: i32) -> (i32, i32) {
    %c0_i32 = arith.constant 0 : i32
    %c0_i32_0 = arith.constant 0 : i32
    return %arg0, %c0_i32 : i32, i32
  }
}

</mosaic_0001>

<llo_original>
// kernel: convnet_forward.3
$region0: #{convnet_forward.3}
  #allocation0 [shape = 'u32[]', space=smem, size = 0x4, offset = 0x4, fixed_abs, tag = 'smem constant byte address 0x4 - core index']
  #allocation1 [shape = 'u32[144,128]{1,0:T(1,128)}', space=vmem, size = 0x12000, scoped, tag = 'internal scratch']
  %s0 = inlined_call_operand.vmem [shape: bf16[4,416,80], index: 0, kind: input, shape index: {}]
  %s1 = inlined_call_operand.vmem [shape: bf16[80,8], index: 1, kind: input, shape index: {}]
  %s2 = inlined_call_operand.vmem [shape: f32[1,8], index: 2, kind: input, shape index: {}]
  %s3 = inlined_call_operand.vmem [shape: bf16[416,8], index: 3, kind: output, shape index: {}]
  %s4 = sld [smem:[#allocation0]]
  $region22: #{convnet_forward.3} parent=0
    _
  %s6 = ssub.s32 1, %s4
  %s7 = scalar_select 0, %s6, %s4
  // Predicated region
  $region2: #{convnet_forward.3} parent=0 // pred_check
    _
  $region3: #{convnet_forward.3} parent=0 // pred_check_branch
    %9 = sbr.rel (0) target = $region5
  $region4: #{convnet_forward.3} parent=0 // pred_region
    _
  $region5: #{convnet_forward.3} parent=0 // pred_fallthru
    _
  // Predicated region
  $region6: #{convnet_forward.3} parent=0 // pred_check
    _
  $region7: #{convnet_forward.3} parent=0 // pred_check_branch
    %11 = sbr.rel (0) target = $region9
  $region8: #{convnet_forward.3} parent=0 // pred_region
    _
  $region9: #{convnet_forward.3} parent=0 // pred_fallthru
    _
  // Predicated region
  $region10: #{convnet_forward.3} parent=0 // pred_check
    _
  $region11: #{convnet_forward.3} parent=0 // pred_check_branch
    %13 = sbr.rel (0) target = $region13
  $region12: #{convnet_forward.3} parent=0 // pred_region
    _
  $region13: #{convnet_forward.3} parent=0 // pred_fallthru
    _
  %v15 = vld [vmem:[%s1] sm:$0xf]
  %v16 = vld [vmem:[%s1 + $0x4] sm:$0xf]
  %v17 = vld [vmem:[%s1 + $0x8] sm:$0xf]
  %v18 = vld [vmem:[%s1 + $0xc] sm:$0xf]
  %v19 = vld [vmem:[%s1 + $0x10] sm:$0xf]
  %v20 = vld [vmem:[%s1 + $0x14] sm:$0xf]
  %v21 = vld [vmem:[%s1 + $0x18] sm:$0xf]
  %v22 = vld [vmem:[%s1 + $0x1c] sm:$0xf]
  %v23 = vld [vmem:[%s1 + $0x20] sm:$0xf]
  %v24 = vld [vmem:[%s1 + $0x24] sm:$0xf]
  %v25 = vld [vmem:[%s0] sm:$0xf]
  %v26 = vld [vmem:[%s0 + $0x4] sm:$0xf]
  %v27 = vld [vmem:[%s0 + $0x8] sm:$0xf]
  %v28 = vld [vmem:[%s0 + $0xc] sm:$0xf]
  %v29 = vld [vmem:[%s0 + $0x10] sm:$0xf]
  %v30 = vld [vmem:[%s0 + $0x14] sm:$0xf]
  %v31 = vld [vmem:[%s0 + $0x18] sm:$0xf]
  %v32 = vld [vmem:[%s0 + $0x1c] sm:$0xf]
  %v33 = vld [vmem:[%s0 + $0x20] sm:$0xf]
  %v34 = vld [vmem:[%s0 + $0x24] sm:$0xf]
  %v35 = vld [vmem:[%s0 + $0x28] sm:$0xf]
  %v36 = vld [vmem:[%s0 + $0x2c] sm:$0xf]
  %v37 = vld [vmem:[%s0 + $0x30] sm:$0xf]
  %v38 = vld [vmem:[%s0 + $0x34] sm:$0xf]
  %v39 = vld [vmem:[%s0 + $0x38] sm:$0xf]
  %v40 = vld [vmem:[%s0 + $0x3c] sm:$0xf]
  %v41 = vld [vmem:[%s0 + $0x40] sm:$0xf]
  %v42 = vld [vmem:[%s0 + $0x44] sm:$0xf]
  %v43 = vld [vmem:[%s0 + $0x48] sm:$0xf]
  %v44 = vld [vmem:[%s0 + $0x4c] sm:$0xf]
  %v45 = vld [vmem:[%s0 + $0x50] sm:$0xf]
  %v46 = vld [vmem:[%s0 + $0x54] sm:$0xf]
  %v47 = vld [vmem:[%s0 + $0x58] sm:$0xf]
  %v48 = vld [vmem:[%s0 + $0x5c] sm:$0xf]
  %v49 = vld [vmem:[%s0 + $0x60] sm:$0xf]
  %v50 = vld [vmem:[%s0 + $0x64] sm:$0xf]
  %v51 = vld [vmem:[%s0 + $0x68] sm:$0xf]
  %v52 = vld [vmem:[%s0 + $0x6c] sm:$0xf]
  %v53 = vld [vmem:[%s0 + $0x70] sm:$0xf]
  %v54 = vld [vmem:[%s0 + $0x74] sm:$0xf]
  %v55 = vld [vmem:[%s0 + $0x78] sm:$0xf]
  %v56 = vld [vmem:[%s0 + $0x7c] sm:$0xf]
  %v57 = vld [vmem:[%s0 + $0x80] sm:$0xf]
  %v58 = vld [vmem:[%s0 + $0x84] sm:$0xf]
  %v59 = vld [vmem:[%s0 + $0x88] sm:$0xf]
  %v60 = vld [vmem:[%s0 + $0x8c] sm:$0xf]
  %v61 = vld [vmem:[%s0 + $0x90] sm:$0xf]
  %v62 = vld [vmem:[%s0 + $0x94] sm:$0xf]
  %v63 = vld [vmem:[%s0 + $0x98] sm:$0xf]
  %v64 = vld [vmem:[%s0 + $0x9c] sm:$0xf]
  %v65 = vld [vmem:[%s0 + $0xa0] sm:$0xf]
  %v66 = vld [vmem:[%s0 + $0xa4] sm:$0xf]
  %v67 = vld [vmem:[%s0 + $0xa8] sm:$0xf]
  %v68 = vld [vmem:[%s0 + $0xac] sm:$0xf]
  %v69 = vld [vmem:[%s0 + $0xb0] sm:$0xf]
  %v70 = vld [vmem:[%s0 + $0xb4] sm:$0xf]
  %v71 = vld [vmem:[%s0 + $0xb8] sm:$0xf]
  %v72 = vld [vmem:[%s0 + $0xbc] sm:$0xf]
  %v73 = vld [vmem:[%s0 + $0xc0] sm:$0xf]
  %v74 = vld [vmem:[%s0 + $0xc4] sm:$0xf]
  %v75 = vld [vmem:[%s0 + $0xc8] sm:$0xf]
  %v76 = vld [vmem:[%s0 + $0xcc] sm:$0xf]
  %v129 = vunpack.c.l.b16 %v25
  %v130 = vunpack.c.l.b16 %v26
  %v131 = vunpack.c.l.b16 %v27
  %v132 = vunpack.c.l.b16 %v28
  %v133 = vunpack.c.l.b16 %v29
  %v134 = vunpack.c.l.b16 %v30
  %v135 = vunpack.c.l.b16 %v31
  %v136 = vunpack.c.l.b16 %v32
  %v137 = vunpack.c.l.b16 %v33
  %v138 = vunpack.c.l.b16 %v34
  %v139 = vunpack.c.l.b16 %v35
  %v140 = vunpack.c.l.b16 %v36
  %v141 = vunpack.c.l.b16 %v37
  %v142 = vunpack.c.l.b16 %v38
  %v143 = vunpack.c.l.b16 %v39
  %v144 = vunpack.c.l.b16 %v40
  %v145 = vunpack.c.l.b16 %v41
  %v146 = vunpack.c.l.b16 %v42
  %v147 = vunpack.c.l.b16 %v43
  %v148 = vunpack.c.l.b16 %v44
  %v149 = vunpack.c.l.b16 %v45
  %v150 = vunpack.c.l.b16 %v46
  %v151 = vunpack.c.l.b16 %v47
  %v152 = vunpack.c.l.b16 %v48
  %v153 = vunpack.c.l.b16 %v49
  %v154 = vunpack.c.l.b16 %v50
  %v155 = vunpack.c.l.b16 %v51
  %v156 = vunpack.c.l.b16 %v52
  %v157 = vunpack.c.l.b16 %v53
  %v158 = vunpack.c.l.b16 %v54
  %v159 = vunpack.c.l.b16 %v55
  %v160 = vunpack.c.l.b16 %v56
  %v161 = vunpack.c.l.b16 %v57
  %v162 = vunpack.c.l.b16 %v58
  %v163 = vunpack.c.l.b16 %v59
  %v164 = vunpack.c.l.b16 %v60
  %v165 = vunpack.c.l.b16 %v61
  %v166 = vunpack.c.l.b16 %v62
  %v167 = vunpack.c.l.b16 %v63
  %v168 = vunpack.c.l.b16 %v64
  %v169 = vunpack.c.l.b16 %v65
  %v170 = vunpack.c.l.b16 %v66
  %v171 = vunpack.c.l.b16 %v67
  %v172 = vunpack.c.l.b16 %v68
  %v173 = vunpack.c.l.b16 %v69
  %v174 = vunpack.c.l.b16 %v70
  %v175 = vunpack.c.l.b16 %v71
  %v176 = vunpack.c.l.b16 %v72
  %v177 = vunpack.c.l.b16 %v73
  %v178 = vunpack.c.l.b16 %v74
  %v179 = vunpack.c.l.b16 %v75
  %v180 = vunpack.c.l.b16 %v76
  %v181 = vpack.c.b16 %v130, %v129
  %v182 = vpack.c.b16 %v132, %v131
  %v183 = vpack.c.b16 %v134, %v133
  %v184 = vpack.c.b16 %v136, %v135
  %v185 = vpack.c.b16 %v138, %v137
  %v186 = vpack.c.b16 %v140, %v139
  %v187 = vpack.c.b16 %v142, %v141
  %v188 = vpack.c.b16 %v144, %v143
  %v189 = vpack.c.b16 %v146, %v145
  %v190 = vpack.c.b16 %v148, %v147
  %v191 = vpack.c.b16 %v150, %v149
  %v192 = vpack.c.b16 %v152, %v151
  %v193 = vpack.c.b16 %v154, %v153
  %v194 = vpack.c.b16 %v156, %v155
  %v195 = vpack.c.b16 %v158, %v157
  %v196 = vpack.c.b16 %v160, %v159
  %v197 = vpack.c.b16 %v162, %v161
  %v198 = vpack.c.b16 %v164, %v163
  %v199 = vpack.c.b16 %v166, %v165
  %v200 = vpack.c.b16 %v168, %v167
  %v201 = vpack.c.b16 %v170, %v169
  %v202 = vpack.c.b16 %v172, %v171
  %v203 = vpack.c.b16 %v174, %v173
  %v204 = vpack.c.b16 %v176, %v175
  %v205 = vpack.c.b16 %v178, %v177
  %v206 = vpack.c.b16 %v180, %v179
  %v217 = vunpack.c.l.b16 %v15
  %v218 = vunpack.c.l.b16 %v16
  %v219 = vunpack.c.l.b16 %v17
  %v220 = vunpack.c.l.b16 %v18
  %v221 = vunpack.c.l.b16 %v19
  %v222 = vunpack.c.l.b16 %v20
  %v223 = vunpack.c.l.b16 %v21
  %v224 = vunpack.c.l.b16 %v22
  %v225 = vunpack.c.l.b16 %v23
  %v226 = vunpack.c.l.b16 %v24
  %v227 = vpack.c.b16 %v218, %v217
  %v228 = vpack.c.b16 %v220, %v219
  %v229 = vpack.c.b16 %v222, %v221
  %v230 = vpack.c.b16 %v224, %v223
  %v231 = vpack.c.b16 %v226, %v225
  %vm237 = vcmask 654336
  %v239 = vsel %vm237, %v181, 0
  %v242 = vsel %vm237, %v182, 0
  %v245 = vsel %vm237, %v183, 0
  %v248 = vsel %vm237, %v184, 0
  %v251 = vsel %vm237, %v185, 0
  %v254 = vsel %vm237, %v186, 0
  %v257 = vsel %vm237, %v187, 0
  %v260 = vsel %vm237, %v188, 0
  %v263 = vsel %vm237, %v189, 0
  %v266 = vsel %vm237, %v190, 0
  %v269 = vsel %vm237, %v191, 0
  %v272 = vsel %vm237, %v192, 0
  %v275 = vsel %vm237, %v193, 0
  %v278 = vsel %vm237, %v194, 0
  %v281 = vsel %vm237, %v195, 0
  %v284 = vsel %vm237, %v196, 0
  %v287 = vsel %vm237, %v197, 0
  %v290 = vsel %vm237, %v198, 0
  %v293 = vsel %vm237, %v199, 0
  %v296 = vsel %vm237, %v200, 0
  %v299 = vsel %vm237, %v201, 0
  %v302 = vsel %vm237, %v202, 0
  %v305 = vsel %vm237, %v203, 0
  %v308 = vsel %vm237, %v204, 0
  %v311 = vsel %vm237, %v205, 0
  %v314 = vsel %vm237, %v206, 0
  %316 = vmatprep.subr.bf16.mxu0 0
  %317 = vmatpush1.bf16.msra.mxu0 %v227
  %318 = vmatprep.subr.bf16.mxu0 0
  %319 = vmatpush1.bf16.msra.mxu0 %v228
  %320 = vmatprep.subr.bf16.mxu0 0
  %321 = vmatpush1.bf16.msra.mxu0 %v229
  %322 = vmatprep.subr.bf16.mxu0 0
  %323 = vmatpush1.bf16.msra.mxu0 %v230
  %324 = vmatprep.subr.bf16.mxu0 0
  %325 = vmatpush1.bf16.msra.mxu0 %v231
  %326 = vmatprep.subr.bf16.mxu0 0
  %327 = vmatpush1.bf16.msra.mxu0 0
  %328 = vmatprep.subr.bf16.mxu0 0
  %329 = vmatpush1.bf16.msra.mxu0 0
  %330 = vmatprep.subr.bf16.mxu0 0
  %331 = vmatpush1.bf16.msra.mxu0 0
  %332 = vmatprep.subr.bf16.mxu0 0
  %333 = vmatpush1.bf16.msra.mxu0 0
  %334 = vmatprep.subr.bf16.mxu0 0
  %335 = vmatpush1.bf16.msra.mxu0 0
  %336 = vmatprep.subr.bf16.mxu0 0
  %337 = vmatpush1.bf16.msra.mxu0 0
  %338 = vmatprep.subr.bf16.mxu0 0
  %339 = vmatpush1.bf16.msra.mxu0 0
  %340 = vmatprep.subr.bf16.mxu0 0
  %341 = vmatpush1.bf16.msra.mxu0 0
  %342 = vmatprep.subr.bf16.mxu0 0
  %343 = vmatpush1.bf16.msra.mxu0 0
  %344 = vmatprep.subr.bf16.mxu0 0
  %345 = vmatpush1.bf16.msra.mxu0 0
  %346 = vmatprep.subr.bf16.mxu0 0
  %347 = vmatpush1.bf16.msra.mxu0 0
  %348 = vmatprep.mubr.bf16.mxu0 0
  %349 = vmatmul.mubr.bf16.gmra.mrb[0].mxu0 %v239
  %v350 = vpop.f32.mrb[0].mxu0
  %v351 = vadd.f32 0.0, %v350
  %v352 = vpop.f32.mrb[0].mxu0
  %v353 = vpop.f32.mrb[0].mxu0
  %v354 = vadd.f32 0.0, %v353
  %v355 = vpop.f32.mrb[0].mxu0
  %356 = vmatprep.mubr.bf16.mxu0 0
  %357 = vmatmul.mubr.bf16.gmra.mrb[0].mxu0 %v242
  %v358 = vpop.f32.mrb[0].mxu0
  %v359 = vadd.f32 0.0, %v358
  %v360 = vpop.f32.mrb[0].mxu0
  %v361 = vpop.f32.mrb[0].mxu0
  %v362 = vadd.f32 0.0, %v361
  %v363 = vpop.f32.mrb[0].mxu0
  %364 = vmatprep.mubr.bf16.mxu0 0
  %365 = vmatmul.mubr.bf16.gmra.mrb[0].mxu0 %v245
  %v366 = vpop.f32.mrb[0].mxu0
  %v367 = vadd.f32 0.0, %v366
  %v368 = vpop.f32.mrb[0].mxu0
  %v369 = vpop.f32.mrb[0].mxu0
  %v370 = vadd.f32 0.0, %v369
  %v371 = vpop.f32.mrb[0].mxu0
  %372 = vmatprep.mubr.bf16.mxu0 0
  %373 = vmatmul.mubr.bf16.gmra.mrb[0].mxu0 %v248
  %v374 = vpop.f32.mrb[0].mxu0
  %v375 = vadd.f32 0.0, %v374
  %v376 = vpop.f32.mrb[0].mxu0
  %v377 = vpop.f32.mrb[0].mxu0
  %v378 = vadd.f32 0.0, %v377
  %v379 = vpop.f32.mrb[0].mxu0
  %380 = vmatprep.mubr.bf16.mxu0 0
  %381 = vmatmul.mubr.bf16.gmra.mrb[0].mxu0 %v251
  %v382 = vpop.f32.mrb[0].mxu0
  %v383 = vadd.f32 0.0, %v382
  %v384 = vpop.f32.mrb[0].mxu0
  %v385 = vpop.f32.mrb[0].mxu0
  %v386 = vadd.f32 0.0, %v385
  %v387 = vpop.f32.mrb[0].mxu0
  %388 = vmatprep.mubr.bf16.mxu0 0
  %389 = vmatmul.mubr.bf16.gmra.mrb[0].mxu0 %v254
  %v390 = vpop.f32.mrb[0].mxu0
  %v391 = vadd.f32 0.0, %v390
  %v392 = vpop.f32.mrb[0].mxu0
  %v393 = vpop.f32.mrb[0].mxu0
  %v394 = vadd.f32 0.0, %v393
  %v395 = vpop.f32.mrb[0].mxu0
  %396 = vmatprep.mubr.bf16.mxu0 0
  %397 = vmatmul.mubr.bf16.gmra.mrb[0].mxu0 %v257
  %v398 = vpop.f32.mrb[0].mxu0
  %v399 = vadd.f32 0.0, %v398
  %v400 = vpop.f32.mrb[0].mxu0
  %v401 = vpop.f32.mrb[0].mxu0
  %v402 = vadd.f32 0.0, %v401
  %v403 = vpop.f32.mrb[0].mxu0
  %404 = vmatprep.mubr.bf16.mxu0 0
  %405 = vmatmul.mubr.bf16.gmra.mrb[0].mxu0 %v260
  %v406 = vpop.f32.mrb[0].mxu0
  %v407 = vadd.f32 0.0, %v406
  %v408 = vpop.f32.mrb[0].mxu0
  %v409 = vpop.f32.mrb[0].mxu0
  %v410 = vadd.f32 0.0, %v409
  %v411 = vpop.f32.mrb[0].mxu0
  %412 = vmatprep.mubr.bf16.mxu0 0
  %413 = vmatmul.mubr.bf16.gmra.mrb[0].mxu0 %v263
  %v414 = vpop.f32.mrb[0].mxu0
  %v415 = vadd.f32 0.0, %v414
  %v416 = vpop.f32.mrb[0].mxu0
  %v417 = vpop.f32.mrb[0].mxu0
  %v418 = vadd.f32 0.0, %v417
  %v419 = vpop.f32.mrb[0].mxu0
  %420 = vmatprep.mubr.bf16.mxu0 0
  %421 = vmatmul.mubr.bf16.gmra.mrb[0].mxu0 %v266
  %v422 = vpop.f32.mrb[0].mxu0
  %v423 = vadd.f32 0.0, %v422
  %v424 = vpop.f32.mrb[0].mxu0
  %v425 = vpop.f32.mrb[0].mxu0
  %v426 = vadd.f32 0.0, %v425
  %v427 = vpop.f32.mrb[0].mxu0
  %428 = vmatprep.mubr.bf16.mxu0 0
  %429 = vmatmul.mubr.bf16.gmra.mrb[0].mxu0 %v269
  %v430 = vpop.f32.mrb[0].mxu0
  %v431 = vadd.f32 0.0, %v430
  %v432 = vpop.f32.mrb[0].mxu0
  %v433 = vpop.f32.mrb[0].mxu0
  %v434 = vadd.f32 0.0, %v433
  %v435 = vpop.f32.mrb[0].mxu0
  %436 = vmatprep.mubr.bf16.mxu0 0
  %437 = vmatmul.mubr.bf16.gmra.mrb[0].mxu0 %v272
  %v438 = vpop.f32.mrb[0].mxu0
  %v439 = vadd.f32 0.0, %v438
  %v440 = vpop.f32.mrb[0].mxu0
  %v441 = vpop.f32.mrb[0].mxu0
  %v442 = vadd.f32 0.0, %v441
  %v443 = vpop.f32.mrb[0].mxu0
  %444 = vmatprep.mubr.bf16.mxu0 0
  %445 = vmatmul.mubr.bf16.gmra.mrb[0].mxu0 %v275
  %v446 = vpop.f32.mrb[0].mxu0
  %v447 = vadd.f32 0.0, %v446
  %v448 = vpop.f32.mrb[0].mxu0
  %v449 = vpop.f32.mrb[0].mxu0
  %v450 = vadd.f32 0.0, %v449
  %v451 = vpop.f32.mrb[0].mxu0
  %452 = vmatprep.mubr.bf16.mxu0 0
  %453 = vmatmul.mubr.bf16.gmra.mrb[0].mxu0 %v278
  %v454 = vpop.f32.mrb[0].mxu0
  %v455 = vadd.f32 0.0, %v454
  %v456 = vpop.f32.mrb[0].mxu0
  %v457 = vpop.f32.mrb[0].mxu0
  %v458 = vadd.f32 0.0, %v457
  %v459 = vpop.f32.mrb[0].mxu0
  %460 = vmatprep.mubr.bf16.mxu0 0
  %461 = vmatmul.mubr.bf16.gmra.mrb[0].mxu0 %v281
  %v462 = vpop.f32.mrb[0].mxu0
  %v463 = vadd.f32 0.0, %v462
  %v464 = vpop.f32.mrb[0].mxu0
  %v465 = vpop.f32.mrb[0].mxu0
  %v466 = vadd.f32 0.0, %v465
  %v467 = vpop.f32.mrb[0].mxu0
  %468 = vmatprep.mubr.bf16.mxu0 0
  %469 = vmatmul.mubr.bf16.gmra.mrb[0].mxu0 %v284
  %v470 = vpop.f32.mrb[0].mxu0
  %v471 = vadd.f32 0.0, %v470
  %v472 = vpop.f32.mrb[0].mxu0
  %v473 = vpop.f32.mrb[0].mxu0
  %v474 = vadd.f32 0.0, %v473
  %v475 = vpop.f32.mrb[0].mxu0
  %476 = vmatprep.mubr.bf16.mxu0 0
  %477 = vmatmul.mubr.bf16.gmra.mrb[0].mxu0 %v287
  %v478 = vpop.f32.mrb[0].mxu0
  %v479 = vadd.f32 0.0, %v478
  %v480 = vpop.f32.mrb[0].mxu0
  %v481 = vpop.f32.mrb[0].mxu0
  %v482 = vadd.f32 0.0, %v481
  %v483 = vpop.f32.mrb[0].mxu0
  %484 = vmatprep.mubr.bf16.mxu0 0
  %485 = vmatmul.mubr.bf16.gmra.mrb[0].mxu0 %v290
  %v486 = vpop.f32.mrb[0].mxu0
  %v487 = vadd.f32 0.0, %v486
  %v488 = vpop.f32.mrb[0].mxu0
  %v489 = vpop.f32.mrb[0].mxu0
  %v490 = vadd.f32 0.0, %v489
  %v491 = vpop.f32.mrb[0].mxu0
  %492 = vmatprep.mubr.bf16.mxu0 0
  %493 = vmatmul.mubr.bf16.gmra.mrb[0].mxu0 %v293
  %v494 = vpop.f32.mrb[0].mxu0
  %v495 = vadd.f32 0.0, %v494
  %v496 = vpop.f32.mrb[0].mxu0
  %v497 = vpop.f32.mrb[0].mxu0
  %v498 = vadd.f32 0.0, %v497
  %v499 = vpop.f32.mrb[0].mxu0
  %500 = vmatprep.mubr.bf16.mxu0 0
  %501 = vmatmul.mubr.bf16.gmra.mrb[0].mxu0 %v296
  %v502 = vpop.f32.mrb[0].mxu0
  %v503 = vadd.f32 0.0, %v502
  %v504 = vpop.f32.mrb[0].mxu0
  %v505 = vpop.f32.mrb[0].mxu0
  %v506 = vadd.f32 0.0, %v505
  %v507 = vpop.f32.mrb[0].mxu0
  %508 = vmatprep.mubr.bf16.mxu0 0
  %509 = vmatmul.mubr.bf16.gmra.mrb[0].mxu0 %v299
  %v510 = vpop.f32.mrb[0].mxu0
  %v511 = vadd.f32 0.0, %v510
  %v512 = vpop.f32.mrb[0].mxu0
  %v513 = vpop.f32.mrb[0].mxu0
  %v514 = vadd.f32 0.0, %v513
  %v515 = vpop.f32.mrb[0].mxu0
  %516 = vmatprep.mubr.bf16.mxu0 0
  %517 = vmatmul.mubr.bf16.gmra.mrb[0].mxu0 %v302
  %v518 = vpop.f32.mrb[0].mxu0
  %v519 = vadd.f32 0.0, %v518
  %v520 = vpop.f32.mrb[0].mxu0
  %v521 = vpop.f32.mrb[0].mxu0
  %v522 = vadd.f32 0.0, %v521
  %v523 = vpop.f32.mrb[0].mxu0
  %524 = vmatprep.mubr.bf16.mxu0 0
  %525 = vmatmul.mubr.bf16.gmra.mrb[0].mxu0 %v305
  %v526 = vpop.f32.mrb[0].mxu0
  %v527 = vadd.f32 0.0, %v526
  %v528 = vpop.f32.mrb[0].mxu0
  %v529 = vpop.f32.mrb[0].mxu0
  %v530 = vadd.f32 0.0, %v529
  %v531 = vpop.f32.mrb[0].mxu0
  %532 = vmatprep.mubr.bf16.mxu0 0
  %533 = vmatmul.mubr.bf16.gmra.mrb[0].mxu0 %v308
  %v534 = vpop.f32.mrb[0].mxu0
  %v535 = vadd.f32 0.0, %v534
  %v536 = vpop.f32.mrb[0].mxu0
  %v537 = vpop.f32.mrb[0].mxu0
  %v538 = vadd.f32 0.0, %v537
  %v539 = vpop.f32.mrb[0].mxu0
  %540 = vmatprep.mubr.bf16.mxu0 0
  %541 = vmatmul.mubr.bf16.gmra.mrb[0].mxu0 %v311
  %v542 = vpop.f32.mrb[0].mxu0
  %v543 = vadd.f32 0.0, %v542
  %v544 = vpop.f32.mrb[0].mxu0
  %v545 = vpop.f32.mrb[0].mxu0
  %v546 = vadd.f32 0.0, %v545
  %v547 = vpop.f32.mrb[0].mxu0
  %548 = vmatprep.mubr.bf16.mxu0 0
  %549 = vmatmul.mubr.bf16.gmra.mrb[0].mxu0 %v314
  %v550 = vpop.f32.mrb[0].mxu0
  %v551 = vadd.f32 0.0, %v550
  %v552 = vpop.f32.mrb[0].mxu0
  %v553 = vpop.f32.mrb[0].mxu0
  %v554 = vadd.f32 0.0, %v553
  %v555 = vpop.f32.mrb[0].mxu0
  %556 = vdwg.mxu0
  %s557 = scalar_lea.vmem %s0, 208
  %v558 = vld [vmem:[%s557] sm:$0xf]
  %v559 = vld [vmem:[%s557 + $0x4] sm:$0xf]
  %v560 = vld [vmem:[%s557 + $0x8] sm:$0xf]
  %v561 = vld [vmem:[%s557 + $0xc] sm:$0xf]
  %v562 = vld [vmem:[%s557 + $0x10] sm:$0xf]
  %v563 = vld [vmem:[%s557 + $0x14] sm:$0xf]
  %v564 = vld [vmem:[%s557 + $0x18] sm:$0xf]
  %v565 = vld [vmem:[%s557 + $0x1c] sm:$0xf]
  %v566 = vld [vmem:[%s557 + $0x20] sm:$0xf]
  %v567 = vld [vmem:[%s557 + $0x24] sm:$0xf]
  %v568 = vld [vmem:[%s557 + $0x28] sm:$0xf]
  %v569 = vld [vmem:[%s557 + $0x2c] sm:$0xf]
  %v570 = vld [vmem:[%s557 + $0x30] sm:$0xf]
  %v571 = vld [vmem:[%s557 + $0x34] sm:$0xf]
  %v572 = vld [vmem:[%s557 + $0x38] sm:$0xf]
  %v573 = vld [vmem:[%s557 + $0x3c] sm:$0xf]
  %v574 = vld [vmem:[%s557 + $0x40] sm:$0xf]
  %v575 = vld [vmem:[%s557 + $0x44] sm:$0xf]
  %v576 = vld [vmem:[%s557 + $0x48] sm:$0xf]
  %v577 = vld [vmem:[%s557 + $0x4c] sm:$0xf]
  %v578 = vld [vmem:[%s557 + $0x50] sm:$0xf]
  %v579 = vld [vmem:[%s557 + $0x54] sm:$0xf]
  %v580 = vld [vmem:[%s557 + $0x58] sm:$0xf]
  %v581 = vld [vmem:[%s557 + $0x5c] sm:$0xf]
  %v582 = vld [vmem:[%s557 + $0x60] sm:$0xf]
  %v583 = vld [vmem:[%s557 + $0x64] sm:$0xf]
  %v584 = vld [vmem:[%s557 + $0x68] sm:$0xf]
  %v585 = vld [vmem:[%s557 + $0x6c] sm:$0xf]
  %v586 = vld [vmem:[%s557 + $0x70] sm:$0xf]
  %v587 = vld [vmem:[%s557 + $0x74] sm:$0xf]
  %v588 = vld [vmem:[%s557 + $0x78] sm:$0xf]
  %v589 = vld [vmem:[%s557 + $0x7c] sm:$0xf]
  %v590 = vld [vmem:[%s557 + $0x80] sm:$0xf]
  %v591 = vld [vmem:[%s557 + $0x84] sm:$0xf]
  %v592 = vld [vmem:[%s557 + $0x88] sm:$0xf]
  %v593 = vld [vmem:[%s557 + $0x8c] sm:$0xf]
  %v594 = vld [vmem:[%s557 + $0x90] sm:$0xf]
  %v595 = vld [vmem:[%s557 + $0x94] sm:$0xf]
  %v596 = vld [vmem:[%s557 + $0x98] sm:$0xf]
  %v597 = vld [vmem:[%s557 + $0x9c] sm:$0xf]
  %v598 = vld [vmem:[%s557 + $0xa0] sm:$0xf]
  %v599 = vld [vmem:[%s557 + $0xa4] sm:$0xf]
  %v600 = vld [vmem:[%s557 + $0xa8] sm:$0xf]
  %v601 = vld [vmem:[%s557 + $0xac] sm:$0xf]
  %v602 = vld [vmem:[%s557 + $0xb0] sm:$0xf]
  %v603 = vld [vmem:[%s557 + $0xb4] sm:$0xf]
  %v604 = vld [vmem:[%s557 + $0xb8] sm:$0xf]
  %v605 = vld [vmem:[%s557 + $0xbc] sm:$0xf]
  %v606 = vld [vmem:[%s557 + $0xc0] sm:$0xf]
  %v607 = vld [vmem:[%s557 + $0xc4] sm:$0xf]
  %v608 = vld [vmem:[%s557 + $0xc8] sm:$0xf]
  %v609 = vld [vmem:[%s557 + $0xcc] sm:$0xf]
  %v662 = vunpack.c.l.b16 %v558
  %v663 = vunpack.c.l.b16 %v559
  %v664 = vunpack.c.l.b16 %v560
  %v665 = vunpack.c.l.b16 %v561
  %v666 = vunpack.c.l.b16 %v562
  %v667 = vunpack.c.l.b16 %v563
  %v668 = vunpack.c.l.b16 %v564
  %v669 = vunpack.c.l.b16 %v565
  %v670 = vunpack.c.l.b16 %v566
  %v671 = vunpack.c.l.b16 %v567
  %v672 = vunpack.c.l.b16 %v568
  %v673 = vunpack.c.l.b16 %v569
  %v674 = vunpack.c.l.b16 %v570
  %v675 = vunpack.c.l.b16 %v571
  %v676 = vunpack.c.l.b16 %v572
  %v677 = vunpack.c.l.b16 %v573
  %v678 = vunpack.c.l.b16 %v574
  %v679 = vunpack.c.l.b16 %v575
  %v680 = vunpack.c.l.b16 %v576
  %v681 = vunpack.c.l.b16 %v577
  %v682 = vunpack.c.l.b16 %v578
  %v683 = vunpack.c.l.b16 %v579
  %v684 = vunpack.c.l.b16 %v580
  %v685 = vunpack.c.l.b16 %v581
  %v686 = vunpack.c.l.b16 %v582
  %v687 = vunpack.c.l.b16 %v583
  %v688 = vunpack.c.l.b16 %v584
  %v689 = vunpack.c.l.b16 %v585
  %v690 = vunpack.c.l.b16 %v586
  %v691 = vunpack.c.l.b16 %v587
  %v692 = vunpack.c.l.b16 %v588
  %v693 = vunpack.c.l.b16 %v589
  %v694 = vunpack.c.l.b16 %v590
  %v695 = vunpack.c.l.b16 %v591
  %v696 = vunpack.c.l.b16 %v592
  %v697 = vunpack.c.l.b16 %v593
  %v698 = vunpack.c.l.b16 %v594
  %v699 = vunpack.c.l.b16 %v595
  %v700 = vunpack.c.l.b16 %v596
  %v701 = vunpack.c.l.b16 %v597
  %v702 = vunpack.c.l.b16 %v598
  %v703 = vunpack.c.l.b16 %v599
  %v704 = vunpack.c.l.b16 %v600
  %v705 = vunpack.c.l.b16 %v601
  %v706 = vunpack.c.l.b16 %v602
  %v707 = vunpack.c.l.b16 %v603
  %v708 = vunpack.c.l.b16 %v604
  %v709 = vunpack.c.l.b16 %v605
  %v710 = vunpack.c.l.b16 %v606
  %v711 = vunpack.c.l.b16 %v607
  %v712 = vunpack.c.l.b16 %v608
  %v713 = vunpack.c.l.b16 %v609
  %v714 = vpack.c.b16 %v663, %v662
  %v715 = vpack.c.b16 %v665, %v664
  %v716 = vpack.c.b16 %v667, %v666
  %v717 = vpack.c.b16 %v669, %v668
  %v718 = vpack.c.b16 %v671, %v670
  %v719 = vpack.c.b16 %v673, %v672
  %v720 = vpack.c.b16 %v675, %v674
  %v721 = vpack.c.b16 %v677, %v676
  %v722 = vpack.c.b16 %v679, %v678
  %v723 = vpack.c.b16 %v681, %v680
  %v724 = vpack.c.b16 %v683, %v682
  %v725 = vpack.c.b16 %v685, %v684
  %v726 = vpack.c.b16 %v687, %v686
  %v727 = vpack.c.b16 %v689, %v688
  %v728 = vpack.c.b16 %v691, %v690
  %v729 = vpack.c.b16 %v693, %v692
  %v730 = vpack.c.b16 %v695, %v694
  %v731 = vpack.c.b16 %v697, %v696
  %v732 = vpack.c.b16 %v699, %v698
  %v733 = vpack.c.b16 %v701, %v700
  %v734 = vpack.c.b16 %v703, %v702
  %v735 = vpack.c.b16 %v705, %v704
  %v736 = vpack.c.b16 %v707, %v706
  %v737 = vpack.c.b16 %v709, %v708
  %v738 = vpack.c.b16 %v711, %v710
  %v739 = vpack.c.b16 %v713, %v712
  %v741 = vsel %vm237, %v714, 0
  %v744 = vsel %vm237, %v715, 0
  %v747 = vsel %vm237, %v716, 0
  %v750 = vsel %vm237, %v717, 0
  %v753 = vsel %vm237, %v718, 0
  %v756 = vsel %vm237, %v719, 0
  %v759 = vsel %vm237, %v720, 0
  %v762 = vsel %vm237, %v721, 0
  %v765 = vsel %vm237, %v722, 0
  %v768 = vsel %vm237, %v723, 0
  %v771 = vsel %vm237, %v724, 0
  %v774 = vsel %vm237, %v725, 0
  %v777 = vsel %vm237, %v726, 0
  %v780 = vsel %vm237, %v727, 0
  %v783 = vsel %vm237, %v728, 0
  %v786 = vsel %vm237, %v729, 0
  %v789 = vsel %vm237, %v730, 0
  %v792 = vsel %vm237, %v731, 0
  %v795 = vsel %vm237, %v732, 0
  %v798 = vsel %vm237, %v733, 0
  %v801 = vsel %vm237, %v734, 0
  %v804 = vsel %vm237, %v735, 0
  %v807 = vsel %vm237, %v736, 0
  %v810 = vsel %vm237, %v737, 0
  %v813 = vsel %vm237, %v738, 0
  %v816 = vsel %vm237, %v739, 0
  %818 = vmatprep.subr.bf16.mxu0 0
  %819 = vmatpush1.bf16.msra.mxu0 %v227
  %820 = vmatprep.subr.bf16.mxu0 0
  %821 = vmatpush1.bf16.msra.mxu0 %v228
  %822 = vmatprep.subr.bf16.mxu0 0
  %823 = vmatpush1.bf16.msra.mxu0 %v229
  %824 = vmatprep.subr.bf16.mxu0 0
  %825 = vmatpush1.bf16.msra.mxu0 %v230
  %826 = vmatprep.subr.bf16.mxu0 0
  %827 = vmatpush1.bf16.msra.mxu0 %v231
  %828 = vmatprep.subr.bf16.mxu0 0
  %829 = vmatpush1.bf16.msra.mxu0 0
  %830 = vmatprep.subr.bf16.mxu0 0
  %831 = vmatpush1.bf16.msra.mxu0 0
  %832 = vmatprep.subr.bf16.mxu0 0
  %833 = vmatpush1.bf16.msra.mxu0 0
  %834 = vmatprep.subr.bf16.mxu0 0
  %835 = vmatpush1.bf16.msra.mxu0 0
  %836 = vmatprep.subr.bf16.mxu0 0
  %837 = vmatpush1.bf16.msra.mxu0 0
  %838 = vmatprep.subr.bf16.mxu0 0
  %839 = vmatpush1.bf16.msra.mxu0 0
  %840 = vmatprep.subr.bf16.mxu0 0
  %841 = vmatpush1.bf16.msra.mxu0 0
  %842 = vmatprep.subr.bf16.mxu0 0
  %843 = vmatpush1.bf16.msra.mxu0 0
  %844 = vmatprep.subr.bf16.mxu0 0
  %845 = vmatpush1.bf16.msra.mxu0 0
  %846 = vmatprep.subr.bf16.mxu0 0
  %847 = vmatpush1.bf16.msra.mxu0 0
  %848 = vmatprep.subr.bf16.mxu0 0
  %849 = vmatpush1.bf16.msra.mxu0 0
  %850 = vmatprep.mubr.bf16.mxu0 0
  %851 = vmatmul.mubr.bf16.gmra.mrb[0].mxu0 %v741
  %v852 = vpop.f32.mrb[0].mxu0
  %v853 = vadd.f32 0.0, %v852
  %v854 = vpop.f32.mrb[0].mxu0
  %v855 = vpop.f32.mrb[0].mxu0
  %v856 = vadd.f32 0.0, %v855
  %v857 = vpop.f32.mrb[0].mxu0
  %858 = vmatprep.mubr.bf16.mxu0 0
  %859 = vmatmul.mubr.bf16.gmra.mrb[0].mxu0 %v744
  %v860 = vpop.f32.mrb[0].mxu0
  %v861 = vadd.f32 0.0, %v860
  %v862 = vpop.f32.mrb[0].mxu0
  %v863 = vpop.f32.mrb[0].mxu0
  %v864 = vadd.f32 0.0, %v863
  %v865 = vpop.f32.mrb[0].mxu0
  %866 = vmatprep.mubr.bf16.mxu0 0
  %867 = vmatmul.mubr.bf16.gmra.mrb[0].mxu0 %v747
  %v868 = vpop.f32.mrb[0].mxu0
  %v869 = vadd.f32 0.0, %v868
  %v870 = vpop.f32.mrb[0].mxu0
  %v871 = vpop.f32.mrb[0].mxu0
  %v872 = vadd.f32 0.0, %v871
  %v873 = vpop.f32.mrb[0].mxu0
  %874 = vmatprep.mubr.bf16.mxu0 0
  %875 = vmatmul.mubr.bf16.gmra.mrb[0].mxu0 %v750
  %v876 = vpop.f32.mrb[0].mxu0
  %v877 = vadd.f32 0.0, %v876
  %v878 = vpop.f32.mrb[0].mxu0
  %v879 = vpop.f32.mrb[0].mxu0
  %v880 = vadd.f32 0.0, %v879
  %v881 = vpop.f32.mrb[0].mxu0
  %882 = vmatprep.mubr.bf16.mxu0 0
  %883 = vmatmul.mubr.bf16.gmra.mrb[0].mxu0 %v753
  %v884 = vpop.f32.mrb[0].mxu0
  %v885 = vadd.f32 0.0, %v884
  %v886 = vpop.f32.mrb[0].mxu0
  %v887 = vpop.f32.mrb[0].mxu0
  %v888 = vadd.f32 0.0, %v887
  %v889 = vpop.f32.mrb[0].mxu0
  %890 = vmatprep.mubr.bf16.mxu0 0
  %891 = vmatmul.mubr.bf16.gmra.mrb[0].mxu0 %v756
  %v892 = vpop.f32.mrb[0].mxu0
  %v893 = vadd.f32 0.0, %v892
  %v894 = vpop.f32.mrb[0].mxu0
  %v895 = vpop.f32.mrb[0].mxu0
  %v896 = vadd.f32 0.0, %v895
  %v897 = vpop.f32.mrb[0].mxu0
  %898 = vmatprep.mubr.bf16.mxu0 0
  %899 = vmatmul.mubr.bf16.gmra.mrb[0].mxu0 %v759
  %v900 = vpop.f32.mrb[0].mxu0
  %v901 = vadd.f32 0.0, %v900
  %v902 = vpop.f32.mrb[0].mxu0
  %v903 = vpop.f32.mrb[0].mxu0
  %v904 = vadd.f32 0.0, %v903
  %v905 = vpop.f32.mrb[0].mxu0
  %906 = vmatprep.mubr.bf16.mxu0 0
  %907 = vmatmul.mubr.bf16.gmra.mrb[0].mxu0 %v762
  %v908 = vpop.f32.mrb[0].mxu0
  %v909 = vadd.f32 0.0, %v908
  %v910 = vpop.f32.mrb[0].mxu0
  %v911 = vpop.f32.mrb[0].mxu0
  %v912 = vadd.f32 0.0, %v911
  %v913 = vpop.f32.mrb[0].mxu0
  %914 = vmatprep.mubr.bf16.mxu0 0
  %915 = vmatmul.mubr.bf16.gmra.mrb[0].mxu0 %v765
  %v916 = vpop.f32.mrb[0].mxu0
  %v917 = vadd.f32 0.0, %v916
  %v918 = vpop.f32.mrb[0].mxu0
  %v919 = vpop.f32.mrb[0].mxu0
  %v920 = vadd.f32 0.0, %v919
  %v921 = vpop.f32.mrb[0].mxu0
  %922 = vmatprep.mubr.bf16.mxu0 0
  %923 = vmatmul.mubr.bf16.gmra.mrb[0].mxu0 %v768
  %v924 = vpop.f32.mrb[0].mxu0
  %v925 = vadd.f32 0.0, %v924
  %v926 = vpop.f32.mrb[0].mxu0
  %v927 = vpop.f32.mrb[0].mxu0
  %v928 = vadd.f32 0.0, %v927
  %v929 = vpop.f32.mrb[0].mxu0
  %930 = vmatprep.mubr.bf16.mxu0 0
  %931 = vmatmul.mubr.bf16.gmra.mrb[0].mxu0 %v771
  %v932 = vpop.f32.mrb[0].mxu0
  %v933 = vadd.f32 0.0, %v932
  %v934 = vpop.f32.mrb[0].mxu0
  %v935 = vpop.f32.mrb[0].mxu0
  %v936 = vadd.f32 0.0, %v935
  %v937 = vpop.f32.mrb[0].mxu0
  %938 = vmatprep.mubr.bf16.mxu0 0
  %939 = vmatmul.mubr.bf16.gmra.mrb[0].mxu0 %v774
  %v940 = vpop.f32.mrb[0].mxu0
  %v941 = vadd.f32 0.0, %v940
  %v942 = vpop.f32.mrb[0].mxu0
  %v943 = vpop.f32.mrb[0].mxu0
  %v944 = vadd.f32 0.0, %v943
  %v945 = vpop.f32.mrb[0].mxu0
  %946 = vmatprep.mubr.bf16.mxu0 0
  %947 = vmatmul.mubr.bf16.gmra.mrb[0].mxu0 %v777
  %v948 = vpop.f32.mrb[0].mxu0
  %v949 = vadd.f32 0.0, %v948
  %v950 = vpop.f32.mrb[0].mxu0
  %v951 = vpop.f32.mrb[0].mxu0
  %v952 = vadd.f32 0.0, %v951
  %v953 = vpop.f32.mrb[0].mxu0
  %954 = vmatprep.mubr.bf16.mxu0 0
  %955 = vmatmul.mubr.bf16.gmra.mrb[0].mxu0 %v780
  %v956 = vpop.f32.mrb[0].mxu0
  %v957 = vadd.f32 0.0, %v956
  %v958 = vpop.f32.mrb[0].mxu0
  %v959 = vpop.f32.mrb[0].mxu0
  %v960 = vadd.f32 0.0, %v959
  %v961 = vpop.f32.mrb[0].mxu0
  %962 = vmatprep.mubr.bf16.mxu0 0
  %963 = vmatmul.mubr.bf16.gmra.mrb[0].mxu0 %v783
  %v964 = vpop.f32.mrb[0].mxu0
  %v965 = vadd.f32 0.0, %v964
  %v966 = vpop.f32.mrb[0].mxu0
  %v967 = vpop.f32.mrb[0].mxu0
  %v968 = vadd.f32 0.0, %v967
  %v969 = vpop.f32.mrb[0].mxu0
  %970 = vmatprep.mubr.bf16.mxu0 0
  %971 = vmatmul.mubr.bf16.gmra.mrb[0].mxu0 %v786
  %v972 = vpop.f32.mrb[0].mxu0
  %v973 = vadd.f32 0.0, %v972
  %v974 = vpop.f32.mrb[0].mxu0
  %v975 = vpop.f32.mrb[0].mxu0
  %v976 = vadd.f32 0.0, %v975
  %v977 = vpop.f32.mrb[0].mxu0
  %978 = vmatprep.mubr.bf16.mxu0 0
  %979 = vmatmul.mubr.bf16.gmra.mrb[0].mxu0 %v789
  %v980 = vpop.f32.mrb[0].mxu0
  %v981 = vadd.f32 0.0, %v980
  %v982 = vpop.f32.mrb[0].mxu0
  %v983 = vpop.f32.mrb[0].mxu0
  %v984 = vadd.f32 0.0, %v983
  %v985 = vpop.f32.mrb[0].mxu0
  %986 = vmatprep.mubr.bf16.mxu0 0
  %987 = vmatmul.mubr.bf16.gmra.mrb[0].mxu0 %v792
  %v988 = vpop.f32.mrb[0].mxu0
  %v989 = vadd.f32 0.0, %v988
  %v990 = vpop.f32.mrb[0].mxu0
  %v991 = vpop.f32.mrb[0].mxu0
  %v992 = vadd.f32 0.0, %v991
  %v993 = vpop.f32.mrb[0].mxu0
  %994 = vmatprep.mubr.bf16.mxu0 0
  %995 = vmatmul.mubr.bf16.gmra.mrb[0].mxu0 %v795
  %v996 = vpop.f32.mrb[0].mxu0
  %v997 = vadd.f32 0.0, %v996
  %v998 = vpop.f32.mrb[0].mxu0
  %v999 = vpop.f32.mrb[0].mxu0
  %v1000 = vadd.f32 0.0, %v999
  %v1001 = vpop.f32.mrb[0].mxu0
  %1002 = vmatprep.mubr.bf16.mxu0 0
  %1003 = vmatmul.mubr.bf16.gmra.mrb[0].mxu0 %v798
  %v1004 = vpop.f32.mrb[0].mxu0
  %v1005 = vadd.f32 0.0, %v1004
  %v1006 = vpop.f32.mrb[0].mxu0
  %v1007 = vpop.f32.mrb[0].mxu0
  %v1008 = vadd.f32 0.0, %v1007
  %v1009 = vpop.f32.mrb[0].mxu0
  %1010 = vmatprep.mubr.bf16.mxu0 0
  %1011 = vmatmul.mubr.bf16.gmra.mrb[0].mxu0 %v801
  %v1012 = vpop.f32.mrb[0].mxu0
  %v1013 = vadd.f32 0.0, %v1012
  %v1014 = vpop.f32.mrb[0].mxu0
  %v1015 = vpop.f32.mrb[0].mxu0
  %v1016 = vadd.f32 0.0, %v1015
  %v1017 = vpop.f32.mrb[0].mxu0
  %1018 = vmatprep.mubr.bf16.mxu0 0
  %1019 = vmatmul.mubr.bf16.gmra.mrb[0].mxu0 %v804
  %v1020 = vpop.f32.mrb[0].mxu0
  %v1021 = vadd.f32 0.0, %v1020
  %v1022 = vpop.f32.mrb[0].mxu0
  %v1023 = vpop.f32.mrb[0].mxu0
  %v1024 = vadd.f32 0.0, %v1023
  %v1025 = vpop.f32.mrb[0].mxu0
  %1026 = vmatprep.mubr.bf16.mxu0 0
  %1027 = vmatmul.mubr.bf16.gmra.mrb[0].mxu0 %v807
  %v1028 = vpop.f32.mrb[0].mxu0
  %v1029 = vadd.f32 0.0, %v1028
  %v1030 = vpop.f32.mrb[0].mxu0
  %v1031 = vpop.f32.mrb[0].mxu0
  %v1032 = vadd.f32 0.0, %v1031
  %v1033 = vpop.f32.mrb[0].mxu0
  %1034 = vmatprep.mubr.bf16.mxu0 0
  %1035 = vmatmul.mubr.bf16.gmra.mrb[0].mxu0 %v810
  %v1036 = vpop.f32.mrb[0].mxu0
  %v1037 = vadd.f32 0.0, %v1036
  %v1038 = vpop.f32.mrb[0].mxu0
  %v1039 = vpop.f32.mrb[0].mxu0
  %v1040 = vadd.f32 0.0, %v1039
  %v1041 = vpop.f32.mrb[0].mxu0
  %1042 = vmatprep.mubr.bf16.mxu0 0
  %1043 = vmatmul.mubr.bf16.gmra.mrb[0].mxu0 %v813
  %v1044 = vpop.f32.mrb[0].mxu0
  %v1045 = vadd.f32 0.0, %v1044
  %v1046 = vpop.f32.mrb[0].mxu0
  %v1047 = vpop.f32.mrb[0].mxu0
  %v1048 = vadd.f32 0.0, %v1047
  %v1049 = vpop.f32.mrb[0].mxu0
  %1050 = vmatprep.mubr.bf16.mxu0 0
  %1051 = vmatmul.mubr.bf16.gmra.mrb[0].mxu0 %v816
  %v1052 = vpop.f32.mrb[0].mxu0
  %v1053 = vadd.f32 0.0, %v1052
  %v1054 = vpop.f32.mrb[0].mxu0
  %v1055 = vpop.f32.mrb[0].mxu0
  %v1056 = vadd.f32 0.0, %v1055
  %v1057 = vpop.f32.mrb[0].mxu0
  %1058 = vdwg.mxu0
  %v1059 = vmax.f32 %v351, %v853
  %v1060 = vmax.f32 %v354, %v856
  %v1061 = vmax.f32 %v359, %v861
  %v1062 = vmax.f32 %v362, %v864
  %v1063 = vmax.f32 %v367, %v869
  %v1064 = vmax.f32 %v370, %v872
  %v1065 = vmax.f32 %v375, %v877
  %v1066 = vmax.f32 %v378, %v880
  %v1067 = vmax.f32 %v383, %v885
  %v1068 = vmax.f32 %v386, %v888
  %v1069 = vmax.f32 %v391, %v893
  %v1070 = vmax.f32 %v394, %v896
  %v1071 = vmax.f32 %v399, %v901
  %v1072 = vmax.f32 %v402, %v904
  %v1073 = vmax.f32 %v407, %v909
  %v1074 = vmax.f32 %v410, %v912
  %v1075 = vmax.f32 %v415, %v917
  %v1076 = vmax.f32 %v418, %v920
  %v1077 = vmax.f32 %v423, %v925
  %v1078 = vmax.f32 %v426, %v928
  %v1079 = vmax.f32 %v431, %v933
  %v1080 = vmax.f32 %v434, %v936
  %v1081 = vmax.f32 %v439, %v941
  %v1082 = vmax.f32 %v442, %v944
  %v1083 = vmax.f32 %v447, %v949
  %v1084 = vmax.f32 %v450, %v952
  %v1085 = vmax.f32 %v455, %v957
  %v1086 = vmax.f32 %v458, %v960
  %v1087 = vmax.f32 %v463, %v965
  %v1088 = vmax.f32 %v466, %v968
  %v1089 = vmax.f32 %v471, %v973
  %v1090 = vmax.f32 %v474, %v976
  %v1091 = vmax.f32 %v479, %v981
  %v1092 = vmax.f32 %v482, %v984
  %v1093 = vmax.f32 %v487, %v989
  %v1094 = vmax.f32 %v490, %v992
  %v1095 = vmax.f32 %v495, %v997
  %v1096 = vmax.f32 %v498, %v1000
  %v1097 = vmax.f32 %v503, %v1005
  %v1098 = vmax.f32 %v506, %v1008
  %v1099 = vmax.f32 %v511, %v1013
  %v1100 = vmax.f32 %v514, %v1016
  %v1101 = vmax.f32 %v519, %v1021
  %v1102 = vmax.f32 %v522, %v1024
  %v1103 = vmax.f32 %v527, %v1029
  %v1104 = vmax.f32 %v530, %v1032
  %v1105 = vmax.f32 %v535, %v1037
  %v1106 = vmax.f32 %v538, %v1040
  %v1107 = vmax.f32 %v543, %v1045
  %v1108 = vmax.f32 %v546, %v1048
  %v1109 = vmax.f32 %v551, %v1053
  %v1110 = vmax.f32 %v554, %v1056
  %s1111 = scalar_lea.vmem %s0, 416
  %v1112 = vld [vmem:[%s1111] sm:$0xf]
  %v1113 = vld [vmem:[%s1111 + $0x4] sm:$0xf]
  %v1114 = vld [vmem:[%s1111 + $0x8] sm:$0xf]
  %v1115 = vld [vmem:[%s1111 + $0xc] sm:$0xf]
  %v1116 = vld [vmem:[%s1111 + $0x10] sm:$0xf]
  %v1117 = vld [vmem:[%s1111 + $0x14] sm:$0xf]
  %v1118 = vld [vmem:[%s1111 + $0x18] sm:$0xf]
  %v1119 = vld [vmem:[%s1111 + $0x1c] sm:$0xf]
  %v1120 = vld [vmem:[%s1111 + $0x20] sm:$0xf]
  %v1121 = vld [vmem:[%s1111 + $0x24] sm:$0xf]
  %v1122 = vld [vmem:[%s1111 + $0x28] sm:$0xf]
  %v1123 = vld [vmem:[%s1111 + $0x2c] sm:$0xf]
  %v1124 = vld [vmem:[%s1111 + $0x30] sm:$0xf]
  %v1125 = vld [vmem:[%s1111 + $0x34] sm:$0xf]
  %v1126 = vld [vmem:[%s1111 + $0x38] sm:$0xf]
  %v1127 = vld [vmem:[%s1111 + $0x3c] sm:$0xf]
  %v1128 = vld [vmem:[%s1111 + $0x40] sm:$0xf]
  %v1129 = vld [vmem:[%s1111 + $0x44] sm:$0xf]
  %v1130 = vld [vmem:[%s1111 + $0x48] sm:$0xf]
  %v1131 = vld [vmem:[%s1111 + $0x4c] sm:$0xf]
  %v1132 = vld [vmem:[%s1111 + $0x50] sm:$0xf]
  %v1133 = vld [vmem:[%s1111 + $0x54] sm:$0xf]
  %v1134 = vld [vmem:[%s1111 + $0x58] sm:$0xf]
  %v1135 = vld [vmem:[%s1111 + $0x5c] sm:$0xf]
  %v1136 = vld [vmem:[%s1111 + $0x60] sm:$0xf]
  %v1137 = vld [vmem:[%s1111 + $0x64] sm:$0xf]
  %v1138 = vld [vmem:[%s1111 + $0x68] sm:$0xf]
  %v1139 = vld [vmem:[%s1111 + $0x6c] sm:$0xf]
  %v1140 = vld [vmem:[%s1111 + $0x70] sm:$0xf]
  %v1141 = vld [vmem:[%s1111 + $0x74] sm:$0xf]
  %v1142 = vld [vmem:[%s1111 + $0x78] sm:$0xf]
  %v1143 = vld [vmem:[%s1111 + $0x7c] sm:$0xf]
  %v1144 = vld [vmem:[%s1111 + $0x80] sm:$0xf]
  %v1145 = vld [vmem:[%s1111 + $0x84] sm:$0xf]
  %v1146 = vld [vmem:[%s1111 + $0x88] sm:$0xf]
  %v1147 = vld [vmem:[%s1111 + $0x8c] sm:$0xf]
  %v1148 = vld [vmem:[%s1111 + $0x90] sm:$0xf]
  %v1149 = vld [vmem:[%s1111 + $0x94] sm:$0xf]
  %v1150 = vld [vmem:[%s1111 + $0x98] sm:$0xf]
  %v1151 = vld [vmem:[%s1111 + $0x9c] sm:$0xf]
  %v1152 = vld [vmem:[%s1111 + $0xa0] sm:$0xf]
  %v1153 = vld [vmem:[%s1111 + $0xa4] sm:$0xf]
  %v1154 = vld [vmem:[%s1111 + $0xa8] sm:$0xf]
  %v1155 = vld [vmem:[%s1111 + $0xac] sm:$0xf]
  %v1156 = vld [vmem:[%s1111 + $0xb0] sm:$0xf]
  %v1157 = vld [vmem:[%s1111 + $0xb4] sm:$0xf]
  %v1158 = vld [vmem:[%s1111 + $0xb8] sm:$0xf]
  %v1159 = vld [vmem:[%s1111 + $0xbc] sm:$0xf]
  %v1160 = vld [vmem:[%s1111 + $0xc0] sm:$0xf]
  %v1161 = vld [vmem:[%s1111 + $0xc4] sm:$0xf]
  %v1162 = vld [vmem:[%s1111 + $0xc8] sm:$0xf]
  %v1163 = vld [vmem:[%s1111 + $0xcc] sm:$0xf]
  %v1216 = vunpack.c.l.b16 %v1112
  %v1217 = vunpack.c.l.b16 %v1113
  %v1218 = vunpack.c.l.b16 %v1114
  %v1219 = vunpack.c.l.b16 %v1115
  %v1220 = vunpack.c.l.b16 %v1116
  %v1221 = vunpack.c.l.b16 %v1117
  %v1222 = vunpack.c.l.b16 %v1118
  %v1223 = vunpack.c.l.b16 %v1119
  %v1224 = vunpack.c.l.b16 %v1120
  %v1225 = vunpack.c.l.b16 %v1121
  %v1226 = vunpack.c.l.b16 %v1122
  %v1227 = vunpack.c.l.b16 %v1123
  %v1228 = vunpack.c.l.b16 %v1124
  %v1229 = vunpack.c.l.b16 %v1125
  %v1230 = vunpack.c.l.b16 %v1126
  %v1231 = vunpack.c.l.b16 %v1127
  %v1232 = vunpack.c.l.b16 %v1128
  %v1233 = vunpack.c.l.b16 %v1129
  %v1234 = vunpack.c.l.b16 %v1130
  %v1235 = vunpack.c.l.b16 %v1131
  %v1236 = vunpack.c.l.b16 %v1132
  %v1237 = vunpack.c.l.b16 %v1133
  %v1238 = vunpack.c.l.b16 %v1134
  %v1239 = vunpack.c.l.b16 %v1135
  %v1240 = vunpack.c.l.b16 %v1136
  %v1241 = vunpack.c.l.b16 %v1137
  %v1242 = vunpack.c.l.b16 %v1138
  %v1243 = vunpack.c.l.b16 %v1139
  %v1244 = vunpack.c.l.b16 %v1140
  %v1245 = vunpack.c.l.b16 %v1141
  %v1246 = vunpack.c.l.b16 %v1142
  %v1247 = vunpack.c.l.b16 %v1143
  %v1248 = vunpack.c.l.b16 %v1144
  %v1249 = vunpack.c.l.b16 %v1145
  %v1250 = vunpack.c.l.b16 %v1146
  %v1251 = vunpack.c.l.b16 %v1147
  %v1252 = vunpack.c.l.b16 %v1148
  %v1253 = vunpack.c.l.b16 %v1149
  %v1254 = vunpack.c.l.b16 %v1150
  %v1255 = vunpack.c.l.b16 %v1151
  %v1256 = vunpack.c.l.b16 %v1152
  %v1257 = vunpack.c.l.b16 %v1153
  %v1258 = vunpack.c.l.b16 %v1154
  %v1259 = vunpack.c.l.b16 %v1155
  %v1260 = vunpack.c.l.b16 %v1156
  %v1261 = vunpack.c.l.b16 %v1157
  %v1262 = vunpack.c.l.b16 %v1158
  %v1263 = vunpack.c.l.b16 %v1159
  %v1264 = vunpack.c.l.b16 %v1160
  %v1265 = vunpack.c.l.b16 %v1161
  %v1266 = vunpack.c.l.b16 %v1162
  %v1267 = vunpack.c.l.b16 %v1163
  %v1268 = vpack.c.b16 %v1217, %v1216
  %v1269 = vpack.c.b16 %v1219, %v1218
  %v1270 = vpack.c.b16 %v1221, %v1220
  %v1271 = vpack.c.b16 %v1223, %v1222
  %v1272 = vpack.c.b16 %v1225, %v1224
  %v1273 = vpack.c.b16 %v1227, %v1226
  %v1274 = vpack.c.b16 %v1229, %v1228
  %v1275 = vpack.c.b16 %v1231, %v1230
  %v1276 = vpack.c.b16 %v1233, %v1232
  %v1277 = vpack.c.b16 %v1235, %v1234
  %v1278 = vpack.c.b16 %v1237, %v1236
  %v1279 = vpack.c.b16 %v1239, %v1238
  %v1280 = vpack.c.b16 %v1241, %v1240
  %v1281 = vpack.c.b16 %v1243, %v1242
  %v1282 = vpack.c.b16 %v1245, %v1244
  %v1283 = vpack.c.b16 %v1247, %v1246
  %v1284 = vpack.c.b16 %v1249, %v1248
  %v1285 = vpack.c.b16 %v1251, %v1250
  %v1286 = vpack.c.b16 %v1253, %v1252
  %v1287 = vpack.c.b16 %v1255, %v1254
  %v1288 = vpack.c.b16 %v1257, %v1256
  %v1289 = vpack.c.b16 %v1259, %v1258
  %v1290 = vpack.c.b16 %v1261, %v1260
  %v1291 = vpack.c.b16 %v1263, %v1262
  %v1292 = vpack.c.b16 %v1265, %v1264
  %v1293 = vpack.c.b16 %v1267, %v1266
  %v1295 = vsel %vm237, %v1268, 0
  %v1298 = vsel %vm237, %v1269, 0
  %v1301 = vsel %vm237, %v1270, 0
  %v1304 = vsel %vm237, %v1271, 0
  %v1307 = vsel %vm237, %v1272, 0
  %v1310 = vsel %vm237, %v1273, 0
  %v1313 = vsel %vm237, %v1274, 0
  %v1316 = vsel %vm237, %v1275, 0
  %v1319 = vsel %vm237, %v1276, 0
  %v1322 = vsel %vm237, %v1277, 0
  %v1325 = vsel %vm237, %v1278, 0
  %v1328 = vsel %vm237, %v1279, 0
  %v1331 = vsel %vm237, %v1280, 0
  %v1334 = vsel %vm237, %v1281, 0
  %v1337 = vsel %vm237, %v1282, 0
  %v1340 = vsel %vm237, %v1283, 0
  %v1343 = vsel %vm237, %v1284, 0
  %v1346 = vsel %vm237, %v1285, 0
  %v1349 = vsel %vm237, %v1286, 0
  %v1352 = vsel %vm237, %v1287, 0
  %v1355 = vsel %vm237, %v1288, 0
  %v1358 = vsel %vm237, %v1289, 0
  %v1361 = vsel %vm237, %v1290, 0
  %v1364 = vsel %vm237, %v1291, 0
  %v1367 = vsel %vm237, %v1292, 0
  %v1370 = vsel %vm237, %v1293, 0
  %1372 = vmatprep.subr.bf16.mxu0 0
  %1373 = vmatpush1.bf16.msra.mxu0 %v227
  %1374 = vmatprep.subr.bf16.mxu0 0
  %1375 = vmatpush1.bf16.msra.mxu0 %v228
  %1376 = vmatprep.subr.bf16.mxu0 0
  %1377 = vmatpush1.bf16.msra.mxu0 %v229
  %1378 = vmatprep.subr.bf16.mxu0 0
  %1379 = vmatpush1.bf16.msra.mxu0 %v230
  %1380 = vmatprep.subr.bf16.mxu0 0
  %1381 = vmatpush1.bf16.msra.mxu0 %v231
  %1382 = vmatprep.subr.bf16.mxu0 0
  %1383 = vmatpush1.bf16.msra.mxu0 0
  %1384 = vmatprep.subr.bf16.mxu0 0
  %1385 = vmatpush1.bf16.msra.mxu0 0
  %1386 = vmatprep.subr.bf16.mxu0 0
  %1387 = vmatpush1.bf16.msra.mxu0 0
  %1388 = vmatprep.subr.bf16.mxu0 0
  %1389 = vmatpush1.bf16.msra.mxu0 0
  %1390 = vmatprep.subr.bf16.mxu0 0
  %1391 = vmatpush1.bf16.msra.mxu0 0
  %1392 = vmatprep.subr.bf16.mxu0 0
  %1393 = vmatpush1.bf16.msra.mxu0 0
  %1394 = vmatprep.subr.bf16.mxu0 0
  %1395 = vmatpush1.bf16.msra.mxu0 0
  %1396 = vmatprep.subr.bf16.mxu0 0
  %1397 = vmatpush1.bf16.msra.mxu0 0
  %1398 = vmatprep.subr.bf16.mxu0 0
  %1399 = vmatpush1.bf16.msra.mxu0 0
  %1400 = vmatprep.subr.bf16.mxu0 0
  %1401 = vmatpush1.bf16.msra.mxu0 0
  %1402 = vmatprep.subr.bf16.mxu0 0
  %1403 = vmatpush1.bf16.msra.mxu0 0
  %1404 = vmatprep.mubr.bf16.mxu0 0
  %1405 = vmatmul.mubr.bf16.gmra.mrb[0].mxu0 %v1295
  %v1406 = vpop.f32.mrb[0].mxu0
  %v1407 = vadd.f32 0.0, %v1406
  %v1408 = vpop.f32.mrb[0].mxu0
  %v1409 = vpop.f32.mrb[0].mxu0
  %v1410 = vadd.f32 0.0, %v1409
  %v1411 = vpop.f32.mrb[0].mxu0
  %1412 = vmatprep.mubr.bf16.mxu0 0
  %1413 = vmatmul.mubr.bf16.gmra.mrb[0].mxu0 %v1298
  %v1414 = vpop.f32.mrb[0].mxu0
  %v1415 = vadd.f32 0.0, %v1414
  %v1416 = vpop.f32.mrb[0].mxu0
  %v1417 = vpop.f32.mrb[0].mxu0
  %v1418 = vadd.f32 0.0, %v1417
  %v1419 = vpop.f32.mrb[0].mxu0
  %1420 = vmatprep.mubr.bf16.mxu0 0
  %1421 = vmatmul.mubr.bf16.gmra.mrb[0].mxu0 %v1301
  %v1422 = vpop.f32.mrb[0].mxu0
  %v1423 = vadd.f32 0.0, %v1422
  %v1424 = vpop.f32.mrb[0].mxu0
  %v1425 = vpop.f32.mrb[0].mxu0
  %v1426 = vadd.f32 0.0, %v1425
  %v1427 = vpop.f32.mrb[0].mxu0
  %1428 = vmatprep.mubr.bf16.mxu0 0
  %1429 = vmatmul.mubr.bf16.gmra.mrb[0].mxu0 %v1304
  %v1430 = vpop.f32.mrb[0].mxu0
  %v1431 = vadd.f32 0.0, %v1430
  %v1432 = vpop.f32.mrb[0].mxu0
  %v1433 = vpop.f32.mrb[0].mxu0
  %v1434 = vadd.f32 0.0, %v1433
  %v1435 = vpop.f32.mrb[0].mxu0
  %1436 = vmatprep.mubr.bf16.mxu0 0
  %1437 = vmatmul.mubr.bf16.gmra.mrb[0].mxu0 %v1307
  %v1438 = vpop.f32.mrb[0].mxu0
  %v1439 = vadd.f32 0.0, %v1438
  %v1440 = vpop.f32.mrb[0].mxu0
  %v1441 = vpop.f32.mrb[0].mxu0
  %v1442 = vadd.f32 0.0, %v1441
  %v1443 = vpop.f32.mrb[0].mxu0
  %1444 = vmatprep.mubr.bf16.mxu0 0
  %1445 = vmatmul.mubr.bf16.gmra.mrb[0].mxu0 %v1310
  %v1446 = vpop.f32.mrb[0].mxu0
  %v1447 = vadd.f32 0.0, %v1446
  %v1448 = vpop.f32.mrb[0].mxu0
  %v1449 = vpop.f32.mrb[0].mxu0
  %v1450 = vadd.f32 0.0, %v1449
  %v1451 = vpop.f32.mrb[0].mxu0
  %1452 = vmatprep.mubr.bf16.mxu0 0
  %1453 = vmatmul.mubr.bf16.gmra.mrb[0].mxu0 %v1313
  %v1454 = vpop.f32.mrb[0].mxu0
  %v1455 = vadd.f32 0.0, %v1454
  %v1456 = vpop.f32.mrb[0].mxu0
  %v1457 = vpop.f32.mrb[0].mxu0
  %v1458 = vadd.f32 0.0, %v1457
  %v1459 = vpop.f32.mrb[0].mxu0
  %1460 = vmatprep.mubr.bf16.mxu0 0
  %1461 = vmatmul.mubr.bf16.gmra.mrb[0].mxu0 %v1316
  %v1462 = vpop.f32.mrb[0].mxu0
  %v1463 = vadd.f32 0.0, %v1462
  %v1464 = vpop.f32.mrb[0].mxu0
  %v1465 = vpop.f32.mrb[0].mxu0
  %v1466 = vadd.f32 0.0, %v1465
  %v1467 = vpop.f32.mrb[0].mxu0
  %1468 = vmatprep.mubr.bf16.mxu0 0
  %1469 = vmatmul.mubr.bf16.gmra.mrb[0].mxu0 %v1319
  %v1470 = vpop.f32.mrb[0].mxu0
  %v1471 = vadd.f32 0.0, %v1470
  %v1472 = vpop.f32.mrb[0].mxu0
  %v1473 = vpop.f32.mrb[0].mxu0
  %v1474 = vadd.f32 0.0, %v1473
  %v1475 = vpop.f32.mrb[0].mxu0
  %1476 = vmatprep.mubr.bf16.mxu0 0
  %1477 = vmatmul.mubr.bf16.gmra.mrb[0].mxu0 %v1322
  %v1478 = vpop.f32.mrb[0].mxu0
  %v1479 = vadd.f32 0.0, %v1478
  %v1480 = vpop.f32.mrb[0].mxu0
  %v1481 = vpop.f32.mrb[0].mxu0
  %v1482 = vadd.f32 0.0, %v1481
  %v1483 = vpop.f32.mrb[0].mxu0
  %1484 = vmatprep.mubr.bf16.mxu0 0
  %1485 = vmatmul.mubr.bf16.gmra.mrb[0].mxu0 %v1325
  %v1486 = vpop.f32.mrb[0].mxu0
  %v1487 = vadd.f32 0.0, %v1486
  %v1488 = vpop.f32.mrb[0].mxu0
  %v1489 = vpop.f32.mrb[0].mxu0
  %v1490 = vadd.f32 0.0, %v1489
  %v1491 = vpop.f32.mrb[0].mxu0
  %1492 = vmatprep.mubr.bf16.mxu0 0
  %1493 = vmatmul.mubr.bf16.gmra.mrb[0].mxu0 %v1328
  %v1494 = vpop.f32.mrb[0].mxu0
  %v1495 = vadd.f32 0.0, %v1494
  %v1496 = vpop.f32.mrb[0].mxu0
  %v1497 = vpop.f32.mrb[0].mxu0
  %v1498 = vadd.f32 0.0, %v1497
  %v1499 = vpop.f32.mrb[0].mxu0
  %1500 = vmatprep.mubr.bf16.mxu0 0
  %1501 = vmatmul.mubr.bf16.gmra.mrb[0].mxu0 %v1331
  %v1502 = vpop.f32.mrb[0].mxu0
  %v1503 = vadd.f32 0.0, %v1502
  %v1504 = vpop.f32.mrb[0].mxu0
  %v1505 = vpop.f32.mrb[0].mxu0
  %v1506 = vadd.f32 0.0, %v1505
  %v1507 = vpop.f32.mrb[0].mxu0
  %1508 = vmatprep.mubr.bf16.mxu0 0
  %1509 = vmatmul.mubr.bf16.gmra.mrb[0].mxu0 %v1334
  %v1510 = vpop.f32.mrb[0].mxu0
  %v1511 = vadd.f32 0.0, %v1510
  %v1512 = vpop.f32.mrb[0].mxu0
  %v1513 = vpop.f32.mrb[0].mxu0
  %v1514 = vadd.f32 0.0, %v1513
  %v1515 = vpop.f32.mrb[0].mxu0
  %1516 = vmatprep.mubr.bf16.mxu0 0
  %1517 = vmatmul.mubr.bf16.gmra.mrb[0].mxu0 %v1337
  %v1518 = vpop.f32.mrb[0].mxu0
  %v1519 = vadd.f32 0.0, %v1518
  %v1520 = vpop.f32.mrb[0].mxu0
  %v1521 = vpop.f32.mrb[0].mxu0
  %v1522 = vadd.f32 0.0, %v1521
  %v1523 = vpop.f32.mrb[0].mxu0
  %1524 = vmatprep.mubr.bf16.mxu0 0
  %1525 = vmatmul.mubr.bf16.gmra.mrb[0].mxu0 %v1340
  %v1526 = vpop.f32.mrb[0].mxu0
  %v1527 = vadd.f32 0.0, %v1526
  %v1528 = vpop.f32.mrb[0].mxu0
  %v1529 = vpop.f32.mrb[0].mxu0
  %v1530 = vadd.f32 0.0, %v1529
  %v1531 = vpop.f32.mrb[0].mxu0
  %1532 = vmatprep.mubr.bf16.mxu0 0
  %1533 = vmatmul.mubr.bf16.gmra.mrb[0].mxu0 %v1343
  %v1534 = vpop.f32.mrb[0].mxu0
  %v1535 = vadd.f32 0.0, %v1534
  %v1536 = vpop.f32.mrb[0].mxu0
  %v1537 = vpop.f32.mrb[0].mxu0
  %v1538 = vadd.f32 0.0, %v1537
  %v1539 = vpop.f32.mrb[0].mxu0
  %1540 = vmatprep.mubr.bf16.mxu0 0
  %1541 = vmatmul.mubr.bf16.gmra.mrb[0].mxu0 %v1346
  %v1542 = vpop.f32.mrb[0].mxu0
  %v1543 = vadd.f32 0.0, %v1542
  %v1544 = vpop.f32.mrb[0].mxu0
  %v1545 = vpop.f32.mrb[0].mxu0
  %v1546 = vadd.f32 0.0, %v1545
  %v1547 = vpop.f32.mrb[0].mxu0
  %1548 = vmatprep.mubr.bf16.mxu0 0
  %1549 = vmatmul.mubr.bf16.gmra.mrb[0].mxu0 %v1349
  %v1550 = vpop.f32.mrb[0].mxu0
  %v1551 = vadd.f32 0.0, %v1550
  %v1552 = vpop.f32.mrb[0].mxu0
  %v1553 = vpop.f32.mrb[0].mxu0
  %v1554 = vadd.f32 0.0, %v1553
  %v1555 = vpop.f32.mrb[0].mxu0
  %1556 = vmatprep.mubr.bf16.mxu0 0
  %1557 = vmatmul.mubr.bf16.gmra.mrb[0].mxu0 %v1352
  %v1558 = vpop.f32.mrb[0].mxu0
  %v1559 = vadd.f32 0.0, %v1558
  %v1560 = vpop.f32.mrb[0].mxu0
  %v1561 = vpop.f32.mrb[0].mxu0
  %v1562 = vadd.f32 0.0, %v1561
  %v1563 = vpop.f32.mrb[0].mxu0
  %1564 = vmatprep.mubr.bf16.mxu0 0
  %1565 = vmatmul.mubr.bf16.gmra.mrb[0].mxu0 %v1355
  %v1566 = vpop.f32.mrb[0].mxu0
  %v1567 = vadd.f32 0.0, %v1566
  %v1568 = vpop.f32.mrb[0].mxu0
  %v1569 = vpop.f32.mrb[0].mxu0
  %v1570 = vadd.f32 0.0, %v1569
  %v1571 = vpop.f32.mrb[0].mxu0
  %1572 = vmatprep.mubr.bf16.mxu0 0
  %1573 = vmatmul.mubr.bf16.gmra.mrb[0].mxu0 %v1358
  %v1574 = vpop.f32.mrb[0].mxu0
  %v1575 = vadd.f32 0.0, %v1574
  %v1576 = vpop.f32.mrb[0].mxu0
  %v1577 = vpop.f32.mrb[0].mxu0
  %v1578 = vadd.f32 0.0, %v1577
  %v1579 = vpop.f32.mrb[0].mxu0
  %1580 = vmatprep.mubr.bf16.mxu0 0
  %1581 = vmatmul.mubr.bf16.gmra.mrb[0].mxu0 %v1361
  %v1582 = vpop.f32.mrb[0].mxu0
  %v1583 = vadd.f32 0.0, %v1582
  %v1584 = vpop.f32.mrb[0].mxu0
  %v1585 = vpop.f32.mrb[0].mxu0
  %v1586 = vadd.f32 0.0, %v1585
  %v1587 = vpop.f32.mrb[0].mxu0
  %1588 = vmatprep.mubr.bf16.mxu0 0
  %1589 = vmatmul.mubr.bf16.gmra.mrb[0].mxu0 %v1364
  %v1590 = vpop.f32.mrb[0].mxu0
  %v1591 = vadd.f32 0.0, %v1590
  %v1592 = vpop.f32.mrb[0].mxu0
  %v1593 = vpop.f32.mrb[0].mxu0
  %v1594 = vadd.f32 0.0, %v1593
  %v1595 = vpop.f32.mrb[0].mxu0
  %1596 = vmatprep.mubr.bf16.mxu0 0
  %1597 = vmatmul.mubr.bf16.gmra.mrb[0].mxu0 %v1367
  %v1598 = vpop.f32.mrb[0].mxu0
  %v1599 = vadd.f32 0.0, %v1598
  %v1600 = vpop.f32.mrb[0].mxu0
  %v1601 = vpop.f32.mrb[0].mxu0
  %v1602 = vadd.f32 0.0, %v1601
  %v1603 = vpop.f32.mrb[0].mxu0
  %1604 = vmatprep.mubr.bf16.mxu0 0
  %1605 = vmatmul.mubr.bf16.gmra.mrb[0].mxu0 %v1370
  %v1606 = vpop.f32.mrb[0].mxu0
  %v1607 = vadd.f32 0.0, %v1606
  %v1608 = vpop.f32.mrb[0].mxu0
  %v1609 = vpop.f32.mrb[0].mxu0
  %v1610 = vadd.f32 0.0, %v1609
  %v1611 = vpop.f32.mrb[0].mxu0
  %1612 = vdwg.mxu0
  %v1613 = vmax.f32 %v1059, %v1407
  %v1614 = vmax.f32 %v1060, %v1410
  %v1615 = vmax.f32 %v1061, %v1415
  %v1616 = vmax.f32 %v1062, %v1418
  %v1617 = vmax.f32 %v1063, %v1423
  %v1618 = vmax.f32 %v1064, %v1426
  %v1619 = vmax.f32 %v1065, %v1431
  %v1620 = vmax.f32 %v1066, %v1434
  %v1621 = vmax.f32 %v1067, %v1439
  %v1622 = vmax.f32 %v1068, %v1442
  %v1623 = vmax.f32 %v1069, %v1447
  %v1624 = vmax.f32 %v1070, %v1450
  %v1625 = vmax.f32 %v1071, %v1455
  %v1626 = vmax.f32 %v1072, %v1458
  %v1627 = vmax.f32 %v1073, %v1463
  %v1628 = vmax.f32 %v1074, %v1466
  %v1629 = vmax.f32 %v1075, %v1471
  %v1630 = vmax.f32 %v1076, %v1474
  %v1631 = vmax.f32 %v1077, %v1479
  %v1632 = vmax.f32 %v1078, %v1482
  %v1633 = vmax.f32 %v1079, %v1487
  %v1634 = vmax.f32 %v1080, %v1490
  %v1635 = vmax.f32 %v1081, %v1495
  %v1636 = vmax.f32 %v1082, %v1498
  %v1637 = vmax.f32 %v1083, %v1503
  %v1638 = vmax.f32 %v1084, %v1506
  %v1639 = vmax.f32 %v1085, %v1511
  %v1640 = vmax.f32 %v1086, %v1514
  %v1641 = vmax.f32 %v1087, %v1519
  %v1642 = vmax.f32 %v1088, %v1522
  %v1643 = vmax.f32 %v1089, %v1527
  %v1644 = vmax.f32 %v1090, %v1530
  %v1645 = vmax.f32 %v1091, %v1535
  %v1646 = vmax.f32 %v1092, %v1538
  %v1647 = vmax.f32 %v1093, %v1543
  %v1648 = vmax.f32 %v1094, %v1546
  %v1649 = vmax.f32 %v1095, %v1551
  %v1650 = vmax.f32 %v1096, %v1554
  %v1651 = vmax.f32 %v1097, %v1559
  %v1652 = vmax.f32 %v1098, %v1562
  %v1653 = vmax.f32 %v1099, %v1567
  %v1654 = vmax.f32 %v1100, %v1570
  %v1655 = vmax.f32 %v1101, %v1575
  %v1656 = vmax.f32 %v1102, %v1578
  %v1657 = vmax.f32 %v1103, %v1583
  %v1658 = vmax.f32 %v1104, %v1586
  %v1659 = vmax.f32 %v1105, %v1591
  %v1660 = vmax.f32 %v1106, %v1594
  %v1661 = vmax.f32 %v1107, %v1599
  %v1662 = vmax.f32 %v1108, %v1602
  %v1663 = vmax.f32 %v1109, %v1607
  %v1664 = vmax.f32 %v1110, %v1610
  %s1665 = scalar_lea.vmem %s0, 624
  %v1666 = vld [vmem:[%s1665] sm:$0xf]
  %v1667 = vld [vmem:[%s1665 + $0x4] sm:$0xf]
  %v1668 = vld [vmem:[%s1665 + $0x8] sm:$0xf]
  %v1669 = vld [vmem:[%s1665 + $0xc] sm:$0xf]
  %v1670 = vld [vmem:[%s1665 + $0x10] sm:$0xf]
  %v1671 = vld [vmem:[%s1665 + $0x14] sm:$0xf]
  %v1672 = vld [vmem:[%s1665 + $0x18] sm:$0xf]
  %v1673 = vld [vmem:[%s1665 + $0x1c] sm:$0xf]
  %v1674 = vld [vmem:[%s1665 + $0x20] sm:$0xf]
  %v1675 = vld [vmem:[%s1665 + $0x24] sm:$0xf]
  %v1676 = vld [vmem:[%s1665 + $0x28] sm:$0xf]
  %v1677 = vld [vmem:[%s1665 + $0x2c] sm:$0xf]
  %v1678 = vld [vmem:[%s1665 + $0x30] sm:$0xf]
  %v1679 = vld [vmem:[%s1665 + $0x34] sm:$0xf]
  %v1680 = vld [vmem:[%s1665 + $0x38] sm:$0xf]
  %v1681 = vld [vmem:[%s1665 + $0x3c] sm:$0xf]
  %v1682 = vld [vmem:[%s1665 + $0x40] sm:$0xf]
  %v1683 = vld [vmem:[%s1665 + $0x44] sm:$0xf]
  %v1684 = vld [vmem:[%s1665 + $0x48] sm:$0xf]
  %v1685 = vld [vmem:[%s1665 + $0x4c] sm:$0xf]
  %v1686 = vld [vmem:[%s1665 + $0x50] sm:$0xf]
  %v1687 = vld [vmem:[%s1665 + $0x54] sm:$0xf]
  %v1688 = vld [vmem:[%s1665 + $0x58] sm:$0xf]
  %v1689 = vld [vmem:[%s1665 + $0x5c] sm:$0xf]
  %v1690 = vld [vmem:[%s1665 + $0x60] sm:$0xf]
  %v1691 = vld [vmem:[%s1665 + $0x64] sm:$0xf]
  %v1692 = vld [vmem:[%s1665 + $0x68] sm:$0xf]
  %v1693 = vld [vmem:[%s1665 + $0x6c] sm:$0xf]
  %v1694 = vld [vmem:[%s1665 + $0x70] sm:$0xf]
  %v1695 = vld [vmem:[%s1665 + $0x74] sm:$0xf]
  %v1696 = vld [vmem:[%s1665 + $0x78] sm:$0xf]
  %v1697 = vld [vmem:[%s1665 + $0x7c] sm:$0xf]
  %v1698 = vld [vmem:[%s1665 + $0x80] sm:$0xf]
  %v1699 = vld [vmem:[%s1665 + $0x84] sm:$0xf]
  %v1700 = vld [vmem:[%s1665 + $0x88] sm:$0xf]
  %v1701 = vld [vmem:[%s1665 + $0x8c] sm:$0xf]
  %v1702 = vld [vmem:[%s1665 + $0x90] sm:$0xf]
  %v1703 = vld [vmem:[%s1665 + $0x94] sm:$0xf]
  %v1704 = vld [vmem:[%s1665 + $0x98] sm:$0xf]
  %v1705 = vld [vmem:[%s1665 + $0x9c] sm:$0xf]
  %v1706 = vld [vmem:[%s1665 + $0xa0] sm:$0xf]
  %v1707 = vld [vmem:[%s1665 + $0xa4] sm:$0xf]
  %v1708 = vld [vmem:[%s1665 + $0xa8] sm:$0xf]
  %v1709 = vld [vmem:[%s1665 + $0xac] sm:$0xf]
  %v1710 = vld [vmem:[%s1665 + $0xb0] sm:$0xf]
  %v1711 = vld [vmem:[%s1665 + $0xb4] sm:$0xf]
  %v1712 = vld [vmem:[%s1665 + $0xb8] sm:$0xf]
  %v1713 = vld [vmem:[%s1665 + $0xbc] sm:$0xf]
  %v1714 = vld [vmem:[%s1665 + $0xc0] sm:$0xf]
  %v1715 = vld [vmem:[%s1665 + $0xc4] sm:$0xf]
  %v1716 = vld [vmem:[%s1665 + $0xc8] sm:$0xf]
  %v1717 = vld [vmem:[%s1665 + $0xcc] sm:$0xf]
  %v1770 = vunpack.c.l.b16 %v1666
  %v1771 = vunpack.c.l.b16 %v1667
  %v1772 = vunpack.c.l.b16 %v1668
  %v1773 = vunpack.c.l.b16 %v1669
  %v1774 = vunpack.c.l.b16 %v1670
  %v1775 = vunpack.c.l.b16 %v1671
  %v1776 = vunpack.c.l.b16 %v1672
  %v1777 = vunpack.c.l.b16 %v1673
  %v1778 = vunpack.c.l.b16 %v1674
  %v1779 = vunpack.c.l.b16 %v1675
  %v1780 = vunpack.c.l.b16 %v1676
  %v1781 = vunpack.c.l.b16 %v1677
  %v1782 = vunpack.c.l.b16 %v1678
  %v1783 = vunpack.c.l.b16 %v1679
  %v1784 = vunpack.c.l.b16 %v1680
  %v1785 = vunpack.c.l.b16 %v1681
  %v1786 = vunpack.c.l.b16 %v1682
  %v1787 = vunpack.c.l.b16 %v1683
  %v1788 = vunpack.c.l.b16 %v1684
  %v1789 = vunpack.c.l.b16 %v1685
  %v1790 = vunpack.c.l.b16 %v1686
  %v1791 = vunpack.c.l.b16 %v1687
  %v1792 = vunpack.c.l.b16 %v1688
  %v1793 = vunpack.c.l.b16 %v1689
  %v1794 = vunpack.c.l.b16 %v1690
  %v1795 = vunpack.c.l.b16 %v1691
  %v1796 = vunpack.c.l.b16 %v1692
  %v1797 = vunpack.c.l.b16 %v1693
  %v1798 = vunpack.c.l.b16 %v1694
  %v1799 = vunpack.c.l.b16 %v1695
  %v1800 = vunpack.c.l.b16 %v1696
  %v1801 = vunpack.c.l.b16 %v1697
  %v1802 = vunpack.c.l.b16 %v1698
  %v1803 = vunpack.c.l.b16 %v1699
  %v1804 = vunpack.c.l.b16 %v1700
  %v1805 = vunpack.c.l.b16 %v1701
  %v1806 = vunpack.c.l.b16 %v1702
  %v1807 = vunpack.c.l.b16 %v1703
  %v1808 = vunpack.c.l.b16 %v1704
  %v1809 = vunpack.c.l.b16 %v1705
  %v1810 = vunpack.c.l.b16 %v1706
  %v1811 = vunpack.c.l.b16 %v1707
  %v1812 = vunpack.c.l.b16 %v1708
  %v1813 = vunpack.c.l.b16 %v1709
  %v1814 = vunpack.c.l.b16 %v1710
  %v1815 = vunpack.c.l.b16 %v1711
  %v1816 = vunpack.c.l.b16 %v1712
  %v1817 = vunpack.c.l.b16 %v1713
  %v1818 = vunpack.c.l.b16 %v1714
  %v1819 = vunpack.c.l.b16 %v1715
  %v1820 = vunpack.c.l.b16 %v1716
  %v1821 = vunpack.c.l.b16 %v1717
  %v1822 = vpack.c.b16 %v1771, %v1770
  %v1823 = vpack.c.b16 %v1773, %v1772
  %v1824 = vpack.c.b16 %v1775, %v1774
  %v1825 = vpack.c.b16 %v1777, %v1776
  %v1826 = vpack.c.b16 %v1779, %v1778
  %v1827 = vpack.c.b16 %v1781, %v1780
  %v1828 = vpack.c.b16 %v1783, %v1782
  %v1829 = vpack.c.b16 %v1785, %v1784
  %v1830 = vpack.c.b16 %v1787, %v1786
  %v1831 = vpack.c.b16 %v1789, %v1788
  %v1832 = vpack.c.b16 %v1791, %v1790
  %v1833 = vpack.c.b16 %v1793, %v1792
  %v1834 = vpack.c.b16 %v1795, %v1794
  %v1835 = vpack.c.b16 %v1797, %v1796
  %v1836 = vpack.c.b16 %v1799, %v1798
  %v1837 = vpack.c.b16 %v1801, %v1800
  %v1838 = vpack.c.b16 %v1803, %v1802
  %v1839 = vpack.c.b16 %v1805, %v1804
  %v1840 = vpack.c.b16 %v1807, %v1806
  %v1841 = vpack.c.b16 %v1809, %v1808
  %v1842 = vpack.c.b16 %v1811, %v1810
  %v1843 = vpack.c.b16 %v1813, %v1812
  %v1844 = vpack.c.b16 %v1815, %v1814
  %v1845 = vpack.c.b16 %v1817, %v1816
  %v1846 = vpack.c.b16 %v1819, %v1818
  %v1847 = vpack.c.b16 %v1821, %v1820
  %v1849 = vsel %vm237, %v1822, 0
  %v1852 = vsel %vm237, %v1823, 0
  %v1855 = vsel %vm237, %v1824, 0
  %v1858 = vsel %vm237, %v1825, 0
  %v1861 = vsel %vm237, %v1826, 0
  %v1864 = vsel %vm237, %v1827, 0
  %v1867 = vsel %vm237, %v1828, 0
  %v1870 = vsel %vm237, %v1829, 0
  %v1873 = vsel %vm237, %v1830, 0
  %v1876 = vsel %vm237, %v1831, 0
  %v1879 = vsel %vm237, %v1832, 0
  %v1882 = vsel %vm237, %v1833, 0
  %v1885 = vsel %vm237, %v1834, 0
  %v1888 = vsel %vm237, %v1835, 0
  %v1891 = vsel %vm237, %v1836, 0
  %v1894 = vsel %vm237, %v1837, 0
  %v1897 = vsel %vm237, %v1838, 0
  %v1900 = vsel %vm237, %v1839, 0
  %v1903 = vsel %vm237, %v1840, 0
  %v1906 = vsel %vm237, %v1841, 0
  %v1909 = vsel %vm237, %v1842, 0
  %v1912 = vsel %vm237, %v1843, 0
  %v1915 = vsel %vm237, %v1844, 0
  %v1918 = vsel %vm237, %v1845, 0
  %v1921 = vsel %vm237, %v1846, 0
  %v1924 = vsel %vm237, %v1847, 0
  %1926 = vmatprep.subr.bf16.mxu0 0
  %1927 = vmatpush1.bf16.msra.mxu0 %v227
  %1928 = vmatprep.subr.bf16.mxu0 0
  %1929 = vmatpush1.bf16.msra.mxu0 %v228
  %1930 = vmatprep.subr.bf16.mxu0 0
  %1931 = vmatpush1.bf16.msra.mxu0 %v229
  %1932 = vmatprep.subr.bf16.mxu0 0
  %1933 = vmatpush1.bf16.msra.mxu0 %v230
  %1934 = vmatprep.subr.bf16.mxu0 0
  %1935 = vmatpush1.bf16.msra.mxu0 %v231
  %1936 = vmatprep.subr.bf16.mxu0 0
  %1937 = vmatpush1.bf16.msra.mxu0 0
  %1938 = vmatprep.subr.bf16.mxu0 0
  %1939 = vmatpush1.bf16.msra.mxu0 0
  %1940 = vmatprep.subr.bf16.mxu0 0
  %1941 = vmatpush1.bf16.msra.mxu0 0
  %1942 = vmatprep.subr.bf16.mxu0 0
  %1943 = vmatpush1.bf16.msra.mxu0 0
  %1944 = vmatprep.subr.bf16.mxu0 0
  %1945 = vmatpush1.bf16.msra.mxu0 0
  %1946 = vmatprep.subr.bf16.mxu0 0
  %1947 = vmatpush1.bf16.msra.mxu0 0
  %1948 = vmatprep.subr.bf16.mxu0 0
  %1949 = vmatpush1.bf16.msra.mxu0 0
  %1950 = vmatprep.subr.bf16.mxu0 0
  %1951 = vmatpush1.bf16.msra.mxu0 0
  %1952 = vmatprep.subr.bf16.mxu0 0
  %1953 = vmatpush1.bf16.msra.mxu0 0
  %1954 = vmatprep.subr.bf16.mxu0 0
  %1955 = vmatpush1.bf16.msra.mxu0 0
  %1956 = vmatprep.subr.bf16.mxu0 0
  %1957 = vmatpush1.bf16.msra.mxu0 0
  %1958 = vmatprep.mubr.bf16.mxu0 0
  %1959 = vmatmul.mubr.bf16.gmra.mrb[0].mxu0 %v1849
  %v1960 = vpop.f32.mrb[0].mxu0
  %v1961 = vadd.f32 0.0, %v1960
  %v1962 = vpop.f32.mrb[0].mxu0
  %v1963 = vpop.f32.mrb[0].mxu0
  %v1964 = vadd.f32 0.0, %v1963
  %v1965 = vpop.f32.mrb[0].mxu0
  %1966 = vmatprep.mubr.bf16.mxu0 0
  %1967 = vmatmul.mubr.bf16.gmra.mrb[0].mxu0 %v1852
  %v1968 = vpop.f32.mrb[0].mxu0
  %v1969 = vadd.f32 0.0, %v1968
  %v1970 = vpop.f32.mrb[0].mxu0
  %v1971 = vpop.f32.mrb[0].mxu0
  %v1972 = vadd.f32 0.0, %v1971
  %v1973 = vpop.f32.mrb[0].mxu0
  %1974 = vmatprep.mubr.bf16.mxu0 0
  %1975 = vmatmul.mubr.bf16.gmra.mrb[0].mxu0 %v1855
  %v1976 = vpop.f32.mrb[0].mxu0
  %v1977 = vadd.f32 0.0, %v1976
  %v1978 = vpop.f32.mrb[0].mxu0
  %v1979 = vpop.f32.mrb[0].mxu0
  %v1980 = vadd.f32 0.0, %v1979
  %v1981 = vpop.f32.mrb[0].mxu0
  %1982 = vmatprep.mubr.bf16.mxu0 0
  %1983 = vmatmul.mubr.bf16.gmra.mrb[0].mxu0 %v1858
  %v1984 = vpop.f32.mrb[0].mxu0
  %v1985 = vadd.f32 0.0, %v1984
  %v1986 = vpop.f32.mrb[0].mxu0
  %v1987 = vpop.f32.mrb[0].mxu0
  %v1988 = vadd.f32 0.0, %v1987
  %v1989 = vpop.f32.mrb[0].mxu0
  %1990 = vmatprep.mubr.bf16.mxu0 0
  %1991 = vmatmul.mubr.bf16.gmra.mrb[0].mxu0 %v1861
  %v1992 = vpop.f32.mrb[0].mxu0
  %v1993 = vadd.f32 0.0, %v1992
  %v1994 = vpop.f32.mrb[0].mxu0
  %v1995 = vpop.f32.mrb[0].mxu0
  %v1996 = vadd.f32 0.0, %v1995
  %v1997 = vpop.f32.mrb[0].mxu0
  %1998 = vmatprep.mubr.bf16.mxu0 0
  %1999 = vmatmul.mubr.bf16.gmra.mrb[0].mxu0 %v1864
  %v2000 = vpop.f32.mrb[0].mxu0
  %v2001 = vadd.f32 0.0, %v2000
  %v2002 = vpop.f32.mrb[0].mxu0
  %v2003 = vpop.f32.mrb[0].mxu0
  %v2004 = vadd.f32 0.0, %v2003
  %v2005 = vpop.f32.mrb[0].mxu0
  %2006 = vmatprep.mubr.bf16.mxu0 0
  %2007 = vmatmul.mubr.bf16.gmra.mrb[0].mxu0 %v1867
  %v2008 = vpop.f32.mrb[0].mxu0
  %v2009 = vadd.f32 0.0, %v2008
  %v2010 = vpop.f32.mrb[0].mxu0
  %v2011 = vpop.f32.mrb[0].mxu0
  %v2012 = vadd.f32 0.0, %v2011
  %v2013 = vpop.f32.mrb[0].mxu0
  %2014 = vmatprep.mubr.bf16.mxu0 0
  %2015 = vmatmul.mubr.bf16.gmra.mrb[0].mxu0 %v1870
  %v2016 = vpop.f32.mrb[0].mxu0
  %v2017 = vadd.f32 0.0, %v2016
  %v2018 = vpop.f32.mrb[0].mxu0
  %v2019 = vpop.f32.mrb[0].mxu0
  %v2020 = vadd.f32 0.0, %v2019
  %v2021 = vpop.f32.mrb[0].mxu0
  %2022 = vmatprep.mubr.bf16.mxu0 0
  %2023 = vmatmul.mubr.bf16.gmra.mrb[0].mxu0 %v1873
  %v2024 = vpop.f32.mrb[0].mxu0
  %v2025 = vadd.f32 0.0, %v2024
  %v2026 = vpop.f32.mrb[0].mxu0
  %v2027 = vpop.f32.mrb[0].mxu0
  %v2028 = vadd.f32 0.0, %v2027
  %v2029 = vpop.f32.mrb[0].mxu0
  %2030 = vmatprep.mubr.bf16.mxu0 0
  %2031 = vmatmul.mubr.bf16.gmra.mrb[0].mxu0 %v1876
  %v2032 = vpop.f32.mrb[0].mxu0
  %v2033 = vadd.f32 0.0, %v2032
  %v2034 = vpop.f32.mrb[0].mxu0
  %v2035 = vpop.f32.mrb[0].mxu0
  %v2036 = vadd.f32 0.0, %v2035
  %v2037 = vpop.f32.mrb[0].mxu0
  %2038 = vmatprep.mubr.bf16.mxu0 0
  %2039 = vmatmul.mubr.bf16.gmra.mrb[0].mxu0 %v1879
  %v2040 = vpop.f32.mrb[0].mxu0
  %v2041 = vadd.f32 0.0, %v2040
  %v2042 = vpop.f32.mrb[0].mxu0
  %v2043 = vpop.f32.mrb[0].mxu0
  %v2044 = vadd.f32 0.0, %v2043
  %v2045 = vpop.f32.mrb[0].mxu0
  %2046 = vmatprep.mubr.bf16.mxu0 0
  %2047 = vmatmul.mubr.bf16.gmra.mrb[0].mxu0 %v1882
  %v2048 = vpop.f32.mrb[0].mxu0
  %v2049 = vadd.f32 0.0, %v2048
  %v2050 = vpop.f32.mrb[0].mxu0
  %v2051 = vpop.f32.mrb[0].mxu0
  %v2052 = vadd.f32 0.0, %v2051
  %v2053 = vpop.f32.mrb[0].mxu0
  %2054 = vmatprep.mubr.bf16.mxu0 0
  %2055 = vmatmul.mubr.bf16.gmra.mrb[0].mxu0 %v1885
  %v2056 = vpop.f32.mrb[0].mxu0
  %v2057 = vadd.f32 0.0, %v2056
  %v2058 = vpop.f32.mrb[0].mxu0
  %v2059 = vpop.f32.mrb[0].mxu0
  %v2060 = vadd.f32 0.0, %v2059
  %v2061 = vpop.f32.mrb[0].mxu0
  %2062 = vmatprep.mubr.bf16.mxu0 0
  %2063 = vmatmul.mubr.bf16.gmra.mrb[0].mxu0 %v1888
  %v2064 = vpop.f32.mrb[0].mxu0
  %v2065 = vadd.f32 0.0, %v2064
  %v2066 = vpop.f32.mrb[0].mxu0
  %v2067 = vpop.f32.mrb[0].mxu0
  %v2068 = vadd.f32 0.0, %v2067
  %v2069 = vpop.f32.mrb[0].mxu0
  %2070 = vmatprep.mubr.bf16.mxu0 0
  %2071 = vmatmul.mubr.bf16.gmra.mrb[0].mxu0 %v1891
  %v2072 = vpop.f32.mrb[0].mxu0
  %v2073 = vadd.f32 0.0, %v2072
  %v2074 = vpop.f32.mrb[0].mxu0
  %v2075 = vpop.f32.mrb[0].mxu0
  %v2076 = vadd.f32 0.0, %v2075
  %v2077 = vpop.f32.mrb[0].mxu0
  %2078 = vmatprep.mubr.bf16.mxu0 0
  %2079 = vmatmul.mubr.bf16.gmra.mrb[0].mxu0 %v1894
  %v2080 = vpop.f32.mrb[0].mxu0
  %v2081 = vadd.f32 0.0, %v2080
  %v2082 = vpop.f32.mrb[0].mxu0
  %v2083 = vpop.f32.mrb[0].mxu0
  %v2084 = vadd.f32 0.0, %v2083
  %v2085 = vpop.f32.mrb[0].mxu0
  %2086 = vmatprep.mubr.bf16.mxu0 0
  %2087 = vmatmul.mubr.bf16.gmra.mrb[0].mxu0 %v1897
  %v2088 = vpop.f32.mrb[0].mxu0
  %v2089 = vadd.f32 0.0, %v2088
  %v2090 = vpop.f32.mrb[0].mxu0
  %v2091 = vpop.f32.mrb[0].mxu0
  %v2092 = vadd.f32 0.0, %v2091
  %v2093 = vpop.f32.mrb[0].mxu0
  %2094 = vmatprep.mubr.bf16.mxu0 0
  %2095 = vmatmul.mubr.bf16.gmra.mrb[0].mxu0 %v1900
  %v2096 = vpop.f32.mrb[0].mxu0
  %v2097 = vadd.f32 0.0, %v2096
  %v2098 = vpop.f32.mrb[0].mxu0
  %v2099 = vpop.f32.mrb[0].mxu0
  %v2100 = vadd.f32 0.0, %v2099
  %v2101 = vpop.f32.mrb[0].mxu0
  %2102 = vmatprep.mubr.bf16.mxu0 0
  %2103 = vmatmul.mubr.bf16.gmra.mrb[0].mxu0 %v1903
  %v2104 = vpop.f32.mrb[0].mxu0
  %v2105 = vadd.f32 0.0, %v2104
  %v2106 = vpop.f32.mrb[0].mxu0
  %v2107 = vpop.f32.mrb[0].mxu0
  %v2108 = vadd.f32 0.0, %v2107
  %v2109 = vpop.f32.mrb[0].mxu0
  %2110 = vmatprep.mubr.bf16.mxu0 0
  %2111 = vmatmul.mubr.bf16.gmra.mrb[0].mxu0 %v1906
  %v2112 = vpop.f32.mrb[0].mxu0
  %v2113 = vadd.f32 0.0, %v2112
  %v2114 = vpop.f32.mrb[0].mxu0
  %v2115 = vpop.f32.mrb[0].mxu0
  %v2116 = vadd.f32 0.0, %v2115
  %v2117 = vpop.f32.mrb[0].mxu0
  %2118 = vmatprep.mubr.bf16.mxu0 0
  %2119 = vmatmul.mubr.bf16.gmra.mrb[0].mxu0 %v1909
  %v2120 = vpop.f32.mrb[0].mxu0
  %v2121 = vadd.f32 0.0, %v2120
  %v2122 = vpop.f32.mrb[0].mxu0
  %v2123 = vpop.f32.mrb[0].mxu0
  %v2124 = vadd.f32 0.0, %v2123
  %v2125 = vpop.f32.mrb[0].mxu0
  %2126 = vmatprep.mubr.bf16.mxu0 0
  %2127 = vmatmul.mubr.bf16.gmra.mrb[0].mxu0 %v1912
  %v2128 = vpop.f32.mrb[0].mxu0
  %v2129 = vadd.f32 0.0, %v2128
  %v2130 = vpop.f32.mrb[0].mxu0
  %v2131 = vpop.f32.mrb[0].mxu0
  %v2132 = vadd.f32 0.0, %v2131
  %v2133 = vpop.f32.mrb[0].mxu0
  %2134 = vmatprep.mubr.bf16.mxu0 0
  %2135 = vmatmul.mubr.bf16.gmra.mrb[0].mxu0 %v1915
  %v2136 = vpop.f32.mrb[0].mxu0
  %v2137 = vadd.f32 0.0, %v2136
  %v2138 = vpop.f32.mrb[0].mxu0
  %v2139 = vpop.f32.mrb[0].mxu0
  %v2140 = vadd.f32 0.0, %v2139
  %v2141 = vpop.f32.mrb[0].mxu0
  %2142 = vmatprep.mubr.bf16.mxu0 0
  %2143 = vmatmul.mubr.bf16.gmra.mrb[0].mxu0 %v1918
  %v2144 = vpop.f32.mrb[0].mxu0
  %v2145 = vadd.f32 0.0, %v2144
  %v2146 = vpop.f32.mrb[0].mxu0
  %v2147 = vpop.f32.mrb[0].mxu0
  %v2148 = vadd.f32 0.0, %v2147
  %v2149 = vpop.f32.mrb[0].mxu0
  %2150 = vmatprep.mubr.bf16.mxu0 0
  %2151 = vmatmul.mubr.bf16.gmra.mrb[0].mxu0 %v1921
  %v2152 = vpop.f32.mrb[0].mxu0
  %v2153 = vadd.f32 0.0, %v2152
  %v2154 = vpop.f32.mrb[0].mxu0
  %v2155 = vpop.f32.mrb[0].mxu0
  %v2156 = vadd.f32 0.0, %v2155
  %v2157 = vpop.f32.mrb[0].mxu0
  %2158 = vmatprep.mubr.bf16.mxu0 0
  %2159 = vmatmul.mubr.bf16.gmra.mrb[0].mxu0 %v1924
  %v2160 = vpop.f32.mrb[0].mxu0
  %v2161 = vadd.f32 0.0, %v2160
  %v2162 = vpop.f32.mrb[0].mxu0
  %v2163 = vpop.f32.mrb[0].mxu0
  %v2164 = vadd.f32 0.0, %v2163
  %v2165 = vpop.f32.mrb[0].mxu0
  %2166 = vdwg.mxu0
  %v2167 = vmax.f32 %v1613, %v1961
  %v2168 = vmax.f32 %v1614, %v1964
  %v2169 = vmax.f32 %v1615, %v1969
  %v2170 = vmax.f32 %v1616, %v1972
  %v2171 = vmax.f32 %v1617, %v1977
  %v2172 = vmax.f32 %v1618, %v1980
  %v2173 = vmax.f32 %v1619, %v1985
  %v2174 = vmax.f32 %v1620, %v1988
  %v2175 = vmax.f32 %v1621, %v1993
  %v2176 = vmax.f32 %v1622, %v1996
  %v2177 = vmax.f32 %v1623, %v2001
  %v2178 = vmax.f32 %v1624, %v2004
  %v2179 = vmax.f32 %v1625, %v2009
  %v2180 = vmax.f32 %v1626, %v2012
  %v2181 = vmax.f32 %v1627, %v2017
  %v2182 = vmax.f32 %v1628, %v2020
  %v2183 = vmax.f32 %v1629, %v2025
  %v2184 = vmax.f32 %v1630, %v2028
  %v2185 = vmax.f32 %v1631, %v2033
  %v2186 = vmax.f32 %v1632, %v2036
  %v2187 = vmax.f32 %v1633, %v2041
  %v2188 = vmax.f32 %v1634, %v2044
  %v2189 = vmax.f32 %v1635, %v2049
  %v2190 = vmax.f32 %v1636, %v2052
  %v2191 = vmax.f32 %v1637, %v2057
  %v2192 = vmax.f32 %v1638, %v2060
  %v2193 = vmax.f32 %v1639, %v2065
  %v2194 = vmax.f32 %v1640, %v2068
  %v2195 = vmax.f32 %v1641, %v2073
  %v2196 = vmax.f32 %v1642, %v2076
  %v2197 = vmax.f32 %v1643, %v2081
  %v2198 = vmax.f32 %v1644, %v2084
  %v2199 = vmax.f32 %v1645, %v2089
  %v2200 = vmax.f32 %v1646, %v2092
  %v2201 = vmax.f32 %v1647, %v2097
  %v2202 = vmax.f32 %v1648, %v2100
  %v2203 = vmax.f32 %v1649, %v2105
  %v2204 = vmax.f32 %v1650, %v2108
  %v2205 = vmax.f32 %v1651, %v2113
  %v2206 = vmax.f32 %v1652, %v2116
  %v2207 = vmax.f32 %v1653, %v2121
  %v2208 = vmax.f32 %v1654, %v2124
  %v2209 = vmax.f32 %v1655, %v2129
  %v2210 = vmax.f32 %v1656, %v2132
  %v2211 = vmax.f32 %v1657, %v2137
  %v2212 = vmax.f32 %v1658, %v2140
  %v2213 = vmax.f32 %v1659, %v2145
  %v2214 = vmax.f32 %v1660, %v2148
  %v2215 = vmax.f32 %v1661, %v2153
  %v2216 = vmax.f32 %v1662, %v2156
  %v2217 = vmax.f32 %v1663, %v2161
  %v2218 = vmax.f32 %v1664, %v2164
  %v2219 = vld [vmem:[%s2] sm:$0x1]
  %v2221 = vlaneseq
  %v2222 = vshrl.u32 %v2221, 7
  %v2223 = vsub.s32 0, %v2222
  %v2224 = vrot.slane %v2219, %v2223
  %v2226 = vadd.f32 %v2167, %v2224
  %v2227 = vadd.f32 %v2168, %v2224
  %v2228 = vadd.f32 %v2169, %v2224
  %v2229 = vadd.f32 %v2170, %v2224
  %v2230 = vadd.f32 %v2171, %v2224
  %v2231 = vadd.f32 %v2172, %v2224
  %v2232 = vadd.f32 %v2173, %v2224
  %v2233 = vadd.f32 %v2174, %v2224
  %v2234 = vadd.f32 %v2175, %v2224
  %v2235 = vadd.f32 %v2176, %v2224
  %v2236 = vadd.f32 %v2177, %v2224
  %v2237 = vadd.f32 %v2178, %v2224
  %v2238 = vadd.f32 %v2179, %v2224
  %v2239 = vadd.f32 %v2180, %v2224
  %v2240 = vadd.f32 %v2181, %v2224
  %v2241 = vadd.f32 %v2182, %v2224
  %v2242 = vadd.f32 %v2183, %v2224
  %v2243 = vadd.f32 %v2184, %v2224
  %v2244 = vadd.f32 %v2185, %v2224
  %v2245 = vadd.f32 %v2186, %v2224
  %v2246 = vadd.f32 %v2187, %v2224
  %v2247 = vadd.f32 %v2188, %v2224
  %v2248 = vadd.f32 %v2189, %v2224
  %v2249 = vadd.f32 %v2190, %v2224
  %v2250 = vadd.f32 %v2191, %v2224
  %v2251 = vadd.f32 %v2192, %v2224
  %v2252 = vadd.f32 %v2193, %v2224
  %v2253 = vadd.f32 %v2194, %v2224
  %v2254 = vadd.f32 %v2195, %v2224
  %v2255 = vadd.f32 %v2196, %v2224
  %v2256 = vadd.f32 %v2197, %v2224
  %v2257 = vadd.f32 %v2198, %v2224
  %v2258 = vadd.f32 %v2199, %v2224
  %v2259 = vadd.f32 %v2200, %v2224
  %v2260 = vadd.f32 %v2201, %v2224
  %v2261 = vadd.f32 %v2202, %v2224
  %v2262 = vadd.f32 %v2203, %v2224
  %v2263 = vadd.f32 %v2204, %v2224
  %v2264 = vadd.f32 %v2205, %v2224
  %v2265 = vadd.f32 %v2206, %v2224
  %v2266 = vadd.f32 %v2207, %v2224
  %v2267 = vadd.f32 %v2208, %v2224
  %v2268 = vadd.f32 %v2209, %v2224
  %v2269 = vadd.f32 %v2210, %v2224
  %v2270 = vadd.f32 %v2211, %v2224
  %v2271 = vadd.f32 %v2212, %v2224
  %v2272 = vadd.f32 %v2213, %v2224
  %v2273 = vadd.f32 %v2214, %v2224
  %v2274 = vadd.f32 %v2215, %v2224
  %v2275 = vadd.f32 %v2216, %v2224
  %v2276 = vadd.f32 %v2217, %v2224
  %v2277 = vadd.f32 %v2218, %v2224
  %v2278 = vmax.f32 %v2226, 0.0
  %v2279 = vmax.f32 %v2227, 0.0
  %v2280 = vmax.f32 %v2228, 0.0
  %v2281 = vmax.f32 %v2229, 0.0
  %v2282 = vmax.f32 %v2230, 0.0
  %v2283 = vmax.f32 %v2231, 0.0
  %v2284 = vmax.f32 %v2232, 0.0
  %v2285 = vmax.f32 %v2233, 0.0
  %v2286 = vmax.f32 %v2234, 0.0
  %v2287 = vmax.f32 %v2235, 0.0
  %v2288 = vmax.f32 %v2236, 0.0
  %v2289 = vmax.f32 %v2237, 0.0
  %v2290 = vmax.f32 %v2238, 0.0
  %v2291 = vmax.f32 %v2239, 0.0
  %v2292 = vmax.f32 %v2240, 0.0
  %v2293 = vmax.f32 %v2241, 0.0
  %v2294 = vmax.f32 %v2242, 0.0
  %v2295 = vmax.f32 %v2243, 0.0
  %v2296 = vmax.f32 %v2244, 0.0
  %v2297 = vmax.f32 %v2245, 0.0
  %v2298 = vmax.f32 %v2246, 0.0
  %v2299 = vmax.f32 %v2247, 0.0
  %v2300 = vmax.f32 %v2248, 0.0
  %v2301 = vmax.f32 %v2249, 0.0
  %v2302 = vmax.f32 %v2250, 0.0
  %v2303 = vmax.f32 %v2251, 0.0
  %v2304 = vmax.f32 %v2252, 0.0
  %v2305 = vmax.f32 %v2253, 0.0
  %v2306 = vmax.f32 %v2254, 0.0
  %v2307 = vmax.f32 %v2255, 0.0
  %v2308 = vmax.f32 %v2256, 0.0
  %v2309 = vmax.f32 %v2257, 0.0
  %v2310 = vmax.f32 %v2258, 0.0
  %v2311 = vmax.f32 %v2259, 0.0
  %v2312 = vmax.f32 %v2260, 0.0
  %v2313 = vmax.f32 %v2261, 0.0
  %v2314 = vmax.f32 %v2262, 0.0
  %v2315 = vmax.f32 %v2263, 0.0
  %v2316 = vmax.f32 %v2264, 0.0
  %v2317 = vmax.f32 %v2265, 0.0
  %v2318 = vmax.f32 %v2266, 0.0
  %v2319 = vmax.f32 %v2267, 0.0
  %v2320 = vmax.f32 %v2268, 0.0
  %v2321 = vmax.f32 %v2269, 0.0
  %v2322 = vmax.f32 %v2270, 0.0
  %v2323 = vmax.f32 %v2271, 0.0
  %v2324 = vmax.f32 %v2272, 0.0
  %v2325 = vmax.f32 %v2273, 0.0
  %v2326 = vmax.f32 %v2274, 0.0
  %v2327 = vmax.f32 %v2275, 0.0
  %v2328 = vmax.f32 %v2276, 0.0
  %v2329 = vmax.f32 %v2277, 0.0
  %v2330 = vpack.c.bf16 %v2279, %v2278
  %v2331 = vpack.c.bf16 %v2281, %v2280
  %v2332 = vpack.c.bf16 %v2283, %v2282
  %v2333 = vpack.c.bf16 %v2285, %v2284
  %v2334 = vpack.c.bf16 %v2287, %v2286
  %v2335 = vpack.c.bf16 %v2289, %v2288
  %v2336 = vpack.c.bf16 %v2291, %v2290
  %v2337 = vpack.c.bf16 %v2293, %v2292
  %v2338 = vpack.c.bf16 %v2295, %v2294
  %v2339 = vpack.c.bf16 %v2297, %v2296
  %v2340 = vpack.c.bf16 %v2299, %v2298
  %v2341 = vpack.c.bf16 %v2301, %v2300
  %v2342 = vpack.c.bf16 %v2303, %v2302
  %v2343 = vpack.c.bf16 %v2305, %v2304
  %v2344 = vpack.c.bf16 %v2307, %v2306
  %v2345 = vpack.c.bf16 %v2309, %v2308
  %v2346 = vpack.c.bf16 %v2311, %v2310
  %v2347 = vpack.c.bf16 %v2313, %v2312
  %v2348 = vpack.c.bf16 %v2315, %v2314
  %v2349 = vpack.c.bf16 %v2317, %v2316
  %v2350 = vpack.c.bf16 %v2319, %v2318
  %v2351 = vpack.c.bf16 %v2321, %v2320
  %v2352 = vpack.c.bf16 %v2323, %v2322
  %v2353 = vpack.c.bf16 %v2325, %v2324
  %v2354 = vpack.c.bf16 %v2327, %v2326
  %v2355 = vpack.c.bf16 %v2329, %v2328
  %v2382 = vunpack.c.l.b16 %v2330
  %v2383 = vunpack.c.h.b16 %v2330
  %v2384 = vunpack.c.l.b16 %v2331
  %v2385 = vunpack.c.h.b16 %v2331
  %v2386 = vunpack.c.l.b16 %v2332
  %v2387 = vunpack.c.h.b16 %v2332
  %v2388 = vunpack.c.l.b16 %v2333
  %v2389 = vunpack.c.h.b16 %v2333
  %v2390 = vunpack.c.l.b16 %v2334
  %v2391 = vunpack.c.h.b16 %v2334
  %v2392 = vunpack.c.l.b16 %v2335
  %v2393 = vunpack.c.h.b16 %v2335
  %v2394 = vunpack.c.l.b16 %v2336
  %v2395 = vunpack.c.h.b16 %v2336
  %v2396 = vunpack.c.l.b16 %v2337
  %v2397 = vunpack.c.h.b16 %v2337
  %v2398 = vunpack.c.l.b16 %v2338
  %v2399 = vunpack.c.h.b16 %v2338
  %v2400 = vunpack.c.l.b16 %v2339
  %v2401 = vunpack.c.h.b16 %v2339
  %v2402 = vunpack.c.l.b16 %v2340
  %v2403 = vunpack.c.h.b16 %v2340
  %v2404 = vunpack.c.l.b16 %v2341
  %v2405 = vunpack.c.h.b16 %v2341
  %v2406 = vunpack.c.l.b16 %v2342
  %v2407 = vunpack.c.h.b16 %v2342
  %v2408 = vunpack.c.l.b16 %v2343
  %v2409 = vunpack.c.h.b16 %v2343
  %v2410 = vunpack.c.l.b16 %v2344
  %v2411 = vunpack.c.h.b16 %v2344
  %v2412 = vunpack.c.l.b16 %v2345
  %v2413 = vunpack.c.h.b16 %v2345
  %v2414 = vunpack.c.l.b16 %v2346
  %v2415 = vunpack.c.h.b16 %v2346
  %v2416 = vunpack.c.l.b16 %v2347
  %v2417 = vunpack.c.h.b16 %v2347
  %v2418 = vunpack.c.l.b16 %v2348
  %v2419 = vunpack.c.h.b16 %v2348
  %v2420 = vunpack.c.l.b16 %v2349
  %v2421 = vunpack.c.h.b16 %v2349
  %v2422 = vunpack.c.l.b16 %v2350
  %v2423 = vunpack.c.h.b16 %v2350
  %v2424 = vunpack.c.l.b16 %v2351
  %v2425 = vunpack.c.h.b16 %v2351
  %v2426 = vunpack.c.l.b16 %v2352
  %v2427 = vunpack.c.h.b16 %v2352
  %v2428 = vunpack.c.l.b16 %v2353
  %v2429 = vunpack.c.h.b16 %v2353
  %v2430 = vunpack.c.l.b16 %v2354
  %v2431 = vunpack.c.h.b16 %v2354
  %v2432 = vunpack.c.l.b16 %v2355
  %v2433 = vunpack.c.h.b16 %v2355
  %v2434 = vpack.c.b16 %v2382, %v2382
  %v2435 = vpack.c.b16 %v2383, %v2383
  %v2436 = vpack.c.b16 %v2384, %v2384
  %v2437 = vpack.c.b16 %v2385, %v2385
  %v2438 = vpack.c.b16 %v2386, %v2386
  %v2439 = vpack.c.b16 %v2387, %v2387
  %v2440 = vpack.c.b16 %v2388, %v2388
  %v2441 = vpack.c.b16 %v2389, %v2389
  %v2442 = vpack.c.b16 %v2390, %v2390
  %v2443 = vpack.c.b16 %v2391, %v2391
  %v2444 = vpack.c.b16 %v2392, %v2392
  %v2445 = vpack.c.b16 %v2393, %v2393
  %v2446 = vpack.c.b16 %v2394, %v2394
  %v2447 = vpack.c.b16 %v2395, %v2395
  %v2448 = vpack.c.b16 %v2396, %v2396
  %v2449 = vpack.c.b16 %v2397, %v2397
  %v2450 = vpack.c.b16 %v2398, %v2398
  %v2451 = vpack.c.b16 %v2399, %v2399
  %v2452 = vpack.c.b16 %v2400, %v2400
  %v2453 = vpack.c.b16 %v2401, %v2401
  %v2454 = vpack.c.b16 %v2402, %v2402
  %v2455 = vpack.c.b16 %v2403, %v2403
  %v2456 = vpack.c.b16 %v2404, %v2404
  %v2457 = vpack.c.b16 %v2405, %v2405
  %v2458 = vpack.c.b16 %v2406, %v2406
  %v2459 = vpack.c.b16 %v2407, %v2407
  %v2460 = vpack.c.b16 %v2408, %v2408
  %v2461 = vpack.c.b16 %v2409, %v2409
  %v2462 = vpack.c.b16 %v2410, %v2410
  %v2463 = vpack.c.b16 %v2411, %v2411
  %v2464 = vpack.c.b16 %v2412, %v2412
  %v2465 = vpack.c.b16 %v2413, %v2413
  %v2466 = vpack.c.b16 %v2414, %v2414
  %v2467 = vpack.c.b16 %v2415, %v2415
  %v2468 = vpack.c.b16 %v2416, %v2416
  %v2469 = vpack.c.b16 %v2417, %v2417
  %v2470 = vpack.c.b16 %v2418, %v2418
  %v2471 = vpack.c.b16 %v2419, %v2419
  %v2472 = vpack.c.b16 %v2420, %v2420
  %v2473 = vpack.c.b16 %v2421, %v2421
  %v2474 = vpack.c.b16 %v2422, %v2422
  %v2475 = vpack.c.b16 %v2423, %v2423
  %v2476 = vpack.c.b16 %v2424, %v2424
  %v2477 = vpack.c.b16 %v2425, %v2425
  %v2478 = vpack.c.b16 %v2426, %v2426
  %v2479 = vpack.c.b16 %v2427, %v2427
  %v2480 = vpack.c.b16 %v2428, %v2428
  %v2481 = vpack.c.b16 %v2429, %v2429
  %v2482 = vpack.c.b16 %v2430, %v2430
  %v2483 = vpack.c.b16 %v2431, %v2431
  %v2484 = vpack.c.b16 %v2432, %v2432
  %v2485 = vpack.c.b16 %v2433, %v2433
  %vm2538 = vcmask 60416
  %2539 = vst.msk [vmem:[%s3] sm:$0xf] %vm2538, %v2434
  %2540 = vst.msk [vmem:[%s3 + $0x4] sm:$0xf] %vm2538, %v2435
  %2541 = vst.msk [vmem:[%s3 + $0x8] sm:$0xf] %vm2538, %v2436
  %2542 = vst.msk [vmem:[%s3 + $0xc] sm:$0xf] %vm2538, %v2437
  %2543 = vst.msk [vmem:[%s3 + $0x10] sm:$0xf] %vm2538, %v2438
  %2544 = vst.msk [vmem:[%s3 + $0x14] sm:$0xf] %vm2538, %v2439
  %2545 = vst.msk [vmem:[%s3 + $0x18] sm:$0xf] %vm2538, %v2440
  %2546 = vst.msk [vmem:[%s3 + $0x1c] sm:$0xf] %vm2538, %v2441
  %2547 = vst.msk [vmem:[%s3 + $0x20] sm:$0xf] %vm2538, %v2442
  %2548 = vst.msk [vmem:[%s3 + $0x24] sm:$0xf] %vm2538, %v2443
  %2549 = vst.msk [vmem:[%s3 + $0x28] sm:$0xf] %vm2538, %v2444
  %2550 = vst.msk [vmem:[%s3 + $0x2c] sm:$0xf] %vm2538, %v2445
  %2551 = vst.msk [vmem:[%s3 + $0x30] sm:$0xf] %vm2538, %v2446
  %2552 = vst.msk [vmem:[%s3 + $0x34] sm:$0xf] %vm2538, %v2447
  %2553 = vst.msk [vmem:[%s3 + $0x38] sm:$0xf] %vm2538, %v2448
  %2554 = vst.msk [vmem:[%s3 + $0x3c] sm:$0xf] %vm2538, %v2449
  %2555 = vst.msk [vmem:[%s3 + $0x40] sm:$0xf] %vm2538, %v2450
  %2556 = vst.msk [vmem:[%s3 + $0x44] sm:$0xf] %vm2538, %v2451
  %2557 = vst.msk [vmem:[%s3 + $0x48] sm:$0xf] %vm2538, %v2452
  %2558 = vst.msk [vmem:[%s3 + $0x4c] sm:$0xf] %vm2538, %v2453
  %2559 = vst.msk [vmem:[%s3 + $0x50] sm:$0xf] %vm2538, %v2454
  %2560 = vst.msk [vmem:[%s3 + $0x54] sm:$0xf] %vm2538, %v2455
  %2561 = vst.msk [vmem:[%s3 + $0x58] sm:$0xf] %vm2538, %v2456
  %2562 = vst.msk [vmem:[%s3 + $0x5c] sm:$0xf] %vm2538, %v2457
  %2563 = vst.msk [vmem:[%s3 + $0x60] sm:$0xf] %vm2538, %v2458
  %2564 = vst.msk [vmem:[%s3 + $0x64] sm:$0xf] %vm2538, %v2459
  %2565 = vst.msk [vmem:[%s3 + $0x68] sm:$0xf] %vm2538, %v2460
  %2566 = vst.msk [vmem:[%s3 + $0x6c] sm:$0xf] %vm2538, %v2461
  %2567 = vst.msk [vmem:[%s3 + $0x70] sm:$0xf] %vm2538, %v2462
  %2568 = vst.msk [vmem:[%s3 + $0x74] sm:$0xf] %vm2538, %v2463
  %2569 = vst.msk [vmem:[%s3 + $0x78] sm:$0xf] %vm2538, %v2464
  %2570 = vst.msk [vmem:[%s3 + $0x7c] sm:$0xf] %vm2538, %v2465
  %2571 = vst.msk [vmem:[%s3 + $0x80] sm:$0xf] %vm2538, %v2466
  %2572 = vst.msk [vmem:[%s3 + $0x84] sm:$0xf] %vm2538, %v2467
  %2573 = vst.msk [vmem:[%s3 + $0x88] sm:$0xf] %vm2538, %v2468
  %2574 = vst.msk [vmem:[%s3 + $0x8c] sm:$0xf] %vm2538, %v2469
  %2575 = vst.msk [vmem:[%s3 + $0x90] sm:$0xf] %vm2538, %v2470
  %2576 = vst.msk [vmem:[%s3 + $0x94] sm:$0xf] %vm2538, %v2471
  %2577 = vst.msk [vmem:[%s3 + $0x98] sm:$0xf] %vm2538, %v2472
  %2578 = vst.msk [vmem:[%s3 + $0x9c] sm:$0xf] %vm2538, %v2473
  %2579 = vst.msk [vmem:[%s3 + $0xa0] sm:$0xf] %vm2538, %v2474
  %2580 = vst.msk [vmem:[%s3 + $0xa4] sm:$0xf] %vm2538, %v2475
  %2581 = vst.msk [vmem:[%s3 + $0xa8] sm:$0xf] %vm2538, %v2476
  %2582 = vst.msk [vmem:[%s3 + $0xac] sm:$0xf] %vm2538, %v2477
  %2583 = vst.msk [vmem:[%s3 + $0xb0] sm:$0xf] %vm2538, %v2478
  %2584 = vst.msk [vmem:[%s3 + $0xb4] sm:$0xf] %vm2538, %v2479
  %2585 = vst.msk [vmem:[%s3 + $0xb8] sm:$0xf] %vm2538, %v2480
  %2586 = vst.msk [vmem:[%s3 + $0xbc] sm:$0xf] %vm2538, %v2481
  %2587 = vst.msk [vmem:[%s3 + $0xc0] sm:$0xf] %vm2538, %v2482
  %2588 = vst.msk [vmem:[%s3 + $0xc4] sm:$0xf] %vm2538, %v2483
  %2589 = vst.msk [vmem:[%s3 + $0xc8] sm:$0xf] %vm2538, %v2484
  %2590 = vst.msk [vmem:[%s3 + $0xcc] sm:$0xf] %vm2538, %v2485
  // Predicated region
  $region14: #{convnet_forward.3} parent=0 // pred_check
    _
  $region15: #{convnet_forward.3} parent=0 // pred_check_branch
    %2592 = sbr.rel (0) target = $region17
  $region16: #{convnet_forward.3} parent=0 // pred_region
    _
  $region17: #{convnet_forward.3} parent=0 // pred_fallthru
    _
  // Predicated region
  $region18: #{convnet_forward.3} parent=0 // pred_check
    _
  $region19: #{convnet_forward.3} parent=0 // pred_check_branch
    %2594 = sbr.rel (0) target = $region21
  $region20: #{convnet_forward.3} parent=0 // pred_region
    _
  $region21: #{convnet_forward.3} parent=0 // pred_fallthru
    _

// kernel: convnet_forward.4
$region0: #{convnet_forward.4}
  #allocation0 [shape = 'u32[]', space=smem, size = 0x4, offset = 0x4, fixed_abs, tag = 'smem constant byte address 0x4 - core index']
  #allocation1 [shape = 'u32[144,128]{1,0:T(1,128)}', space=vmem, size = 0x12000, scoped, tag = 'internal scratch']
  %s0 = inlined_call_operand.vmem [shape: bf16[4,64,208], index: 0, kind: input, shape index: {}]
  %s1 = inlined_call_operand.vmem [shape: bf16[208,16], index: 1, kind: input, shape index: {}]
  %s2 = inlined_call_operand.vmem [shape: f32[1,16], index: 2, kind: input, shape index: {}]
  %s3 = inlined_call_operand.vmem [shape: bf16[64,16], index: 3, kind: output, shape index: {}]
  %s4 = sld [smem:[#allocation0]]
  $region22: #{convnet_forward.4} parent=0
    _
  %s6 = ssub.s32 1, %s4
  %s7 = scalar_select 0, %s6, %s4
  // Predicated region
  $region2: #{convnet_forward.4} parent=0 // pred_check
    _
  $region3: #{convnet_forward.4} parent=0 // pred_check_branch
    %9 = sbr.rel (0) target = $region5
  $region4: #{convnet_forward.4} parent=0 // pred_region
    _
  $region5: #{convnet_forward.4} parent=0 // pred_fallthru
    _
  // Predicated region
  $region6: #{convnet_forward.4} parent=0 // pred_check
    _
  $region7: #{convnet_forward.4} parent=0 // pred_check_branch
    %11 = sbr.rel (0) target = $region9
  $region8: #{convnet_forward.4} parent=0 // pred_region
    _
  $region9: #{convnet_forward.4} parent=0 // pred_fallthru
    _
  // Predicated region
  $region10: #{convnet_forward.4} parent=0 // pred_check
    _
  $region11: #{convnet_forward.4} parent=0 // pred_check_branch
    %13 = sbr.rel (0) target = $region13
  $region12: #{convnet_forward.4} parent=0 // pred_region
    _
  $region13: #{convnet_forward.4} parent=0 // pred_fallthru
    _
  %v15 = vld [vmem:[%s1] sm:$0xf]
  %v16 = vld [vmem:[%s1 + $0x4] sm:$0xf]
  %v17 = vld [vmem:[%s1 + $0x8] sm:$0xf]
  %v18 = vld [vmem:[%s1 + $0xc] sm:$0xf]
  %v19 = vld [vmem:[%s1 + $0x10] sm:$0xf]
  %v20 = vld [vmem:[%s1 + $0x14] sm:$0xf]
  %v21 = vld [vmem:[%s1 + $0x18] sm:$0xf]
  %v22 = vld [vmem:[%s1 + $0x1c] sm:$0xf]
  %v23 = vld [vmem:[%s1 + $0x20] sm:$0xf]
  %v24 = vld [vmem:[%s1 + $0x24] sm:$0xf]
  %v25 = vld [vmem:[%s1 + $0x28] sm:$0xf]
  %v26 = vld [vmem:[%s1 + $0x2c] sm:$0xf]
  %v27 = vld [vmem:[%s1 + $0x30] sm:$0xf]
  %v28 = vld [vmem:[%s1 + $0x34] sm:$0xf]
  %v29 = vld [vmem:[%s1 + $0x38] sm:$0xf]
  %v30 = vld [vmem:[%s1 + $0x3c] sm:$0xf]
  %v31 = vld [vmem:[%s1 + $0x40] sm:$0xf]
  %v32 = vld [vmem:[%s1 + $0x44] sm:$0xf]
  %v33 = vld [vmem:[%s1 + $0x48] sm:$0xf]
  %v34 = vld [vmem:[%s1 + $0x4c] sm:$0xf]
  %v35 = vld [vmem:[%s1 + $0x50] sm:$0xf]
  %v36 = vld [vmem:[%s1 + $0x54] sm:$0xf]
  %v37 = vld [vmem:[%s1 + $0x58] sm:$0xf]
  %v38 = vld [vmem:[%s1 + $0x5c] sm:$0xf]
  %v39 = vld [vmem:[%s1 + $0x60] sm:$0xf]
  %v40 = vld [vmem:[%s1 + $0x64] sm:$0xf]
  %v41 = vld [vmem:[%s0] sm:$0xff]
  %v42 = vld [vmem:[%s0 + $0x8] sm:$0xff]
  %v43 = vld [vmem:[%s0 + $0x10] sm:$0xff]
  %v44 = vld [vmem:[%s0 + $0x18] sm:$0xff]
  %v45 = vld [vmem:[%s0 + $0x20] sm:$0xff]
  %v46 = vld [vmem:[%s0 + $0x28] sm:$0xff]
  %v47 = vld [vmem:[%s0 + $0x30] sm:$0xff]
  %v48 = vld [vmem:[%s0 + $0x38] sm:$0xff]
  %v57 = vunpack.c.l.b16 %v41
  %v58 = vunpack.c.h.b16 %v41
  %v59 = vunpack.c.l.b16 %v42
  %v60 = vunpack.c.h.b16 %v42
  %v61 = vunpack.c.l.b16 %v43
  %v62 = vunpack.c.h.b16 %v43
  %v63 = vunpack.c.l.b16 %v44
  %v64 = vunpack.c.h.b16 %v44
  %v65 = vunpack.c.l.b16 %v45
  %v66 = vunpack.c.h.b16 %v45
  %v67 = vunpack.c.l.b16 %v46
  %v68 = vunpack.c.h.b16 %v46
  %v69 = vunpack.c.l.b16 %v47
  %v70 = vunpack.c.h.b16 %v47
  %v71 = vunpack.c.l.b16 %v48
  %v72 = vunpack.c.h.b16 %v48
  %v73 = vpack.c.b16 %v59, %v57
  %v74 = vpack.c.b16 %v60, %v58
  %v75 = vpack.c.b16 %v63, %v61
  %v76 = vpack.c.b16 %v64, %v62
  %v77 = vpack.c.b16 %v67, %v65
  %v78 = vpack.c.b16 %v68, %v66
  %v79 = vpack.c.b16 %v71, %v69
  %v80 = vpack.c.b16 %v72, %v70
  %v111 = vunpack.c.l.b16 %v15
  %v112 = vunpack.c.l.b16 %v16
  %v113 = vunpack.c.l.b16 %v17
  %v114 = vunpack.c.l.b16 %v18
  %v115 = vunpack.c.l.b16 %v19
  %v116 = vunpack.c.l.b16 %v20
  %v117 = vunpack.c.l.b16 %v21
  %v118 = vunpack.c.l.b16 %v22
  %v119 = vunpack.c.l.b16 %v23
  %v120 = vunpack.c.l.b16 %v24
  %v121 = vunpack.c.l.b16 %v25
  %v122 = vunpack.c.l.b16 %v26
  %v123 = vunpack.c.l.b16 %v27
  %v124 = vunpack.c.l.b16 %v28
  %v125 = vunpack.c.l.b16 %v29
  %v126 = vunpack.c.l.b16 %v30
  %v127 = vunpack.c.l.b16 %v31
  %v128 = vunpack.c.l.b16 %v32
  %v129 = vunpack.c.l.b16 %v33
  %v130 = vunpack.c.l.b16 %v34
  %v131 = vunpack.c.l.b16 %v35
  %v132 = vunpack.c.l.b16 %v36
  %v133 = vunpack.c.l.b16 %v37
  %v134 = vunpack.c.l.b16 %v38
  %v135 = vunpack.c.l.b16 %v39
  %v136 = vunpack.c.l.b16 %v40
  %v137 = vpack.c.b16 %v112, %v111
  %v138 = vpack.c.b16 %v114, %v113
  %v139 = vpack.c.b16 %v116, %v115
  %v140 = vpack.c.b16 %v118, %v117
  %v141 = vpack.c.b16 %v120, %v119
  %v142 = vpack.c.b16 %v122, %v121
  %v143 = vpack.c.b16 %v124, %v123
  %v144 = vpack.c.b16 %v126, %v125
  %v145 = vpack.c.b16 %v128, %v127
  %v146 = vpack.c.b16 %v130, %v129
  %v147 = vpack.c.b16 %v132, %v131
  %v148 = vpack.c.b16 %v134, %v133
  %v149 = vpack.c.b16 %v136, %v135
  %vm163 = vcmask 654336
  %v165 = vsel %vm163, %v74, 0
  %v168 = vsel %vm163, %v76, 0
  %v171 = vsel %vm163, %v78, 0
  %v174 = vsel %vm163, %v80, 0
  %176 = vmatprep.subr.bf16.mxu0 0
  %177 = vmatpush1.bf16.msra.mxu0 %v137
  %178 = vmatprep.subr.bf16.mxu0 0
  %179 = vmatpush1.bf16.msra.mxu0 %v138
  %180 = vmatprep.subr.bf16.mxu0 0
  %181 = vmatpush1.bf16.msra.mxu0 %v139
  %182 = vmatprep.subr.bf16.mxu0 0
  %183 = vmatpush1.bf16.msra.mxu0 %v140
  %184 = vmatprep.subr.bf16.mxu0 0
  %185 = vmatpush1.bf16.msra.mxu0 %v141
  %186 = vmatprep.subr.bf16.mxu0 0
  %187 = vmatpush1.bf16.msra.mxu0 %v142
  %188 = vmatprep.subr.bf16.mxu0 0
  %189 = vmatpush1.bf16.msra.mxu0 %v143
  %190 = vmatprep.subr.bf16.mxu0 0
  %191 = vmatpush1.bf16.msra.mxu0 %v144
  %192 = vmatprep.subr.bf16.mxu0 0
  %193 = vmatpush1.bf16.msra.mxu0 %v145
  %194 = vmatprep.subr.bf16.mxu0 0
  %195 = vmatpush1.bf16.msra.mxu0 %v146
  %196 = vmatprep.subr.bf16.mxu0 0
  %197 = vmatpush1.bf16.msra.mxu0 %v147
  %198 = vmatprep.subr.bf16.mxu0 0
  %199 = vmatpush1.bf16.msra.mxu0 %v148
  %200 = vmatprep.subr.bf16.mxu0 0
  %201 = vmatpush1.bf16.msra.mxu0 %v149
  %202 = vmatprep.subr.bf16.mxu0 0
  %203 = vmatpush1.bf16.msra.mxu0 0
  %204 = vmatprep.subr.bf16.mxu0 0
  %205 = vmatpush1.bf16.msra.mxu0 0
  %206 = vmatprep.subr.bf16.mxu0 0
  %207 = vmatpush1.bf16.msra.mxu0 0
  %208 = vmatprep.mubr.bf16.mxu0 %v165
  %209 = vmatmul.mubr.bf16.gmra.mrb[0].mxu0 %v73
  %v210 = vpop.f32.mrb[0].mxu0
  %v211 = vadd.f32 0.0, %v210
  %v212 = vpop.f32.mrb[0].mxu0
  %v213 = vpop.f32.mrb[0].mxu0
  %v214 = vadd.f32 0.0, %v213
  %v215 = vpop.f32.mrb[0].mxu0
  %216 = vmatprep.mubr.bf16.mxu0 %v168
  %217 = vmatmul.mubr.bf16.gmra.mrb[0].mxu0 %v75
  %v218 = vpop.f32.mrb[0].mxu0
  %v219 = vadd.f32 0.0, %v218
  %v220 = vpop.f32.mrb[0].mxu0
  %v221 = vpop.f32.mrb[0].mxu0
  %v222 = vadd.f32 0.0, %v221
  %v223 = vpop.f32.mrb[0].mxu0
  %224 = vmatprep.mubr.bf16.mxu0 %v171
  %225 = vmatmul.mubr.bf16.gmra.mrb[0].mxu0 %v77
  %v226 = vpop.f32.mrb[0].mxu0
  %v227 = vadd.f32 0.0, %v226
  %v228 = vpop.f32.mrb[0].mxu0
  %v229 = vpop.f32.mrb[0].mxu0
  %v230 = vadd.f32 0.0, %v229
  %v231 = vpop.f32.mrb[0].mxu0
  %232 = vmatprep.mubr.bf16.mxu0 %v174
  %233 = vmatmul.mubr.bf16.gmra.mrb[0].mxu0 %v79
  %v234 = vpop.f32.mrb[0].mxu0
  %v235 = vadd.f32 0.0, %v234
  %v236 = vpop.f32.mrb[0].mxu0
  %v237 = vpop.f32.mrb[0].mxu0
  %v238 = vadd.f32 0.0, %v237
  %v239 = vpop.f32.mrb[0].mxu0
  %240 = vdwg.mxu0
  %s241 = scalar_lea.vmem %s0, 64
  %v242 = vld [vmem:[%s241] sm:$0xff]
  %v243 = vld [vmem:[%s241 + $0x8] sm:$0xff]
  %v244 = vld [vmem:[%s241 + $0x10] sm:$0xff]
  %v245 = vld [vmem:[%s241 + $0x18] sm:$0xff]
  %v246 = vld [vmem:[%s241 + $0x20] sm:$0xff]
  %v247 = vld [vmem:[%s241 + $0x28] sm:$0xff]
  %v248 = vld [vmem:[%s241 + $0x30] sm:$0xff]
  %v249 = vld [vmem:[%s241 + $0x38] sm:$0xff]
  %v258 = vunpack.c.l.b16 %v242
  %v259 = vunpack.c.h.b16 %v242
  %v260 = vunpack.c.l.b16 %v243
  %v261 = vunpack.c.h.b16 %v243
  %v262 = vunpack.c.l.b16 %v244
  %v263 = vunpack.c.h.b16 %v244
  %v264 = vunpack.c.l.b16 %v245
  %v265 = vunpack.c.h.b16 %v245
  %v266 = vunpack.c.l.b16 %v246
  %v267 = vunpack.c.h.b16 %v246
  %v268 = vunpack.c.l.b16 %v247
  %v269 = vunpack.c.h.b16 %v247
  %v270 = vunpack.c.l.b16 %v248
  %v271 = vunpack.c.h.b16 %v248
  %v272 = vunpack.c.l.b16 %v249
  %v273 = vunpack.c.h.b16 %v249
  %v274 = vpack.c.b16 %v260, %v258
  %v275 = vpack.c.b16 %v261, %v259
  %v276 = vpack.c.b16 %v264, %v262
  %v277 = vpack.c.b16 %v265, %v263
  %v278 = vpack.c.b16 %v268, %v266
  %v279 = vpack.c.b16 %v269, %v267
  %v280 = vpack.c.b16 %v272, %v270
  %v281 = vpack.c.b16 %v273, %v271
  %v287 = vsel %vm163, %v275, 0
  %v290 = vsel %vm163, %v277, 0
  %v293 = vsel %vm163, %v279, 0
  %v296 = vsel %vm163, %v281, 0
  %298 = vmatprep.subr.bf16.mxu0 0
  %299 = vmatpush1.bf16.msra.mxu0 %v137
  %300 = vmatprep.subr.bf16.mxu0 0
  %301 = vmatpush1.bf16.msra.mxu0 %v138
  %302 = vmatprep.subr.bf16.mxu0 0
  %303 = vmatpush1.bf16.msra.mxu0 %v139
  %304 = vmatprep.subr.bf16.mxu0 0
  %305 = vmatpush1.bf16.msra.mxu0 %v140
  %306 = vmatprep.subr.bf16.mxu0 0
  %307 = vmatpush1.bf16.msra.mxu0 %v141
  %308 = vmatprep.subr.bf16.mxu0 0
  %309 = vmatpush1.bf16.msra.mxu0 %v142
  %310 = vmatprep.subr.bf16.mxu0 0
  %311 = vmatpush1.bf16.msra.mxu0 %v143
  %312 = vmatprep.subr.bf16.mxu0 0
  %313 = vmatpush1.bf16.msra.mxu0 %v144
  %314 = vmatprep.subr.bf16.mxu0 0
  %315 = vmatpush1.bf16.msra.mxu0 %v145
  %316 = vmatprep.subr.bf16.mxu0 0
  %317 = vmatpush1.bf16.msra.mxu0 %v146
  %318 = vmatprep.subr.bf16.mxu0 0
  %319 = vmatpush1.bf16.msra.mxu0 %v147
  %320 = vmatprep.subr.bf16.mxu0 0
  %321 = vmatpush1.bf16.msra.mxu0 %v148
  %322 = vmatprep.subr.bf16.mxu0 0
  %323 = vmatpush1.bf16.msra.mxu0 %v149
  %324 = vmatprep.subr.bf16.mxu0 0
  %325 = vmatpush1.bf16.msra.mxu0 0
  %326 = vmatprep.subr.bf16.mxu0 0
  %327 = vmatpush1.bf16.msra.mxu0 0
  %328 = vmatprep.subr.bf16.mxu0 0
  %329 = vmatpush1.bf16.msra.mxu0 0
  %330 = vmatprep.mubr.bf16.mxu0 %v287
  %331 = vmatmul.mubr.bf16.gmra.mrb[0].mxu0 %v274
  %v332 = vpop.f32.mrb[0].mxu0
  %v333 = vadd.f32 0.0, %v332
  %v334 = vpop.f32.mrb[0].mxu0
  %v335 = vpop.f32.mrb[0].mxu0
  %v336 = vadd.f32 0.0, %v335
  %v337 = vpop.f32.mrb[0].mxu0
  %338 = vmatprep.mubr.bf16.mxu0 %v290
  %339 = vmatmul.mubr.bf16.gmra.mrb[0].mxu0 %v276
  %v340 = vpop.f32.mrb[0].mxu0
  %v341 = vadd.f32 0.0, %v340
  %v342 = vpop.f32.mrb[0].mxu0
  %v343 = vpop.f32.mrb[0].mxu0
  %v344 = vadd.f32 0.0, %v343
  %v345 = vpop.f32.mrb[0].mxu0
  %346 = vmatprep.mubr.bf16.mxu0 %v293
  %347 = vmatmul.mubr.bf16.gmra.mrb[0].mxu0 %v278
  %v348 = vpop.f32.mrb[0].mxu0
  %v349 = vadd.f32 0.0, %v348
  %v350 = vpop.f32.mrb[0].mxu0
  %v351 = vpop.f32.mrb[0].mxu0
  %v352 = vadd.f32 0.0, %v351
  %v353 = vpop.f32.mrb[0].mxu0
  %354 = vmatprep.mubr.bf16.mxu0 %v296
  %355 = vmatmul.mubr.bf16.gmra.mrb[0].mxu0 %v280
  %v356 = vpop.f32.mrb[0].mxu0
  %v357 = vadd.f32 0.0, %v356
  %v358 = vpop.f32.mrb[0].mxu0
  %v359 = vpop.f32.mrb[0].mxu0
  %v360 = vadd.f32 0.0, %v359
  %v361 = vpop.f32.mrb[0].mxu0
  %362 = vdwg.mxu0
  %v363 = vmax.f32 %v211, %v333
  %v364 = vmax.f32 %v214, %v336
  %v365 = vmax.f32 %v219, %v341
  %v366 = vmax.f32 %v222, %v344
  %v367 = vmax.f32 %v227, %v349
  %v368 = vmax.f32 %v230, %v352
  %v369 = vmax.f32 %v235, %v357
  %v370 = vmax.f32 %v238, %v360
  %s371 = scalar_lea.vmem %s0, 128
  %v372 = vld [vmem:[%s371] sm:$0xff]
  %v373 = vld [vmem:[%s371 + $0x8] sm:$0xff]
  %v374 = vld [vmem:[%s371 + $0x10] sm:$0xff]
  %v375 = vld [vmem:[%s371 + $0x18] sm:$0xff]
  %v376 = vld [vmem:[%s371 + $0x20] sm:$0xff]
  %v377 = vld [vmem:[%s371 + $0x28] sm:$0xff]
  %v378 = vld [vmem:[%s371 + $0x30] sm:$0xff]
  %v379 = vld [vmem:[%s371 + $0x38] sm:$0xff]
  %v388 = vunpack.c.l.b16 %v372
  %v389 = vunpack.c.h.b16 %v372
  %v390 = vunpack.c.l.b16 %v373
  %v391 = vunpack.c.h.b16 %v373
  %v392 = vunpack.c.l.b16 %v374
  %v393 = vunpack.c.h.b16 %v374
  %v394 = vunpack.c.l.b16 %v375
  %v395 = vunpack.c.h.b16 %v375
  %v396 = vunpack.c.l.b16 %v376
  %v397 = vunpack.c.h.b16 %v376
  %v398 = vunpack.c.l.b16 %v377
  %v399 = vunpack.c.h.b16 %v377
  %v400 = vunpack.c.l.b16 %v378
  %v401 = vunpack.c.h.b16 %v378
  %v402 = vunpack.c.l.b16 %v379
  %v403 = vunpack.c.h.b16 %v379
  %v404 = vpack.c.b16 %v390, %v388
  %v405 = vpack.c.b16 %v391, %v389
  %v406 = vpack.c.b16 %v394, %v392
  %v407 = vpack.c.b16 %v395, %v393
  %v408 = vpack.c.b16 %v398, %v396
  %v409 = vpack.c.b16 %v399, %v397
  %v410 = vpack.c.b16 %v402, %v400
  %v411 = vpack.c.b16 %v403, %v401
  %v417 = vsel %vm163, %v405, 0
  %v420 = vsel %vm163, %v407, 0
  %v423 = vsel %vm163, %v409, 0
  %v426 = vsel %vm163, %v411, 0
  %428 = vmatprep.subr.bf16.mxu0 0
  %429 = vmatpush1.bf16.msra.mxu0 %v137
  %430 = vmatprep.subr.bf16.mxu0 0
  %431 = vmatpush1.bf16.msra.mxu0 %v138
  %432 = vmatprep.subr.bf16.mxu0 0
  %433 = vmatpush1.bf16.msra.mxu0 %v139
  %434 = vmatprep.subr.bf16.mxu0 0
  %435 = vmatpush1.bf16.msra.mxu0 %v140
  %436 = vmatprep.subr.bf16.mxu0 0
  %437 = vmatpush1.bf16.msra.mxu0 %v141
  %438 = vmatprep.subr.bf16.mxu0 0
  %439 = vmatpush1.bf16.msra.mxu0 %v142
  %440 = vmatprep.subr.bf16.mxu0 0
  %441 = vmatpush1.bf16.msra.mxu0 %v143
  %442 = vmatprep.subr.bf16.mxu0 0
  %443 = vmatpush1.bf16.msra.mxu0 %v144
  %444 = vmatprep.subr.bf16.mxu0 0
  %445 = vmatpush1.bf16.msra.mxu0 %v145
  %446 = vmatprep.subr.bf16.mxu0 0
  %447 = vmatpush1.bf16.msra.mxu0 %v146
  %448 = vmatprep.subr.bf16.mxu0 0
  %449 = vmatpush1.bf16.msra.mxu0 %v147
  %450 = vmatprep.subr.bf16.mxu0 0
  %451 = vmatpush1.bf16.msra.mxu0 %v148
  %452 = vmatprep.subr.bf16.mxu0 0
  %453 = vmatpush1.bf16.msra.mxu0 %v149
  %454 = vmatprep.subr.bf16.mxu0 0
  %455 = vmatpush1.bf16.msra.mxu0 0
  %456 = vmatprep.subr.bf16.mxu0 0
  %457 = vmatpush1.bf16.msra.mxu0 0
  %458 = vmatprep.subr.bf16.mxu0 0
  %459 = vmatpush1.bf16.msra.mxu0 0
  %460 = vmatprep.mubr.bf16.mxu0 %v417
  %461 = vmatmul.mubr.bf16.gmra.mrb[0].mxu0 %v404
  %v462 = vpop.f32.mrb[0].mxu0
  %v463 = vadd.f32 0.0, %v462
  %v464 = vpop.f32.mrb[0].mxu0
  %v465 = vpop.f32.mrb[0].mxu0
  %v466 = vadd.f32 0.0, %v465
  %v467 = vpop.f32.mrb[0].mxu0
  %468 = vmatprep.mubr.bf16.mxu0 %v420
  %469 = vmatmul.mubr.bf16.gmra.mrb[0].mxu0 %v406
  %v470 = vpop.f32.mrb[0].mxu0
  %v471 = vadd.f32 0.0, %v470
  %v472 = vpop.f32.mrb[0].mxu0
  %v473 = vpop.f32.mrb[0].mxu0
  %v474 = vadd.f32 0.0, %v473
  %v475 = vpop.f32.mrb[0].mxu0
  %476 = vmatprep.mubr.bf16.mxu0 %v423
  %477 = vmatmul.mubr.bf16.gmra.mrb[0].mxu0 %v408
  %v478 = vpop.f32.mrb[0].mxu0
  %v479 = vadd.f32 0.0, %v478
  %v480 = vpop.f32.mrb[0].mxu0
  %v481 = vpop.f32.mrb[0].mxu0
  %v482 = vadd.f32 0.0, %v481
  %v483 = vpop.f32.mrb[0].mxu0
  %484 = vmatprep.mubr.bf16.mxu0 %v426
  %485 = vmatmul.mubr.bf16.gmra.mrb[0].mxu0 %v410
  %v486 = vpop.f32.mrb[0].mxu0
  %v487 = vadd.f32 0.0, %v486
  %v488 = vpop.f32.mrb[0].mxu0
  %v489 = vpop.f32.mrb[0].mxu0
  %v490 = vadd.f32 0.0, %v489
  %v491 = vpop.f32.mrb[0].mxu0
  %492 = vdwg.mxu0
  %v493 = vmax.f32 %v363, %v463
  %v494 = vmax.f32 %v364, %v466
  %v495 = vmax.f32 %v365, %v471
  %v496 = vmax.f32 %v366, %v474
  %v497 = vmax.f32 %v367, %v479
  %v498 = vmax.f32 %v368, %v482
  %v499 = vmax.f32 %v369, %v487
  %v500 = vmax.f32 %v370, %v490
  %s501 = scalar_lea.vmem %s0, 192
  %v502 = vld [vmem:[%s501] sm:$0xff]
  %v503 = vld [vmem:[%s501 + $0x8] sm:$0xff]
  %v504 = vld [vmem:[%s501 + $0x10] sm:$0xff]
  %v505 = vld [vmem:[%s501 + $0x18] sm:$0xff]
  %v506 = vld [vmem:[%s501 + $0x20] sm:$0xff]
  %v507 = vld [vmem:[%s501 + $0x28] sm:$0xff]
  %v508 = vld [vmem:[%s501 + $0x30] sm:$0xff]
  %v509 = vld [vmem:[%s501 + $0x38] sm:$0xff]
  %v518 = vunpack.c.l.b16 %v502
  %v519 = vunpack.c.h.b16 %v502
  %v520 = vunpack.c.l.b16 %v503
  %v521 = vunpack.c.h.b16 %v503
  %v522 = vunpack.c.l.b16 %v504
  %v523 = vunpack.c.h.b16 %v504
  %v524 = vunpack.c.l.b16 %v505
  %v525 = vunpack.c.h.b16 %v505
  %v526 = vunpack.c.l.b16 %v506
  %v527 = vunpack.c.h.b16 %v506
  %v528 = vunpack.c.l.b16 %v507
  %v529 = vunpack.c.h.b16 %v507
  %v530 = vunpack.c.l.b16 %v508
  %v531 = vunpack.c.h.b16 %v508
  %v532 = vunpack.c.l.b16 %v509
  %v533 = vunpack.c.h.b16 %v509
  %v534 = vpack.c.b16 %v520, %v518
  %v535 = vpack.c.b16 %v521, %v519
  %v536 = vpack.c.b16 %v524, %v522
  %v537 = vpack.c.b16 %v525, %v523
  %v538 = vpack.c.b16 %v528, %v526
  %v539 = vpack.c.b16 %v529, %v527
  %v540 = vpack.c.b16 %v532, %v530
  %v541 = vpack.c.b16 %v533, %v531
  %v547 = vsel %vm163, %v535, 0
  %v550 = vsel %vm163, %v537, 0
  %v553 = vsel %vm163, %v539, 0
  %v556 = vsel %vm163, %v541, 0
  %558 = vmatprep.subr.bf16.mxu0 0
  %559 = vmatpush1.bf16.msra.mxu0 %v137
  %560 = vmatprep.subr.bf16.mxu0 0
  %561 = vmatpush1.bf16.msra.mxu0 %v138
  %562 = vmatprep.subr.bf16.mxu0 0
  %563 = vmatpush1.bf16.msra.mxu0 %v139
  %564 = vmatprep.subr.bf16.mxu0 0
  %565 = vmatpush1.bf16.msra.mxu0 %v140
  %566 = vmatprep.subr.bf16.mxu0 0
  %567 = vmatpush1.bf16.msra.mxu0 %v141
  %568 = vmatprep.subr.bf16.mxu0 0
  %569 = vmatpush1.bf16.msra.mxu0 %v142
  %570 = vmatprep.subr.bf16.mxu0 0
  %571 = vmatpush1.bf16.msra.mxu0 %v143
  %572 = vmatprep.subr.bf16.mxu0 0
  %573 = vmatpush1.bf16.msra.mxu0 %v144
  %574 = vmatprep.subr.bf16.mxu0 0
  %575 = vmatpush1.bf16.msra.mxu0 %v145
  %576 = vmatprep.subr.bf16.mxu0 0
  %577 = vmatpush1.bf16.msra.mxu0 %v146
  %578 = vmatprep.subr.bf16.mxu0 0
  %579 = vmatpush1.bf16.msra.mxu0 %v147
  %580 = vmatprep.subr.bf16.mxu0 0
  %581 = vmatpush1.bf16.msra.mxu0 %v148
  %582 = vmatprep.subr.bf16.mxu0 0
  %583 = vmatpush1.bf16.msra.mxu0 %v149
  %584 = vmatprep.subr.bf16.mxu0 0
  %585 = vmatpush1.bf16.msra.mxu0 0
  %586 = vmatprep.subr.bf16.mxu0 0
  %587 = vmatpush1.bf16.msra.mxu0 0
  %588 = vmatprep.subr.bf16.mxu0 0
  %589 = vmatpush1.bf16.msra.mxu0 0
  %590 = vmatprep.mubr.bf16.mxu0 %v547
  %591 = vmatmul.mubr.bf16.gmra.mrb[0].mxu0 %v534
  %v592 = vpop.f32.mrb[0].mxu0
  %v593 = vadd.f32 0.0, %v592
  %v594 = vpop.f32.mrb[0].mxu0
  %v595 = vpop.f32.mrb[0].mxu0
  %v596 = vadd.f32 0.0, %v595
  %v597 = vpop.f32.mrb[0].mxu0
  %598 = vmatprep.mubr.bf16.mxu0 %v550
  %599 = vmatmul.mubr.bf16.gmra.mrb[0].mxu0 %v536
  %v600 = vpop.f32.mrb[0].mxu0
  %v601 = vadd.f32 0.0, %v600
  %v602 = vpop.f32.mrb[0].mxu0
  %v603 = vpop.f32.mrb[0].mxu0
  %v604 = vadd.f32 0.0, %v603
  %v605 = vpop.f32.mrb[0].mxu0
  %606 = vmatprep.mubr.bf16.mxu0 %v553
  %607 = vmatmul.mubr.bf16.gmra.mrb[0].mxu0 %v538
  %v608 = vpop.f32.mrb[0].mxu0
  %v609 = vadd.f32 0.0, %v608
  %v610 = vpop.f32.mrb[0].mxu0
  %v611 = vpop.f32.mrb[0].mxu0
  %v612 = vadd.f32 0.0, %v611
  %v613 = vpop.f32.mrb[0].mxu0
  %614 = vmatprep.mubr.bf16.mxu0 %v556
  %615 = vmatmul.mubr.bf16.gmra.mrb[0].mxu0 %v540
  %v616 = vpop.f32.mrb[0].mxu0
  %v617 = vadd.f32 0.0, %v616
  %v618 = vpop.f32.mrb[0].mxu0
  %v619 = vpop.f32.mrb[0].mxu0
  %v620 = vadd.f32 0.0, %v619
  %v621 = vpop.f32.mrb[0].mxu0
  %622 = vdwg.mxu0
  %v623 = vmax.f32 %v493, %v593
  %v624 = vmax.f32 %v494, %v596
  %v625 = vmax.f32 %v495, %v601
  %v626 = vmax.f32 %v496, %v604
  %v627 = vmax.f32 %v497, %v609
  %v628 = vmax.f32 %v498, %v612
  %v629 = vmax.f32 %v499, %v617
  %v630 = vmax.f32 %v500, %v620
  %v631 = vld [vmem:[%s2] sm:$0x1]
  %v633 = vlaneseq
  %v634 = vshrl.u32 %v633, 7
  %v635 = vsub.s32 0, %v634
  %v636 = vrot.slane %v631, %v635
  %v638 = vadd.f32 %v623, %v636
  %v639 = vadd.f32 %v624, %v636
  %v640 = vadd.f32 %v625, %v636
  %v641 = vadd.f32 %v626, %v636
  %v642 = vadd.f32 %v627, %v636
  %v643 = vadd.f32 %v628, %v636
  %v644 = vadd.f32 %v629, %v636
  %v645 = vadd.f32 %v630, %v636
  %v646 = vmax.f32 %v638, 0.0
  %v647 = vmax.f32 %v639, 0.0
  %v648 = vmax.f32 %v640, 0.0
  %v649 = vmax.f32 %v641, 0.0
  %v650 = vmax.f32 %v642, 0.0
  %v651 = vmax.f32 %v643, 0.0
  %v652 = vmax.f32 %v644, 0.0
  %v653 = vmax.f32 %v645, 0.0
  %v654 = vpack.c.bf16 %v647, %v646
  %v655 = vpack.c.bf16 %v649, %v648
  %v656 = vpack.c.bf16 %v651, %v650
  %v657 = vpack.c.bf16 %v653, %v652
  %v662 = vunpack.c.l.b16 %v654
  %v663 = vunpack.c.h.b16 %v654
  %v664 = vunpack.c.l.b16 %v655
  %v665 = vunpack.c.h.b16 %v655
  %v666 = vunpack.c.l.b16 %v656
  %v667 = vunpack.c.h.b16 %v656
  %v668 = vunpack.c.l.b16 %v657
  %v669 = vunpack.c.h.b16 %v657
  %v670 = vpack.c.b16 %v662, %v662
  %v671 = vpack.c.b16 %v663, %v663
  %v672 = vpack.c.b16 %v664, %v664
  %v673 = vpack.c.b16 %v665, %v665
  %v674 = vpack.c.b16 %v666, %v666
  %v675 = vpack.c.b16 %v667, %v667
  %v676 = vpack.c.b16 %v668, %v668
  %v677 = vpack.c.b16 %v669, %v669
  %vm686 = vcmask 125952
  %687 = vst.msk [vmem:[%s3] sm:$0xf] %vm686, %v670
  %688 = vst.msk [vmem:[%s3 + $0x4] sm:$0xf] %vm686, %v671
  %689 = vst.msk [vmem:[%s3 + $0x8] sm:$0xf] %vm686, %v672
  %690 = vst.msk [vmem:[%s3 + $0xc] sm:$0xf] %vm686, %v673
  %691 = vst.msk [vmem:[%s3 + $0x10] sm:$0xf] %vm686, %v674
  %692 = vst.msk [vmem:[%s3 + $0x14] sm:$0xf] %vm686, %v675
  %693 = vst.msk [vmem:[%s3 + $0x18] sm:$0xf] %vm686, %v676
  %694 = vst.msk [vmem:[%s3 + $0x1c] sm:$0xf] %vm686, %v677
  // Predicated region
  $region14: #{convnet_forward.4} parent=0 // pred_check
    _
  $region15: #{convnet_forward.4} parent=0 // pred_check_branch
    %696 = sbr.rel (0) target = $region17
  $region16: #{convnet_forward.4} parent=0 // pred_region
    _
  $region17: #{convnet_forward.4} parent=0 // pred_fallthru
    _
  // Predicated region
  $region18: #{convnet_forward.4} parent=0 // pred_check
    _
  $region19: #{convnet_forward.4} parent=0 // pred_check_branch
    %698 = sbr.rel (0) target = $region21
  $region20: #{convnet_forward.4} parent=0 // pred_region
    _
  $region21: #{convnet_forward.4} parent=0 // pred_fallthru
    _

// kernel: convnet_forward.5
$region0: #{convnet_forward.5}
  #allocation0 [shape = 'u32[]', space=smem, size = 0x4, offset = 0x4, fixed_abs, tag = 'smem constant byte address 0x4 - core index']
  #allocation1 [shape = 'u32[144,128]{1,0:T(1,128)}', space=vmem, size = 0x12000, scoped, tag = 'internal scratch']
  %s0 = inlined_call_operand.vmem [shape: bf16[2,400], index: 0, kind: input, shape index: {}]
  %s1 = inlined_call_operand.vmem [shape: bf16[400,128], index: 1, kind: input, shape index: {}]
  %s2 = inlined_call_operand.vmem [shape: f32[1,128], index: 2, kind: input, shape index: {}]
  %s3 = inlined_call_operand.vmem [shape: bf16[128,128], index: 3, kind: input, shape index: {}]
  %s4 = inlined_call_operand.vmem [shape: f32[1,128], index: 4, kind: input, shape index: {}]
  %s5 = inlined_call_operand.vmem [shape: bf16[128,128], index: 5, kind: input, shape index: {}]
  %s6 = inlined_call_operand.vmem [shape: f32[1,128], index: 6, kind: input, shape index: {}]
  %s7 = inlined_call_operand.hbm [shape: f32[2,128], index: 7, kind: output, shape index: {}]
  %s8 = sld [smem:[#allocation0]]
  $region38: #{convnet_forward.5} parent=0
    _
  %s10 = ssub.s32 1, %s8
  %s11 = scalar_select 0, %s10, %s8
  $region1: #{convnet_forward.5} parent=0
    #allocation2 [shape = 'u8[1024]{0}', space=vmem, size = 0x400, scoped, tag = 'output window, operand 0, single buffered']
    #allocation3 [shape = 's32[1]{0}', space=sflag, size = 0x4, scoped, tag = 'scoped memory for convnet_forward.5']
    %12 = vsyncpa [#allocation3], 0
    // Predicated region
    $region2: #{convnet_forward.5} parent=1 // pred_check
      _
    $region3: #{convnet_forward.5} parent=1 // pred_check_branch
      %14 = sbr.rel (0) target = $region5
    $region4: #{convnet_forward.5} parent=1 // pred_region
      _
    $region5: #{convnet_forward.5} parent=1 // pred_fallthru
      _
    // Predicated region
    $region6: #{convnet_forward.5} parent=1 // pred_check
      _
    $region7: #{convnet_forward.5} parent=1 // pred_check_branch
      %16 = sbr.rel (0) target = $region9
    $region8: #{convnet_forward.5} parent=1 // pred_region
      _
    $region9: #{convnet_forward.5} parent=1 // pred_fallthru
      _
    // Predicated region
    $region10: #{convnet_forward.5} parent=1 // pred_check
      _
    $region11: #{convnet_forward.5} parent=1 // pred_check_branch
      %18 = sbr.rel (0) target = $region13
    $region12: #{convnet_forward.5} parent=1 // pred_region
      _
    $region13: #{convnet_forward.5} parent=1 // pred_fallthru
      _
    // Predicated region
    $region14: #{convnet_forward.5} parent=1 // pred_check
      _
    $region15: #{convnet_forward.5} parent=1 // pred_check_branch
      %20 = sbr.rel (0) target = $region17
    $region16: #{convnet_forward.5} parent=1 // pred_region
      _
    $region17: #{convnet_forward.5} parent=1 // pred_fallthru
      _
    // Predicated region
    $region18: #{convnet_forward.5} parent=1 // pred_check
      _
    $region19: #{convnet_forward.5} parent=1 // pred_check_branch
      %22 = sbr.rel (0) target = $region21
    $region20: #{convnet_forward.5} parent=1 // pred_region
      _
    $region21: #{convnet_forward.5} parent=1 // pred_fallthru
      _
    // Predicated region
    $region22: #{convnet_forward.5} parent=1 // pred_check
      _
    $region23: #{convnet_forward.5} parent=1 // pred_check_branch
      %24 = sbr.rel (0) target = $region25
    $region24: #{convnet_forward.5} parent=1 // pred_region
      _
    $region25: #{convnet_forward.5} parent=1 // pred_fallthru
      _
    // Predicated region
    $region26: #{convnet_forward.5} parent=1 // pred_check
      _
    $region27: #{convnet_forward.5} parent=1 // pred_check_branch
      %26 = sbr.rel (0) target = $region29
    $region28: #{convnet_forward.5} parent=1 // pred_region
      _
    $region29: #{convnet_forward.5} parent=1 // pred_fallthru
      _
    %v28 = vld [vmem:[%s0] sm:$0xf]
    %v29 = vld [vmem:[%s1] sm:$0xf]
    %v30 = vld [vmem:[%s1 + $0x4] sm:$0xf]
    %v31 = vld [vmem:[%s1 + $0x8] sm:$0xf]
    %v32 = vld [vmem:[%s1 + $0xc] sm:$0xf]
    %v33 = vld [vmem:[%s1 + $0x10] sm:$0xf]
    %v34 = vld [vmem:[%s1 + $0x14] sm:$0xf]
    %v35 = vld [vmem:[%s1 + $0x18] sm:$0xf]
    %v36 = vld [vmem:[%s1 + $0x1c] sm:$0xf]
    %v37 = vld [vmem:[%s1 + $0x20] sm:$0xf]
    %v38 = vld [vmem:[%s1 + $0x24] sm:$0xf]
    %v39 = vld [vmem:[%s1 + $0x28] sm:$0xf]
    %v40 = vld [vmem:[%s1 + $0x2c] sm:$0xf]
    %v41 = vld [vmem:[%s1 + $0x30] sm:$0xf]
    %v42 = vld [vmem:[%s1 + $0x34] sm:$0xf]
    %v43 = vld [vmem:[%s1 + $0x38] sm:$0xf]
    %v44 = vld [vmem:[%s1 + $0x3c] sm:$0xf]
    %v45 = vld [vmem:[%s1 + $0x40] sm:$0xf]
    %v46 = vld [vmem:[%s1 + $0x44] sm:$0xf]
    %v47 = vld [vmem:[%s1 + $0x48] sm:$0xf]
    %v48 = vld [vmem:[%s1 + $0x4c] sm:$0xf]
    %v49 = vld [vmem:[%s1 + $0x50] sm:$0xf]
    %v50 = vld [vmem:[%s1 + $0x54] sm:$0xf]
    %v51 = vld [vmem:[%s1 + $0x58] sm:$0xf]
    %v52 = vld [vmem:[%s1 + $0x5c] sm:$0xf]
    %v53 = vld [vmem:[%s1 + $0x60] sm:$0xf]
    %v54 = vld [vmem:[%s1 + $0x64] sm:$0xf]
    %v55 = vld [vmem:[%s1 + $0x68] sm:$0xf]
    %v56 = vld [vmem:[%s1 + $0x6c] sm:$0xf]
    %v57 = vld [vmem:[%s1 + $0x70] sm:$0xf]
    %v58 = vld [vmem:[%s1 + $0x74] sm:$0xf]
    %v59 = vld [vmem:[%s1 + $0x78] sm:$0xf]
    %v60 = vld [vmem:[%s1 + $0x7c] sm:$0xf]
    %v61 = vld [vmem:[%s1 + $0x80] sm:$0xf]
    %v62 = vld [vmem:[%s1 + $0x84] sm:$0xf]
    %v63 = vld [vmem:[%s1 + $0x88] sm:$0xf]
    %v64 = vld [vmem:[%s1 + $0x8c] sm:$0xf]
    %v65 = vld [vmem:[%s1 + $0x90] sm:$0xf]
    %v66 = vld [vmem:[%s1 + $0x94] sm:$0xf]
    %v67 = vld [vmem:[%s1 + $0x98] sm:$0xf]
    %v68 = vld [vmem:[%s1 + $0x9c] sm:$0xf]
    %v69 = vld [vmem:[%s1 + $0xa0] sm:$0xf]
    %v70 = vld [vmem:[%s1 + $0xa4] sm:$0xf]
    %v71 = vld [vmem:[%s1 + $0xa8] sm:$0xf]
    %v72 = vld [vmem:[%s1 + $0xac] sm:$0xf]
    %v73 = vld [vmem:[%s1 + $0xb0] sm:$0xf]
    %v74 = vld [vmem:[%s1 + $0xb4] sm:$0xf]
    %v75 = vld [vmem:[%s1 + $0xb8] sm:$0xf]
    %v76 = vld [vmem:[%s1 + $0xbc] sm:$0xf]
    %v77 = vld [vmem:[%s1 + $0xc0] sm:$0xf]
    %v78 = vld [vmem:[%s1 + $0xc4] sm:$0xf]
    %v79 = vld [vmem:[%s2] sm:$0x1]
    %v81 = vlaneseq
    %v82 = vshrl.u32 %v81, 7
    %v83 = vsub.s32 0, %v82
    %v84 = vrot.slane %v79, %v83
    %v88 = vunpack.c.l.s4 1966171168
    %v89 = vunpack.c.0.s8 %v88
    %v90 = vlaneseq
    %v91 = vshrl.u32 %v90, 7
    %v92 = vsub.s32 %v89, %v91
    %v93 = vrot.slane %v28, %v92
    %v94 = vcombine.high %v93, %v93
    %v96 = vunpack.c.l.s4 1966171168
    %v97 = vunpack.c.0.s8 %v96
    %v98 = vlaneseq
    %v99 = vshrl.u32 %v98, 7
    %v100 = vsub.s32 %v97, %v99
    %v101 = vrot.slane %v93, %v100
    %v103 = vunpack.c.l.s4 1966171168
    %v104 = vunpack.c.0.s8 %v103
    %v105 = vlaneseq
    %v106 = vshrl.u32 %v105, 7
    %v107 = vsub.s32 %v104, %v106
    %v108 = vrot.slane %v94, %v107
    %v109 = vcombine.high %v101, %v101
    %v110 = vcombine.high %v108, %v108
    %v164 = vunpack.c.l.b16 %v29
    %v165 = vunpack.c.l.b16 %v30
    %v166 = vunpack.c.l.b16 %v31
    %v167 = vunpack.c.l.b16 %v32
    %v168 = vunpack.c.l.b16 %v33
    %v169 = vunpack.c.l.b16 %v34
    %v170 = vunpack.c.l.b16 %v35
    %v171 = vunpack.c.l.b16 %v36
    %v172 = vunpack.c.l.b16 %v37
    %v173 = vunpack.c.l.b16 %v38
    %v174 = vunpack.c.l.b16 %v39
    %v175 = vunpack.c.l.b16 %v40
    %v176 = vunpack.c.l.b16 %v41
    %v177 = vunpack.c.l.b16 %v42
    %v178 = vunpack.c.l.b16 %v43
    %v179 = vunpack.c.l.b16 %v44
    %v180 = vunpack.c.l.b16 %v45
    %v181 = vunpack.c.l.b16 %v46
    %v182 = vunpack.c.l.b16 %v47
    %v183 = vunpack.c.l.b16 %v48
    %v184 = vunpack.c.l.b16 %v49
    %v185 = vunpack.c.l.b16 %v50
    %v186 = vunpack.c.l.b16 %v51
    %v187 = vunpack.c.l.b16 %v52
    %v188 = vunpack.c.l.b16 %v53
    %v189 = vunpack.c.l.b16 %v54
    %v190 = vunpack.c.l.b16 %v55
    %v191 = vunpack.c.l.b16 %v56
    %v192 = vunpack.c.l.b16 %v57
    %v193 = vunpack.c.l.b16 %v58
    %v194 = vunpack.c.l.b16 %v59
    %v195 = vunpack.c.l.b16 %v60
    %v196 = vunpack.c.l.b16 %v61
    %v197 = vunpack.c.l.b16 %v62
    %v198 = vunpack.c.l.b16 %v63
    %v199 = vunpack.c.l.b16 %v64
    %v200 = vunpack.c.l.b16 %v65
    %v201 = vunpack.c.l.b16 %v66
    %v202 = vunpack.c.l.b16 %v67
    %v203 = vunpack.c.l.b16 %v68
    %v204 = vunpack.c.l.b16 %v69
    %v205 = vunpack.c.l.b16 %v70
    %v206 = vunpack.c.l.b16 %v71
    %v207 = vunpack.c.l.b16 %v72
    %v208 = vunpack.c.l.b16 %v73
    %v209 = vunpack.c.l.b16 %v74
    %v210 = vunpack.c.l.b16 %v75
    %v211 = vunpack.c.l.b16 %v76
    %v212 = vunpack.c.l.b16 %v77
    %v213 = vunpack.c.l.b16 %v78
    %v214 = vpack.c.b16 %v165, %v164
    %v215 = vpack.c.b16 %v167, %v166
    %v216 = vpack.c.b16 %v169, %v168
    %v217 = vpack.c.b16 %v171, %v170
    %v218 = vpack.c.b16 %v173, %v172
    %v219 = vpack.c.b16 %v175, %v174
    %v220 = vpack.c.b16 %v177, %v176
    %v221 = vpack.c.b16 %v179, %v178
    %v222 = vpack.c.b16 %v181, %v180
    %v223 = vpack.c.b16 %v183, %v182
    %v224 = vpack.c.b16 %v185, %v184
    %v225 = vpack.c.b16 %v187, %v186
    %v226 = vpack.c.b16 %v189, %v188
    %v227 = vpack.c.b16 %v191, %v190
    %v228 = vpack.c.b16 %v193, %v192
    %v229 = vpack.c.b16 %v195, %v194
    %v230 = vpack.c.b16 %v197, %v196
    %v231 = vpack.c.b16 %v199, %v198
    %v232 = vpack.c.b16 %v201, %v200
    %v233 = vpack.c.b16 %v203, %v202
    %v234 = vpack.c.b16 %v205, %v204
    %v235 = vpack.c.b16 %v207, %v206
    %v236 = vpack.c.b16 %v209, %v208
    %v237 = vpack.c.b16 %v211, %v210
    %v238 = vpack.c.b16 %v213, %v212
    %vm264 = vcmask 130048
    %v266 = vsel %vm264, %v110, 0
    %268 = vmatprep.subr.bf16.mxu0 0
    %269 = vmatpush1.bf16.msra.mxu0 %v214
    %270 = vmatprep.subr.bf16.mxu0 0
    %271 = vmatpush1.bf16.msra.mxu0 %v215
    %272 = vmatprep.subr.bf16.mxu0 0
    %273 = vmatpush1.bf16.msra.mxu0 %v216
    %274 = vmatprep.subr.bf16.mxu0 0
    %275 = vmatpush1.bf16.msra.mxu0 %v217
    %276 = vmatprep.subr.bf16.mxu0 0
    %277 = vmatpush1.bf16.msra.mxu0 %v218
    %278 = vmatprep.subr.bf16.mxu0 0
    %279 = vmatpush1.bf16.msra.mxu0 %v219
    %280 = vmatprep.subr.bf16.mxu0 0
    %281 = vmatpush1.bf16.msra.mxu0 %v220
    %282 = vmatprep.subr.bf16.mxu0 0
    %283 = vmatpush1.bf16.msra.mxu0 %v221
    %284 = vmatprep.subr.bf16.mxu0 0
    %285 = vmatpush1.bf16.msra.mxu0 %v222
    %286 = vmatprep.subr.bf16.mxu0 0
    %287 = vmatpush1.bf16.msra.mxu0 %v223
    %288 = vmatprep.subr.bf16.mxu0 0
    %289 = vmatpush1.bf16.msra.mxu0 %v224
    %290 = vmatprep.subr.bf16.mxu0 0
    %291 = vmatpush1.bf16.msra.mxu0 %v225
    %292 = vmatprep.subr.bf16.mxu0 0
    %293 = vmatpush1.bf16.msra.mxu0 %v226
    %294 = vmatprep.subr.bf16.mxu0 0
    %295 = vmatpush1.bf16.msra.mxu0 %v227
    %296 = vmatprep.subr.bf16.mxu0 0
    %297 = vmatpush1.bf16.msra.mxu0 %v228
    %298 = vmatprep.subr.bf16.mxu0 0
    %299 = vmatpush1.bf16.msra.mxu0 %v229
    %300 = vmatprep.mubr.bf16.mxu0 %v108
    %301 = vmatmul.mubr.bf16.gmra.mrb[0].mxu0 %v101
    %v302 = vpop.f32.mrb[0].mxu0
    %v303 = vadd.f32 %v84, %v302
    %v304 = vpop.f32.mrb[0].mxu0
    %v305 = vpop.f32.mrb[0].mxu0
    %v306 = vpop.f32.mrb[0].mxu0
    %307 = vdwg.mxu0
    %308 = vmatprep.subr.bf16.mxu0 0
    %309 = vmatpush1.bf16.msra.mxu0 %v230
    %310 = vmatprep.subr.bf16.mxu0 0
    %311 = vmatpush1.bf16.msra.mxu0 %v231
    %312 = vmatprep.subr.bf16.mxu0 0
    %313 = vmatpush1.bf16.msra.mxu0 %v232
    %314 = vmatprep.subr.bf16.mxu0 0
    %315 = vmatpush1.bf16.msra.mxu0 %v233
    %316 = vmatprep.subr.bf16.mxu0 0
    %317 = vmatpush1.bf16.msra.mxu0 %v234
    %318 = vmatprep.subr.bf16.mxu0 0
    %319 = vmatpush1.bf16.msra.mxu0 %v235
    %320 = vmatprep.subr.bf16.mxu0 0
    %321 = vmatpush1.bf16.msra.mxu0 %v236
    %322 = vmatprep.subr.bf16.mxu0 0
    %323 = vmatpush1.bf16.msra.mxu0 %v237
    %324 = vmatprep.subr.bf16.mxu0 0
    %325 = vmatpush1.bf16.msra.mxu0 %v238
    %326 = vmatprep.subr.bf16.mxu0 0
    %327 = vmatpush1.bf16.msra.mxu0 0
    %328 = vmatprep.subr.bf16.mxu0 0
    %329 = vmatpush1.bf16.msra.mxu0 0
    %330 = vmatprep.subr.bf16.mxu0 0
    %331 = vmatpush1.bf16.msra.mxu0 0
    %332 = vmatprep.subr.bf16.mxu0 0
    %333 = vmatpush1.bf16.msra.mxu0 0
    %334 = vmatprep.subr.bf16.mxu0 0
    %335 = vmatpush1.bf16.msra.mxu0 0
    %336 = vmatprep.subr.bf16.mxu0 0
    %337 = vmatpush1.bf16.msra.mxu0 0
    %338 = vmatprep.subr.bf16.mxu0 0
    %339 = vmatpush1.bf16.msra.mxu0 0
    %340 = vmatprep.mubr.bf16.mxu0 %v266
    %341 = vmatmul.mubr.bf16.gmra.mrb[0].mxu0 %v109
    %v342 = vpop.f32.mrb[0].mxu0
    %v343 = vadd.f32 %v303, %v342
    %v344 = vpop.f32.mrb[0].mxu0
    %v345 = vpop.f32.mrb[0].mxu0
    %v346 = vpop.f32.mrb[0].mxu0
    %347 = vdwg.mxu0
    %v348 = vmax.f32 %v343, 0.0
    %v349 = vpack.c.bf16 %v348, %v348
    %v350 = vld [vmem:[%s3] sm:$0xf]
    %v351 = vld [vmem:[%s3 + $0x4] sm:$0xf]
    %v352 = vld [vmem:[%s3 + $0x8] sm:$0xf]
    %v353 = vld [vmem:[%s3 + $0xc] sm:$0xf]
    %v354 = vld [vmem:[%s3 + $0x10] sm:$0xf]
    %v355 = vld [vmem:[%s3 + $0x14] sm:$0xf]
    %v356 = vld [vmem:[%s3 + $0x18] sm:$0xf]
    %v357 = vld [vmem:[%s3 + $0x1c] sm:$0xf]
    %v358 = vld [vmem:[%s3 + $0x20] sm:$0xf]
    %v359 = vld [vmem:[%s3 + $0x24] sm:$0xf]
    %v360 = vld [vmem:[%s3 + $0x28] sm:$0xf]
    %v361 = vld [vmem:[%s3 + $0x2c] sm:$0xf]
    %v362 = vld [vmem:[%s3 + $0x30] sm:$0xf]
    %v363 = vld [vmem:[%s3 + $0x34] sm:$0xf]
    %v364 = vld [vmem:[%s3 + $0x38] sm:$0xf]
    %v365 = vld [vmem:[%s3 + $0x3c] sm:$0xf]
    %v366 = vld [vmem:[%s4] sm:$0x1]
    %v368 = vlaneseq
    %v369 = vshrl.u32 %v368, 7
    %v370 = vsub.s32 0, %v369
    %v371 = vrot.slane %v366, %v370
    %v389 = vunpack.c.l.b16 %v350
    %v390 = vunpack.c.l.b16 %v351
    %v391 = vunpack.c.l.b16 %v352
    %v392 = vunpack.c.l.b16 %v353
    %v393 = vunpack.c.l.b16 %v354
    %v394 = vunpack.c.l.b16 %v355
    %v395 = vunpack.c.l.b16 %v356
    %v396 = vunpack.c.l.b16 %v357
    %v397 = vunpack.c.l.b16 %v358
    %v398 = vunpack.c.l.b16 %v359
    %v399 = vunpack.c.l.b16 %v360
    %v400 = vunpack.c.l.b16 %v361
    %v401 = vunpack.c.l.b16 %v362
    %v402 = vunpack.c.l.b16 %v363
    %v403 = vunpack.c.l.b16 %v364
    %v404 = vunpack.c.l.b16 %v365
    %v405 = vpack.c.b16 %v390, %v389
    %v406 = vpack.c.b16 %v392, %v391
    %v407 = vpack.c.b16 %v394, %v393
    %v408 = vpack.c.b16 %v396, %v395
    %v409 = vpack.c.b16 %v398, %v397
    %v410 = vpack.c.b16 %v400, %v399
    %v411 = vpack.c.b16 %v402, %v401
    %v412 = vpack.c.b16 %v404, %v403
    %421 = vmatprep.subr.bf16.mxu0 0
    %422 = vmatpush1.bf16.msra.mxu0 %v405
    %423 = vmatprep.subr.bf16.mxu0 0
    %424 = vmatpush1.bf16.msra.mxu0 %v406
    %425 = vmatprep.subr.bf16.mxu0 0
    %426 = vmatpush1.bf16.msra.mxu0 %v407
    %427 = vmatprep.subr.bf16.mxu0 0
    %428 = vmatpush1.bf16.msra.mxu0 %v408
    %429 = vmatprep.subr.bf16.mxu0 0
    %430 = vmatpush1.bf16.msra.mxu0 %v409
    %431 = vmatprep.subr.bf16.mxu0 0
    %432 = vmatpush1.bf16.msra.mxu0 %v410
    %433 = vmatprep.subr.bf16.mxu0 0
    %434 = vmatpush1.bf16.msra.mxu0 %v411
    %435 = vmatprep.subr.bf16.mxu0 0
    %436 = vmatpush1.bf16.msra.mxu0 %v412
    %437 = vmatprep.subr.bf16.mxu0 0
    %438 = vmatpush1.bf16.msra.mxu0 0
    %439 = vmatprep.subr.bf16.mxu0 0
    %440 = vmatpush1.bf16.msra.mxu0 0
    %441 = vmatprep.subr.bf16.mxu0 0
    %442 = vmatpush1.bf16.msra.mxu0 0
    %443 = vmatprep.subr.bf16.mxu0 0
    %444 = vmatpush1.bf16.msra.mxu0 0
    %445 = vmatprep.subr.bf16.mxu0 0
    %446 = vmatpush1.bf16.msra.mxu0 0
    %447 = vmatprep.subr.bf16.mxu0 0
    %448 = vmatpush1.bf16.msra.mxu0 0
    %449 = vmatprep.subr.bf16.mxu0 0
    %450 = vmatpush1.bf16.msra.mxu0 0
    %451 = vmatprep.subr.bf16.mxu0 0
    %452 = vmatpush1.bf16.msra.mxu0 0
    %453 = vmatprep.mubr.bf16.mxu0 0
    %454 = vmatmul.mubr.bf16.gmra.mrb[0].mxu0 %v349
    %v455 = vpop.f32.mrb[0].mxu0
    %v456 = vadd.f32 %v371, %v455
    %v457 = vpop.f32.mrb[0].mxu0
    %v458 = vpop.f32.mrb[0].mxu0
    %v459 = vpop.f32.mrb[0].mxu0
    %460 = vdwg.mxu0
    %v461 = vmax.f32 %v456, 0.0
    %v462 = vpack.c.bf16 %v461, %v461
    %v463 = vld [vmem:[%s5] sm:$0xf]
    %v464 = vld [vmem:[%s5 + $0x4] sm:$0xf]
    %v465 = vld [vmem:[%s5 + $0x8] sm:$0xf]
    %v466 = vld [vmem:[%s5 + $0xc] sm:$0xf]
    %v467 = vld [vmem:[%s5 + $0x10] sm:$0xf]
    %v468 = vld [vmem:[%s5 + $0x14] sm:$0xf]
    %v469 = vld [vmem:[%s5 + $0x18] sm:$0xf]
    %v470 = vld [vmem:[%s5 + $0x1c] sm:$0xf]
    %v471 = vld [vmem:[%s5 + $0x20] sm:$0xf]
    %v472 = vld [vmem:[%s5 + $0x24] sm:$0xf]
    %v473 = vld [vmem:[%s5 + $0x28] sm:$0xf]
    %v474 = vld [vmem:[%s5 + $0x2c] sm:$0xf]
    %v475 = vld [vmem:[%s5 + $0x30] sm:$0xf]
    %v476 = vld [vmem:[%s5 + $0x34] sm:$0xf]
    %v477 = vld [vmem:[%s5 + $0x38] sm:$0xf]
    %v478 = vld [vmem:[%s5 + $0x3c] sm:$0xf]
    %v479 = vld [vmem:[%s6] sm:$0x1]
    %v481 = vlaneseq
    %v482 = vshrl.u32 %v481, 7
    %v483 = vsub.s32 0, %v482
    %v484 = vrot.slane %v479, %v483
    %v502 = vunpack.c.l.b16 %v463
    %v503 = vunpack.c.l.b16 %v464
    %v504 = vunpack.c.l.b16 %v465
    %v505 = vunpack.c.l.b16 %v466
    %v506 = vunpack.c.l.b16 %v467
    %v507 = vunpack.c.l.b16 %v468
    %v508 = vunpack.c.l.b16 %v469
    %v509 = vunpack.c.l.b16 %v470
    %v510 = vunpack.c.l.b16 %v471
    %v511 = vunpack.c.l.b16 %v472
    %v512 = vunpack.c.l.b16 %v473
    %v513 = vunpack.c.l.b16 %v474
    %v514 = vunpack.c.l.b16 %v475
    %v515 = vunpack.c.l.b16 %v476
    %v516 = vunpack.c.l.b16 %v477
    %v517 = vunpack.c.l.b16 %v478
    %v518 = vpack.c.b16 %v503, %v502
    %v519 = vpack.c.b16 %v505, %v504
    %v520 = vpack.c.b16 %v507, %v506
    %v521 = vpack.c.b16 %v509, %v508
    %v522 = vpack.c.b16 %v511, %v510
    %v523 = vpack.c.b16 %v513, %v512
    %v524 = vpack.c.b16 %v515, %v514
    %v525 = vpack.c.b16 %v517, %v516
    %534 = vmatprep.subr.bf16.mxu0 0
    %535 = vmatpush1.bf16.msra.mxu0 %v518
    %536 = vmatprep.subr.bf16.mxu0 0
    %537 = vmatpush1.bf16.msra.mxu0 %v519
    %538 = vmatprep.subr.bf16.mxu0 0
    %539 = vmatpush1.bf16.msra.mxu0 %v520
    %540 = vmatprep.subr.bf16.mxu0 0
    %541 = vmatpush1.bf16.msra.mxu0 %v521
    %542 = vmatprep.subr.bf16.mxu0 0
    %543 = vmatpush1.bf16.msra.mxu0 %v522
    %544 = vmatprep.subr.bf16.mxu0 0
    %545 = vmatpush1.bf16.msra.mxu0 %v523
    %546 = vmatprep.subr.bf16.mxu0 0
    %547 = vmatpush1.bf16.msra.mxu0 %v524
    %548 = vmatprep.subr.bf16.mxu0 0
    %549 = vmatpush1.bf16.msra.mxu0 %v525
    %550 = vmatprep.subr.bf16.mxu0 0
    %551 = vmatpush1.bf16.msra.mxu0 0
    %552 = vmatprep.subr.bf16.mxu0 0
    %553 = vmatpush1.bf16.msra.mxu0 0
    %554 = vmatprep.subr.bf16.mxu0 0
    %555 = vmatpush1.bf16.msra.mxu0 0
    %556 = vmatprep.subr.bf16.mxu0 0
    %557 = vmatpush1.bf16.msra.mxu0 0
    %558 = vmatprep.subr.bf16.mxu0 0
    %559 = vmatpush1.bf16.msra.mxu0 0
    %560 = vmatprep.subr.bf16.mxu0 0
    %561 = vmatpush1.bf16.msra.mxu0 0
    %562 = vmatprep.subr.bf16.mxu0 0
    %563 = vmatpush1.bf16.msra.mxu0 0
    %564 = vmatprep.subr.bf16.mxu0 0
    %565 = vmatpush1.bf16.msra.mxu0 0
    %566 = vmatprep.mubr.bf16.mxu0 0
    %567 = vmatmul.mubr.bf16.gmra.mrb[0].mxu0 %v462
    %v568 = vpop.f32.mrb[0].mxu0
    %v569 = vadd.f32 %v484, %v568
    %v570 = vpop.f32.mrb[0].mxu0
    %v571 = vpop.f32.mrb[0].mxu0
    %v572 = vpop.f32.mrb[0].mxu0
    %573 = vdwg.mxu0
    %574 = vst [vmem:[#allocation2] sm:$0x3] %v569
    // Predicated region
    $region30: #{convnet_forward.5} parent=1 // pred_check
      _
    $region31: #{convnet_forward.5} parent=1 // pred_check_branch
      %576 = sbr.rel (0) target = $region33
    $region32: #{convnet_forward.5} parent=1 // pred_region
      %s578 = ssub.s32 32, 32
      %579 = vsyncadd [#allocation3], %s578
      %s581 = sshll.u32 [#allocation2], 4
      %s582 = int_to_ptr.vmem [resolvable:$true] %s581
      %584 = dma.vmem_to_hbm [thread:$0]  %s582, 32, %s7, [#allocation3]
    $region33: #{convnet_forward.5} parent=1 // pred_fallthru
      _
    // Predicated region
    $region34: #{convnet_forward.5} parent=1 // pred_check
      _
    $region35: #{convnet_forward.5} parent=1 // pred_check_branch
      %586 = sbr.rel (0) target = $region37
    $region36: #{convnet_forward.5} parent=1 // pred_region
      %587 = dma.done [#allocation3], 32
    $region37: #{convnet_forward.5} parent=1 // pred_fallthru
      _
    %588 = vsyncpa [#allocation3], 1

</llo_original>
